<compile_context>
chip_gen: v6e
topology: v6e:2x2x1
jax: 0.10.0
libtpu: 0.0.40
codegen_flags: <defaults>
</compile_context>

<pallas_src>
import functools
import math

import jax
import jax.numpy as jnp
from jax.experimental import pallas as pl
from jax.experimental.pallas import tpu as pltpu

_BF16 = 2
_F32 = 4


# --------------------------------- helpers ----------------------------------- #

def _round_up(n, mult):
    return ((n + mult - 1) // mult) * mult


def _on_tpu():
    try:
        return jax.default_backend() == "tpu"
    except Exception:
        return False


_ON_TPU = _on_tpu()


def _vmem_capacity_bytes():
    """Physical per-core VMEM; conservative (v7x-sized) fallback off-TPU."""
    try:
        return int(pltpu.get_tpu_info().vmem_capacity_bytes)
    except Exception:
        return 64 * 1024 * 1024


def _spec(shape, index_map, *, invariant=False):
    """BlockSpec; grid-invariant operands are single-buffered on TPU to save VMEM."""
    if invariant and _ON_TPU and hasattr(pl, "Buffered"):
        try:
            return pl.BlockSpec(shape, index_map, pipeline_mode=pl.Buffered(1))
        except TypeError:  # older jax without pipeline_mode
            pass
    return pl.BlockSpec(shape, index_map)


def _largest_divisor(total, fits, prefer=lambda d: True):
    divs = [d for d in range(1, total + 1) if total % d == 0 and fits(d)]
    if not divs:
        return 1
    pref = [d for d in divs if prefer(d)]
    return max(pref) if pref else max(divs)


# ------------------------------ Pallas kernels ------------------------------- #

def _conv_pool_kernel(x_ref, w_ref, b_ref, o_ref, acc_ref, *,
                      tile_h, wout, acc_rows, inv_hw):
    """3x3 'same' conv (9 accumulating MXU matmuls over in-kernel tap gathers)
    + ReLU + running spatial sum for AdaptiveAvgPool2d(1).

    NOTE: correctness requires grid axis 1 (spatial tiles) to stay the innermost,
    sequential ("arbitrary") axis -- acc_ref accumulates across it per batch image.
    All pl.program_id / pl.num_programs calls are at the kernel top level only.
    """
    t = pl.program_id(1)
    last_t = pl.num_programs(1) - 1

    @pl.when(t == 0)
    def _init():
        acc_ref[...] = jnp.zeros_like(acc_ref)

    xt = x_ref[0]                                    # [tile_h+2, W+2, C] bf16
    f_pad = w_ref.shape[-1]
    m = tile_h * wout
    y = jnp.zeros((m, f_pad), jnp.float32)
    for dh in range(3):                              # 3x3 taps gathered in-kernel
        for dw in range(3):                          # (no im2col HBM expansion)
            xs = xt[dh:dh + tile_h, dw:dw + wout, :].reshape(m, -1)
            y = y + jnp.dot(xs, w_ref[dh * 3 + dw],
                            preferred_element_type=jnp.float32)
    y = jnp.maximum(y + b_ref[...], 0.0)
    # Partial spatial sum kept as `acc_rows` sublane rows (VALU adds); the single
    # cross-sublane (XLU) reduce is deferred to the finalize branch.
    acc_ref[...] += jnp.sum(y.reshape(m // acc_rows, acc_rows, f_pad), axis=0)

    @pl.when(t == last_t)
    def _finalize():
        pooled = jnp.sum(acc_ref[...], axis=0, keepdims=True) * inv_hw
        o_ref[...] = pooled[None].astype(o_ref.dtype)


def _fc_arcface_kernel(p_ref, fw_ref, fb_ref, lab_ref, aw_ref, o_ref, emb_ref, *,
                       cos_m, sin_m, thresh, mm, s, tile_l):
    """dropout(eval)=identity -> fc (+folded eval-BatchNorm) -> ArcFace margin.

    Batched over the whole mini-batch (M = B) and tiled over classes (lane-dense
    multiple-of-128 tile).  The normalized embedding is computed once at l == 0
    into a bf16 scratch and reused for every class tile ("arbitrary" grid axis).
    """
    l = pl.program_id(0)

    @pl.when(l == 0)
    def _embed():
        pooled = p_ref[...][:, 0, :]                                    # [B, F_pad] bf16
        emb = jnp.dot(pooled, fw_ref[...],
                      preferred_element_type=jnp.float32) + fb_ref[...]  # [B, D_pad] f32
        inv_norm = jax.lax.rsqrt(
            jnp.maximum(jnp.sum(emb * emb, axis=-1, keepdims=True), 1e-24))
        emb_ref[...] = (emb * inv_norm).astype(emb_ref.dtype)

    cosine = jnp.dot(emb_ref[...], aw_ref[...],
                     preferred_element_type=jnp.float32)                 # [B, tile_l]
    sine = jnp.sqrt(jnp.clip(1.0 - cosine * cosine, 0.0, 1.0))
    phi = cosine * cos_m - sine * sin_m
    phi = jnp.where(cosine > thresh, phi, cosine - mm)
    cols = l * tile_l + jax.lax.broadcasted_iota(jnp.int32, cosine.shape, 1)
    one_hot = (cols == lab_ref[...]).astype(jnp.float32)
    o_ref[...] = (one_hot * phi + (1.0 - one_hot) * cosine) * s


# --------------------------------- forward ----------------------------------- #

def cv_classifier_forward(x, label, params, *, m=0.2, s=30.0, bn_eps=1e-5):
    """Training-path forward: ArcFace-margin logits [B, num_labels]."""
    B, C, H, W = x.shape
    conv_w, conv_b = params["conv_w"], params["conv_b"]      # [F,C,3,3], [F]
    fc_w, fc_b = params["fc_w"], params["fc_b"]              # [fc_dim,F], [fc_dim]
    arc_w = params["arc_w"]                                  # [L, fc_dim]
    F_out, fc_dim, L = conv_w.shape[0], fc_w.shape[0], arc_w.shape[0]

    # Lane-dense padded feature dims (multiples of 128): unmasked stores, full lanes.
    F_pad = _round_up(F_out, 128)
    D_pad = _round_up(fc_dim, 128)
    L_pad = _round_up(L, 128)

    # Per-generation VMEM budget: ~100 MiB scoped limit on v5e/v6e (128 MiB phys),
    # ~50 MiB on v7x (64 MiB per core); conservative fallback when not on TPU.
    cap = _vmem_capacity_bytes()
    vmem_limit = int(min(0.78 * cap, 100 * 1024 * 1024))
    budget = int(0.85 * vmem_limit)          # headroom for compiler-internal scratch

    # ---------------- stage 1: conv3x3 + ReLU + global average pool -------------
    # Conv weights as 9 [C, F_pad] tap matrices (bf16 MXU operands, zero-padded F).
    w_tap = jnp.transpose(conv_w, (2, 3, 1, 0)).reshape(9, C, F_out)
    w_tap = jnp.pad(w_tap, ((0, 0), (0, 0), (0, F_pad - F_out))).astype(jnp.bfloat16)
    b_conv = jnp.pad(conv_b.reshape(1, F_out),
                     ((0, 0), (0, F_pad - F_out))).astype(jnp.float32)

    fixed1 = (9 * C * F_pad * _BF16          # tap weights (single-buffered on TPU)
              + 2 * F_pad * _F32             # conv bias
              + 8 * F_pad * _F32             # pool accumulator scratch
              + 2 * F_pad * _BF16)           # pooled output block

    def _fits(th):
        return (fixed1
                + 2 * (th + 2) * (W + 2) * C * _BF16    # double-buffered act. tile
                + th * W * F_pad * _F32                 # f32 pre-activation tile
                ) <= budget

    # Largest row tile (divisor of H) that fits VMEM; prefer 8-row-aligned tiles.
    tile_h = _largest_divisor(H, _fits, prefer=lambda d: (d * W) % 8 == 0)
    n_t = H // tile_h
    acc_rows = 8 if (tile_h * W) % 8 == 0 else 1

    # Raw NHWC activation stream with a 2-row halo per tile (~1x HBM bytes instead
    # of the 9x im2col expansion); taps are gathered in-kernel by static slices.
    x_nhwc = jnp.transpose(x, (0, 2, 3, 1))
    xp = jnp.pad(x_nhwc, ((0, 0), (1, 1), (1, 1), (0, 0)))
    x_tiled = jnp.stack(
        [xp[:, i * tile_h:i * tile_h + tile_h + 2] for i in range(n_t)], axis=1)
    x_tiled = x_tiled.reshape(B * n_t, tile_h + 2, W + 2, C).astype(jnp.bfloat16)

    pooled = pl.pallas_call(
        functools.partial(_conv_pool_kernel, tile_h=tile_h, wout=W,
                          acc_rows=acc_rows, inv_hw=1.0 / (H * W)),
        out_shape=jax.ShapeDtypeStruct((B, 1, F_pad), jnp.bfloat16),
        grid_spec=pltpu.PrefetchScalarGridSpec(
            num_scalar_prefetch=0,
            # NOTE: (batch, row-tiles); the row-tile axis MUST stay innermost and
            # "arbitrary" -- the pool accumulator depends on its sequential order.
            grid=(B, n_t),
            in_specs=[
                pl.BlockSpec((1, tile_h + 2, W + 2, C),
                             lambda b, t: (b * n_t + t, 0, 0, 0)),
                _spec((9, C, F_pad), lambda b, t: (0, 0, 0), invariant=True),
                _spec((1, F_pad), lambda b, t: (0, 0), invariant=True),
            ],
            out_specs=pl.BlockSpec((1, 1, F_pad), lambda b, t: (b, 0, 0)),
            scratch_shapes=[pltpu.VMEM((acc_rows, F_pad), jnp.float32)],
        ),
        compiler_params=pltpu.CompilerParams(
            dimension_semantics=("parallel", "arbitrary"),
            vmem_limit_bytes=vmem_limit,
        ),
    )(x_tiled, w_tap, b_conv)

    # ---------------- stage 2: fc (+folded eval-BN) + ArcFace margin ------------
    bn_scale = params["bn_gamma"] * jax.lax.rsqrt(params["bn_var"] + bn_eps)
    w_fc = fc_w.T.astype(jnp.float32) * bn_scale[None, :]
    w_fc = jnp.pad(w_fc, ((0, F_pad - F_out), (0, D_pad - fc_dim))).astype(jnp.bfloat16)
    b_fc = ((fc_b - params["bn_mean"]) * bn_scale + params["bn_beta"]).reshape(1, fc_dim)
    b_fc = jnp.pad(b_fc, ((0, 0), (0, D_pad - fc_dim))).astype(jnp.float32)

    # ArcFace weight row-normalization hoisted out of the kernel (f32 math, bf16 operand).
    arc_n = arc_w * jax.lax.rsqrt(
        jnp.maximum(jnp.sum(arc_w * arc_w, axis=1, keepdims=True), 1e-24))
    w_arc = jnp.pad(arc_n.T, ((0, D_pad - fc_dim), (0, L_pad - L))).astype(jnp.bfloat16)

    fixed2 = (B * F_pad * _BF16 + F_pad * D_pad * _BF16 + D_pad * _F32
              + B * _F32 + B * D_pad * _BF16)
    per_l128 = 2 * D_pad * 128 * _BF16 + 2 * B * 128 * _F32
    n128_max = max(1, (budget - fixed2) // per_l128)
    n128 = L_pad // 128
    t128 = min(n128, n128_max)
    while n128 % t128:
        t128 -= 1
    tile_l = 128 * t128
    n_l = L_pad // tile_l

    cos_m, sin_m = math.cos(m), math.sin(m)
    thresh, mm = math.cos(math.pi - m), math.sin(math.pi - m) * m

    logits = pl.pallas_call(
        functools.partial(_fc_arcface_kernel, cos_m=cos_m, sin_m=sin_m,
                          thresh=thresh, mm=mm, s=float(s), tile_l=tile_l),
        out_shape=jax.ShapeDtypeStruct((B, L_pad), jnp.float32),
        grid_spec=pltpu.PrefetchScalarGridSpec(
            num_scalar_prefetch=0,
            grid=(n_l,),
            in_specs=[
                _spec((B, 1, F_pad), lambda l: (0, 0, 0), invariant=True),
                _spec((F_pad, D_pad), lambda l: (0, 0), invariant=True),
                _spec((1, D_pad), lambda l: (0, 0), invariant=True),
                _spec((B, 1), lambda l: (0, 0), invariant=True),
                pl.BlockSpec((D_pad, tile_l), lambda l: (0, l)),
            ],
            out_specs=pl.BlockSpec((B, tile_l), lambda l: (0, l)),
            scratch_shapes=[pltpu.VMEM((B, D_pad), jnp.bfloat16)],
        ),
        compiler_params=pltpu.CompilerParams(
            dimension_semantics=("arbitrary",),   # emb scratch is filled at l == 0
            vmem_limit_bytes=vmem_limit,
        ),
    )(pooled, w_fc, b_fc, label.astype(jnp.int32).reshape(B, 1), w_arc)

    # Padded class columns (L..L_pad) carry cosine == 0 (NOT -inf); they are only
    # valid to slice away, never to feed into e.g. an in-kernel softmax.
    return logits[:, :L]


# ----------------------------- pure-JAX reference ----------------------------- #

def _reference_forward(x, label, params, *, m, s, bn_eps=1e-5):
    """f32 reference with identical (eval-mode) semantics, for validation."""
    feat = jax.lax.conv_general_dilated(
        x, params["conv_w"], window_strides=(1, 1), padding="SAME",
        dimension_numbers=("NCHW", "OIHW", "NCHW"))
    feat = jnp.maximum(feat + params["conv_b"][None, :, None, None], 0.0)
    pooled = feat.mean(axis=(2, 3))
    h = pooled @ params["fc_w"].T + params["fc_b"]
    h = ((h - params["bn_mean"]) * jax.lax.rsqrt(params["bn_var"] + bn_eps)
         * params["bn_gamma"] + params["bn_beta"])
    emb_n = h / jnp.maximum(jnp.linalg.norm(h, axis=1, keepdims=True), 1e-12)
    w_n = params["arc_w"] / jnp.maximum(
        jnp.linalg.norm(params["arc_w"], axis=1, keepdims=True), 1e-12)
    cosine = emb_n @ w_n.T
    sine = jnp.sqrt(jnp.clip(1.0 - cosine * cosine, 0.0, 1.0))
    phi = cosine * math.cos(m) - sine * math.sin(m)
    phi = jnp.where(cosine > math.cos(math.pi - m), phi,
                    cosine - math.sin(math.pi - m) * m)
    one_hot = jax.nn.one_hot(label, cosine.shape[1], dtype=cosine.dtype)
    return (one_hot * phi + (1.0 - one_hot) * cosine) * s


# ----------------------------------- main ------------------------------------- #

if __name__ == "__main__":
    B, C, H, W = 2, 4, 16, 16          # NCHW image input
    IN_FEATURES = 32                   # backbone output channels
    FC_DIM = 32
    NUM_LABELS = 16
    M_MARGIN, S_SCALE = 0.2, 30.0

    key = jax.random.PRNGKey(0)
    ks = jax.random.split(key, 9)

    x = jax.random.normal(ks[0], (B, C, H, W), dtype=jnp.float32)
    label = jax.random.randint(ks[1], (B,), 0, NUM_LABELS, dtype=jnp.int32)

    params = {
        "conv_w": 0.1 * jax.random.normal(ks[2], (IN_FEATURES, C, 3, 3), jnp.float32),
        "conv_b": 0.1 * jax.random.normal(ks[3], (IN_FEATURES,), jnp.float32),
        "fc_w": 0.1 * jax.random.normal(ks[4], (FC_DIM, IN_FEATURES), jnp.float32),
        "fc_b": 0.1 * jax.random.normal(ks[5], (FC_DIM,), jnp.float32),
        "bn_gamma": 1.0 + 0.1 * jax.random.normal(ks[6], (FC_DIM,), jnp.float32),
        "bn_beta": 0.1 * jax.random.normal(ks[7], (FC_DIM,), jnp.float32),
        "bn_mean": jnp.zeros((FC_DIM,), jnp.float32),
        "bn_var": jnp.ones((FC_DIM,), jnp.float32),
        "arc_w": 0.1 * jax.random.normal(ks[8], (NUM_LABELS, FC_DIM), jnp.float32),
    }

    fwd = jax.jit(functools.partial(cv_classifier_forward, m=M_MARGIN, s=S_SCALE))
    logits = fwd(x, label, params)
    jax.block_until_ready(logits)
    assert logits.shape == (B, NUM_LABELS) and logits.dtype == jnp.float32

    # Scale-aware correctness check: compare at cosine scale (logits = s * cos-like),
    # tolerance sized for the bf16 MXU operand chain (conv -> fc -> arcface).
    ref = _reference_forward(x, label, params, m=M_MARGIN, s=S_SCALE)
    cos_scale_err = float(jnp.max(jnp.abs(logits - ref))) / S_SCALE
    assert cos_scale_err < 3e-2, f"cosine-scale error too large: {cos_scale_err}"

    print("KERNEL_OK")
</pallas_src>

<mosaic_0001>
module attributes {stable_mosaic.version = 11 : i64} {
  func.func @_conv_pool_kernel(%arg0: i32, %arg1: i32, %arg2: memref<1x18x18x4xbf16, #tpu.memory_space<vmem>>, %arg3: memref<9x4x128xbf16, #tpu.memory_space<vmem>>, %arg4: memref<1x128xf32, #tpu.memory_space<vmem>>, %arg5: memref<1x1x128xbf16, #tpu.memory_space<vmem>>, %arg6: memref<8x128xf32, #tpu.memory_space<vmem>>) attributes {dimension_semantics = [#tpu.dimension_semantics<parallel>, #tpu.dimension_semantics<arbitrary>], iteration_bounds = array<i64: 2, 1>, scalar_prefetch = 0 : i64, scratch_operands = 1 : i64, tpu.core_type = #tpu.core_type<tc>, window_params = [{transform_indices = @transform_0, window_bounds = array<i64: 1, 18, 18, 4>}, {pipeline_mode = #tpu.pipeline_mode<synchronous>, transform_indices = @transform_1, window_bounds = array<i64: 9, 4, 128>}, {pipeline_mode = #tpu.pipeline_mode<synchronous>, transform_indices = @transform_2, window_bounds = array<i64: 1, 128>}, {transform_indices = @transform_3, window_bounds = array<i64: 1, 1, 128>}]} {
    %c0_i32 = arith.constant 0 : i32
    %0 = arith.cmpi eq, %arg1, %c0_i32 : i32
    %1 = arith.extui %0 : i1 to i32
    %c0_i32_0 = arith.constant 0 : i32
    %2 = arith.cmpi ne, %1, %c0_i32_0 : i32
    scf.if %2 {
      %cst_42 = arith.constant 0.000000e+00 : f32
      %73 = vector.broadcast %cst_42 : f32 to vector<8x128xf32>
      %c0_43 = arith.constant 0 : index
      %c0_44 = arith.constant 0 : index
      %74 = vector.load %arg6[%c0_43, %c0_44] : memref<8x128xf32, #tpu.memory_space<vmem>>, vector<8x128xf32>
      tpu.vector_store %arg6[%c0_43, %c0_44], %73 {strides = array<i32>} : memref<8x128xf32, #tpu.memory_space<vmem>>, vector<8x128xf32>,
    } else {
    }
    %c0 = arith.constant 0 : index
    %c0_1 = arith.constant 0 : index
    %c0_2 = arith.constant 0 : index
    %c0_3 = arith.constant 0 : index
    %3 = vector.load %arg2[%c0, %c0_1, %c0_2, %c0_3] : memref<1x18x18x4xbf16, #tpu.memory_space<vmem>>, vector<1x18x18x4xbf16>
    %4 = vector.shape_cast %3 : vector<1x18x18x4xbf16> to vector<18x18x4xbf16>
    %cst = arith.constant 0.000000e+00 : f32
    %5 = vector.broadcast %cst : f32 to vector<256x128xf32>
    %6 = vector.extract_strided_slice %4 {offsets = [0, 0, 0], sizes = [16, 16, 4], strides = [1, 1, 1]} : vector<18x18x4xbf16> to vector<16x16x4xbf16>
    %7 = vector.shape_cast %6 : vector<16x16x4xbf16> to vector<256x4xbf16>
    %c0_4 = arith.constant 0 : index
    %c0_5 = arith.constant 0 : index
    %c0_6 = arith.constant 0 : index
    %8 = vector.load %arg3[%c0_4, %c0_5, %c0_6] : memref<9x4x128xbf16, #tpu.memory_space<vmem>>, vector<1x4x128xbf16>
    %9 = vector.shape_cast %8 : vector<1x4x128xbf16> to vector<4x128xbf16>
    %cst_7 = arith.constant dense<0.000000e+00> : vector<256x128xf32>
    %10 = tpu.matmul %7, %9, %cst_7 {dimension_numbers = #tpu.dot_dimension_numbers<[1], [0], [0], [1], [0, 0, 1, 1], [], []>} : vector<256x4xbf16>, vector<4x128xbf16>, vector<256x128xf32> -> vector<256x128xf32>
    %11 = arith.addf %5, %10 : vector<256x128xf32>
    %12 = vector.extract_strided_slice %4 {offsets = [0, 1, 0], sizes = [16, 16, 4], strides = [1, 1, 1]} : vector<18x18x4xbf16> to vector<16x16x4xbf16>
    %13 = vector.shape_cast %12 : vector<16x16x4xbf16> to vector<256x4xbf16>
    %c1 = arith.constant 1 : index
    %c0_8 = arith.constant 0 : index
    %c0_9 = arith.constant 0 : index
    %14 = vector.load %arg3[%c1, %c0_8, %c0_9] : memref<9x4x128xbf16, #tpu.memory_space<vmem>>, vector<1x4x128xbf16>
    %15 = vector.shape_cast %14 : vector<1x4x128xbf16> to vector<4x128xbf16>
    %cst_10 = arith.constant dense<0.000000e+00> : vector<256x128xf32>
    %16 = tpu.matmul %13, %15, %cst_10 {dimension_numbers = #tpu.dot_dimension_numbers<[1], [0], [0], [1], [0, 0, 1, 1], [], []>} : vector<256x4xbf16>, vector<4x128xbf16>, vector<256x128xf32> -> vector<256x128xf32>
    %17 = arith.addf %11, %16 : vector<256x128xf32>
    %18 = vector.extract_strided_slice %4 {offsets = [0, 2, 0], sizes = [16, 16, 4], strides = [1, 1, 1]} : vector<18x18x4xbf16> to vector<16x16x4xbf16>
    %19 = vector.shape_cast %18 : vector<16x16x4xbf16> to vector<256x4xbf16>
    %c2 = arith.constant 2 : index
    %c0_11 = arith.constant 0 : index
    %c0_12 = arith.constant 0 : index
    %20 = vector.load %arg3[%c2, %c0_11, %c0_12] : memref<9x4x128xbf16, #tpu.memory_space<vmem>>, vector<1x4x128xbf16>
    %21 = vector.shape_cast %20 : vector<1x4x128xbf16> to vector<4x128xbf16>
    %cst_13 = arith.constant dense<0.000000e+00> : vector<256x128xf32>
    %22 = tpu.matmul %19, %21, %cst_13 {dimension_numbers = #tpu.dot_dimension_numbers<[1], [0], [0], [1], [0, 0, 1, 1], [], []>} : vector<256x4xbf16>, vector<4x128xbf16>, vector<256x128xf32> -> vector<256x128xf32>
    %23 = arith.addf %17, %22 : vector<256x128xf32>
    %24 = vector.extract_strided_slice %4 {offsets = [1, 0, 0], sizes = [16, 16, 4], strides = [1, 1, 1]} : vector<18x18x4xbf16> to vector<16x16x4xbf16>
    %25 = vector.shape_cast %24 : vector<16x16x4xbf16> to vector<256x4xbf16>
    %c3 = arith.constant 3 : index
    %c0_14 = arith.constant 0 : index
    %c0_15 = arith.constant 0 : index
    %26 = vector.load %arg3[%c3, %c0_14, %c0_15] : memref<9x4x128xbf16, #tpu.memory_space<vmem>>, vector<1x4x128xbf16>
    %27 = vector.shape_cast %26 : vector<1x4x128xbf16> to vector<4x128xbf16>
    %cst_16 = arith.constant dense<0.000000e+00> : vector<256x128xf32>
    %28 = tpu.matmul %25, %27, %cst_16 {dimension_numbers = #tpu.dot_dimension_numbers<[1], [0], [0], [1], [0, 0, 1, 1], [], []>} : vector<256x4xbf16>, vector<4x128xbf16>, vector<256x128xf32> -> vector<256x128xf32>
    %29 = arith.addf %23, %28 : vector<256x128xf32>
    %30 = vector.extract_strided_slice %4 {offsets = [1, 1, 0], sizes = [16, 16, 4], strides = [1, 1, 1]} : vector<18x18x4xbf16> to vector<16x16x4xbf16>
    %31 = vector.shape_cast %30 : vector<16x16x4xbf16> to vector<256x4xbf16>
    %c4 = arith.constant 4 : index
    %c0_17 = arith.constant 0 : index
    %c0_18 = arith.constant 0 : index
    %32 = vector.load %arg3[%c4, %c0_17, %c0_18] : memref<9x4x128xbf16, #tpu.memory_space<vmem>>, vector<1x4x128xbf16>
    %33 = vector.shape_cast %32 : vector<1x4x128xbf16> to vector<4x128xbf16>
    %cst_19 = arith.constant dense<0.000000e+00> : vector<256x128xf32>
    %34 = tpu.matmul %31, %33, %cst_19 {dimension_numbers = #tpu.dot_dimension_numbers<[1], [0], [0], [1], [0, 0, 1, 1], [], []>} : vector<256x4xbf16>, vector<4x128xbf16>, vector<256x128xf32> -> vector<256x128xf32>
    %35 = arith.addf %29, %34 : vector<256x128xf32>
    %36 = vector.extract_strided_slice %4 {offsets = [1, 2, 0], sizes = [16, 16, 4], strides = [1, 1, 1]} : vector<18x18x4xbf16> to vector<16x16x4xbf16>
    %37 = vector.shape_cast %36 : vector<16x16x4xbf16> to vector<256x4xbf16>
    %c5 = arith.constant 5 : index
    %c0_20 = arith.constant 0 : index
    %c0_21 = arith.constant 0 : index
    %38 = vector.load %arg3[%c5, %c0_20, %c0_21] : memref<9x4x128xbf16, #tpu.memory_space<vmem>>, vector<1x4x128xbf16>
    %39 = vector.shape_cast %38 : vector<1x4x128xbf16> to vector<4x128xbf16>
    %cst_22 = arith.constant dense<0.000000e+00> : vector<256x128xf32>
    %40 = tpu.matmul %37, %39, %cst_22 {dimension_numbers = #tpu.dot_dimension_numbers<[1], [0], [0], [1], [0, 0, 1, 1], [], []>} : vector<256x4xbf16>, vector<4x128xbf16>, vector<256x128xf32> -> vector<256x128xf32>
    %41 = arith.addf %35, %40 : vector<256x128xf32>
    %42 = vector.extract_strided_slice %4 {offsets = [2, 0, 0], sizes = [16, 16, 4], strides = [1, 1, 1]} : vector<18x18x4xbf16> to vector<16x16x4xbf16>
    %43 = vector.shape_cast %42 : vector<16x16x4xbf16> to vector<256x4xbf16>
    %c6 = arith.constant 6 : index
    %c0_23 = arith.constant 0 : index
    %c0_24 = arith.constant 0 : index
    %44 = vector.load %arg3[%c6, %c0_23, %c0_24] : memref<9x4x128xbf16, #tpu.memory_space<vmem>>, vector<1x4x128xbf16>
    %45 = vector.shape_cast %44 : vector<1x4x128xbf16> to vector<4x128xbf16>
    %cst_25 = arith.constant dense<0.000000e+00> : vector<256x128xf32>
    %46 = tpu.matmul %43, %45, %cst_25 {dimension_numbers = #tpu.dot_dimension_numbers<[1], [0], [0], [1], [0, 0, 1, 1], [], []>} : vector<256x4xbf16>, vector<4x128xbf16>, vector<256x128xf32> -> vector<256x128xf32>
    %47 = arith.addf %41, %46 : vector<256x128xf32>
    %48 = vector.extract_strided_slice %4 {offsets = [2, 1, 0], sizes = [16, 16, 4], strides = [1, 1, 1]} : vector<18x18x4xbf16> to vector<16x16x4xbf16>
    %49 = vector.shape_cast %48 : vector<16x16x4xbf16> to vector<256x4xbf16>
    %c7 = arith.constant 7 : index
    %c0_26 = arith.constant 0 : index
    %c0_27 = arith.constant 0 : index
    %50 = vector.load %arg3[%c7, %c0_26, %c0_27] : memref<9x4x128xbf16, #tpu.memory_space<vmem>>, vector<1x4x128xbf16>
    %51 = vector.shape_cast %50 : vector<1x4x128xbf16> to vector<4x128xbf16>
    %cst_28 = arith.constant dense<0.000000e+00> : vector<256x128xf32>
    %52 = tpu.matmul %49, %51, %cst_28 {dimension_numbers = #tpu.dot_dimension_numbers<[1], [0], [0], [1], [0, 0, 1, 1], [], []>} : vector<256x4xbf16>, vector<4x128xbf16>, vector<256x128xf32> -> vector<256x128xf32>
    %53 = arith.addf %47, %52 : vector<256x128xf32>
    %54 = vector.extract_strided_slice %4 {offsets = [2, 2, 0], sizes = [16, 16, 4], strides = [1, 1, 1]} : vector<18x18x4xbf16> to vector<16x16x4xbf16>
    %55 = vector.shape_cast %54 : vector<16x16x4xbf16> to vector<256x4xbf16>
    %c8 = arith.constant 8 : index
    %c0_29 = arith.constant 0 : index
    %c0_30 = arith.constant 0 : index
    %56 = vector.load %arg3[%c8, %c0_29, %c0_30] : memref<9x4x128xbf16, #tpu.memory_space<vmem>>, vector<1x4x128xbf16>
    %57 = vector.shape_cast %56 : vector<1x4x128xbf16> to vector<4x128xbf16>
    %cst_31 = arith.constant dense<0.000000e+00> : vector<256x128xf32>
    %58 = tpu.matmul %55, %57, %cst_31 {dimension_numbers = #tpu.dot_dimension_numbers<[1], [0], [0], [1], [0, 0, 1, 1], [], []>} : vector<256x4xbf16>, vector<4x128xbf16>, vector<256x128xf32> -> vector<256x128xf32>
    %59 = arith.addf %53, %58 : vector<256x128xf32>
    %c0_32 = arith.constant 0 : index
    %c0_33 = arith.constant 0 : index
    %60 = vector.load %arg4[%c0_32, %c0_33] : memref<1x128xf32, #tpu.memory_space<vmem>>, vector<1x128xf32>
    %61 = vector.broadcast %60 : vector<1x128xf32> to vector<256x128xf32>
    %62 = arith.addf %59, %61 : vector<256x128xf32>
    %cst_34 = arith.constant 0.000000e+00 : f32
    %63 = vector.broadcast %cst_34 : f32 to vector<256x128xf32>
    %64 = arith.maximumf %62, %63 : vector<256x128xf32>
    %c0_35 = arith.constant 0 : index
    %c0_36 = arith.constant 0 : index
    %65 = vector.load %arg6[%c0_35, %c0_36] : memref<8x128xf32, #tpu.memory_space<vmem>>, vector<8x128xf32>
    %66 = vector.shape_cast %64 : vector<256x128xf32> to vector<32x8x128xf32>
    %cst_37 = arith.constant dense<0.000000e+00> : vector<8x128xf32>
    %67 = vector.multi_reduction <add>, %66, %cst_37 [0] : vector<32x8x128xf32> to vector<8x128xf32>
    %68 = arith.addf %65, %67 : vector<8x128xf32>
    %c0_38 = arith.constant 0 : index
    %c0_39 = arith.constant 0 : index
    %69 = vector.load %arg6[%c0_38, %c0_39] : memref<8x128xf32, #tpu.memory_space<vmem>>, vector<8x128xf32>
    tpu.vector_store %arg6[%c0_38, %c0_39], %68 {strides = array<i32>} : memref<8x128xf32, #tpu.memory_space<vmem>>, vector<8x128xf32>,
    %c0_i32_40 = arith.constant 0 : i32
    %70 = arith.cmpi eq, %arg1, %c0_i32_40 : i32
    %71 = arith.extui %70 : i1 to i32
    %c0_i32_41 = arith.constant 0 : i32
    %72 = arith.cmpi ne, %71, %c0_i32_41 : i32
    scf.if %72 {
      %c0_42 = arith.constant 0 : index
      %c0_43 = arith.constant 0 : index
      %73 = vector.load %arg6[%c0_42, %c0_43] : memref<8x128xf32, #tpu.memory_space<vmem>>, vector<8x128xf32>
      %cst_44 = arith.constant dense<0.000000e+00> : vector<128xf32>
      %74 = vector.multi_reduction <add>, %73, %cst_44 [0] : vector<8x128xf32> to vector<128xf32>
      %75 = vector.shape_cast %74 : vector<128xf32> to vector<1x128xf32>
      %cst_45 = arith.constant 3.906250e-03 : f32
      %76 = vector.broadcast %cst_45 : f32 to vector<1x128xf32>
      %77 = arith.mulf %75, %76 : vector<1x128xf32>
      %78 = vector.shape_cast %77 : vector<1x128xf32> to vector<1x1x128xf32>
      %79 = arith.truncf %78 : vector<1x1x128xf32> to vector<1x1x128xbf16>
      %c0_46 = arith.constant 0 : index
      %c0_47 = arith.constant 0 : index
      %c0_48 = arith.constant 0 : index
      %80 = vector.load %arg5[%c0_46, %c0_47, %c0_48] : memref<1x1x128xbf16, #tpu.memory_space<vmem>>, vector<1x1x128xbf16>
      tpu.vector_store %arg5[%c0_46, %c0_47, %c0_48], %79 {strides = array<i32>} : memref<1x1x128xbf16, #tpu.memory_space<vmem>>, vector<1x1x128xbf16>,
    } else {
    }
    return
  }
  func.func @transform_0(%arg0: i32, %arg1: i32) -> (i32, i32, i32, i32) {
    %c1_i32 = arith.constant 1 : i32
    %0 = arith.muli %arg0, %c1_i32 : i32
    %1 = arith.addi %0, %arg1 : i32
    %c0_i32 = arith.constant 0 : i32
    %c0_i32_0 = arith.constant 0 : i32
    %c0_i32_1 = arith.constant 0 : i32
    %c0_i32_2 = arith.constant 0 : i32
    return %1, %c0_i32, %c0_i32_0, %c0_i32_1 : i32, i32, i32, i32
  }
  func.func @transform_1(%arg0: i32, %arg1: i32) -> (i32, i32, i32) {
    %c0_i32 = arith.constant 0 : i32
    %c0_i32_0 = arith.constant 0 : i32
    %c0_i32_1 = arith.constant 0 : i32
    %c0_i32_2 = arith.constant 0 : i32
    return %c0_i32, %c0_i32_0, %c0_i32_1 : i32, i32, i32
  }
  func.func @transform_2(%arg0: i32, %arg1: i32) -> (i32, i32) {
    %c0_i32 = arith.constant 0 : i32
    %c0_i32_0 = arith.constant 0 : i32
    %c0_i32_1 = arith.constant 0 : i32
    return %c0_i32, %c0_i32_0 : i32, i32
  }
  func.func @transform_3(%arg0: i32, %arg1: i32) -> (i32, i32, i32) {
    %c0_i32 = arith.constant 0 : i32
    %c0_i32_0 = arith.constant 0 : i32
    %c0_i32_1 = arith.constant 0 : i32
    return %arg0, %c0_i32, %c0_i32_0 : i32, i32, i32
  }
}

module attributes {stable_mosaic.version = 11 : i64} {
  func.func @_fc_arcface_kernel(%arg0: i32, %arg1: memref<2x1x128xbf16, #tpu.memory_space<vmem>>, %arg2: memref<128x128xbf16, #tpu.memory_space<vmem>>, %arg3: memref<1x128xf32, #tpu.memory_space<vmem>>, %arg4: memref<2x1xi32, #tpu.memory_space<vmem>>, %arg5: memref<128x128xbf16, #tpu.memory_space<vmem>>, %arg6: memref<2x128xf32, #tpu.memory_space<vmem>>, %arg7: memref<2x128xbf16, #tpu.memory_space<vmem>>) attributes {dimension_semantics = [#tpu.dimension_semantics<arbitrary>], iteration_bounds = array<i64: 1>, scalar_prefetch = 0 : i64, scratch_operands = 1 : i64, tpu.core_type = #tpu.core_type<tc>, window_params = [{pipeline_mode = #tpu.pipeline_mode<synchronous>, transform_indices = @transform_0, window_bounds = array<i64: 2, 1, 128>}, {pipeline_mode = #tpu.pipeline_mode<synchronous>, transform_indices = @transform_1, window_bounds = array<i64: 128, 128>}, {pipeline_mode = #tpu.pipeline_mode<synchronous>, transform_indices = @transform_2, window_bounds = array<i64: 1, 128>}, {pipeline_mode = #tpu.pipeline_mode<synchronous>, transform_indices = @transform_3, window_bounds = array<i64: 2, 1>}, {transform_indices = @transform_4, window_bounds = array<i64: 128, 128>}, {transform_indices = @transform_5, window_bounds = array<i64: 2, 128>}]} {
    %c0_i32 = arith.constant 0 : i32
    %0 = arith.cmpi eq, %arg0, %c0_i32 : i32
    %1 = arith.extui %0 : i1 to i32
    %c0_i32_0 = arith.constant 0 : i32
    %2 = arith.cmpi ne, %1, %c0_i32_0 : i32
    scf.if %2 {
      %c0_17 = arith.constant 0 : index
      %c0_18 = arith.constant 0 : index
      %c0_19 = arith.constant 0 : index
      %41 = vector.load %arg1[%c0_17, %c0_18, %c0_19] : memref<2x1x128xbf16, #tpu.memory_space<vmem>>, vector<2x1x128xbf16>
      %42 = vector.shape_cast %41 : vector<2x1x128xbf16> to vector<2x128xbf16>
      %c0_20 = arith.constant 0 : index
      %c0_21 = arith.constant 0 : index
      %43 = vector.load %arg2[%c0_20, %c0_21] : memref<128x128xbf16, #tpu.memory_space<vmem>>, vector<128x128xbf16>
      %cst_22 = arith.constant dense<0.000000e+00> : vector<2x128xf32>
      %44 = tpu.matmul %42, %43, %cst_22 {dimension_numbers = #tpu.dot_dimension_numbers<[1], [0], [0], [1], [0, 0, 1, 1], [], []>} : vector<2x128xbf16>, vector<128x128xbf16>, vector<2x128xf32> -> vector<2x128xf32>
      %c0_23 = arith.constant 0 : index
      %c0_24 = arith.constant 0 : index
      %45 = vector.load %arg3[%c0_23, %c0_24] : memref<1x128xf32, #tpu.memory_space<vmem>>, vector<1x128xf32>
      %46 = vector.broadcast %45 : vector<1x128xf32> to vector<2x128xf32>
      %47 = arith.addf %44, %46 : vector<2x128xf32>
      %48 = arith.mulf %47, %47 : vector<2x128xf32>
      %cst_25 = arith.constant dense<0.000000e+00> : vector<2xf32>
      %49 = vector.multi_reduction <add>, %48, %cst_25 [1] : vector<2x128xf32> to vector<2xf32>
      %50 = vector.shape_cast %49 : vector<2xf32> to vector<2x1xf32>
      %cst_26 = arith.constant 1.000000e-24 : f32
      %51 = vector.broadcast %cst_26 : f32 to vector<2x1xf32>
      %52 = arith.maximumf %50, %51 : vector<2x1xf32>
      %53 = math.rsqrt %52 : vector<2x1xf32>
      %54 = vector.broadcast %53 : vector<2x1xf32> to vector<2x128xf32>
      %55 = arith.mulf %47, %54 : vector<2x128xf32>
      %56 = arith.truncf %55 : vector<2x128xf32> to vector<2x128xbf16>
      %c0_27 = arith.constant 0 : index
      %c0_28 = arith.constant 0 : index
      %57 = vector.load %arg7[%c0_27, %c0_28] : memref<2x128xbf16, #tpu.memory_space<vmem>>, vector<2x128xbf16>
      tpu.vector_store %arg7[%c0_27, %c0_28], %56 {strides = array<i32>} : memref<2x128xbf16, #tpu.memory_space<vmem>>, vector<2x128xbf16>,
    } else {
    }
    %c0 = arith.constant 0 : index
    %c0_1 = arith.constant 0 : index
    %3 = vector.load %arg7[%c0, %c0_1] : memref<2x128xbf16, #tpu.memory_space<vmem>>, vector<2x128xbf16>
    %c0_2 = arith.constant 0 : index
    %c0_3 = arith.constant 0 : index
    %4 = vector.load %arg5[%c0_2, %c0_3] : memref<128x128xbf16, #tpu.memory_space<vmem>>, vector<128x128xbf16>
    %cst = arith.constant dense<0.000000e+00> : vector<2x128xf32>
    %5 = tpu.matmul %3, %4, %cst {dimension_numbers = #tpu.dot_dimension_numbers<[1], [0], [0], [1], [0, 0, 1, 1], [], []>} : vector<2x128xbf16>, vector<128x128xbf16>, vector<2x128xf32> -> vector<2x128xf32>
    %6 = arith.mulf %5, %5 : vector<2x128xf32>
    %cst_4 = arith.constant 1.000000e+00 : f32
    %7 = vector.broadcast %cst_4 : f32 to vector<2x128xf32>
    %8 = arith.subf %7, %6 : vector<2x128xf32>
    %cst_5 = arith.constant 0.000000e+00 : f32
    %cst_6 = arith.constant 1.000000e+00 : f32
    %9 = vector.broadcast %cst_5 : f32 to vector<2x128xf32>
    %10 = arith.maximumf %9, %8 : vector<2x128xf32>
    %11 = vector.broadcast %cst_6 : f32 to vector<2x128xf32>
    %12 = arith.minimumf %11, %10 : vector<2x128xf32>
    %13 = math.sqrt %12 : vector<2x128xf32>
    %cst_7 = arith.constant 0.980066597 : f32
    %14 = vector.broadcast %cst_7 : f32 to vector<2x128xf32>
    %15 = arith.mulf %5, %14 : vector<2x128xf32>
    %cst_8 = arith.constant 0.198669329 : f32
    %16 = vector.broadcast %cst_8 : f32 to vector<2x128xf32>
    %17 = arith.mulf %13, %16 : vector<2x128xf32>
    %18 = arith.subf %15, %17 : vector<2x128xf32>
    %cst_9 = arith.constant -0.980066597 : f32
    %19 = vector.broadcast %cst_9 : f32 to vector<2x128xf32>
    %20 = arith.cmpf ogt, %5, %19 : vector<2x128xf32>
    %cst_10 = arith.constant 0.0397338644 : f32
    %21 = vector.broadcast %cst_10 : f32 to vector<2x128xf32>
    %22 = arith.subf %5, %21 : vector<2x128xf32>
    %23 = arith.select %20, %18, %22 : vector<2x128xi1>, vector<2x128xf32>
    %c128_i32 = arith.constant 128 : i32
    %24 = arith.muli %arg0, %c128_i32 : i32
    %25 = tpu.iota {dimensions = array<i32: 1>} : vector<2x128xi32>
    %26 = vector.broadcast %24 : i32 to vector<2x128xi32>
    %27 = arith.addi %26, %25 : vector<2x128xi32>
    %c0_11 = arith.constant 0 : index
    %c0_12 = arith.constant 0 : index
    %28 = vector.load %arg4[%c0_11, %c0_12] : memref<2x1xi32, #tpu.memory_space<vmem>>, vector<2x1xi32>
    %29 = vector.broadcast %28 : vector<2x1xi32> to vector<2x128xi32>
    %30 = arith.cmpi eq, %27, %29 : vector<2x128xi32>
    %31 = arith.extui %30 : vector<2x128xi1> to vector<2x128xi32>
    %32 = arith.sitofp %31 : vector<2x128xi32> to vector<2x128xf32>
    %33 = arith.mulf %32, %23 : vector<2x128xf32>
    %cst_13 = arith.constant 1.000000e+00 : f32
    %34 = vector.broadcast %cst_13 : f32 to vector<2x128xf32>
    %35 = arith.subf %34, %32 : vector<2x128xf32>
    %36 = arith.mulf %35, %5 : vector<2x128xf32>
    %37 = arith.addf %33, %36 : vector<2x128xf32>
    %cst_14 = arith.constant 3.000000e+01 : f32
    %38 = vector.broadcast %cst_14 : f32 to vector<2x128xf32>
    %39 = arith.mulf %37, %38 : vector<2x128xf32>
    %c0_15 = arith.constant 0 : index
    %c0_16 = arith.constant 0 : index
    %40 = vector.load %arg6[%c0_15, %c0_16] : memref<2x128xf32, #tpu.memory_space<vmem>>, vector<2x128xf32>
    tpu.vector_store %arg6[%c0_15, %c0_16], %39 {strides = array<i32>} : memref<2x128xf32, #tpu.memory_space<vmem>>, vector<2x128xf32>,
    return
  }
  func.func @transform_0(%arg0: i32) -> (i32, i32, i32) {
    %c0_i32 = arith.constant 0 : i32
    %c0_i32_0 = arith.constant 0 : i32
    %c0_i32_1 = arith.constant 0 : i32
    %c0_i32_2 = arith.constant 0 : i32
    return %c0_i32, %c0_i32_0, %c0_i32_1 : i32, i32, i32
  }
  func.func @transform_1(%arg0: i32) -> (i32, i32) {
    %c0_i32 = arith.constant 0 : i32
    %c0_i32_0 = arith.constant 0 : i32
    %c0_i32_1 = arith.constant 0 : i32
    return %c0_i32, %c0_i32_0 : i32, i32
  }
  func.func @transform_2(%arg0: i32) -> (i32, i32) {
    %c0_i32 = arith.constant 0 : i32
    %c0_i32_0 = arith.constant 0 : i32
    %c0_i32_1 = arith.constant 0 : i32
    return %c0_i32, %c0_i32_0 : i32, i32
  }
  func.func @transform_3(%arg0: i32) -> (i32, i32) {
    %c0_i32 = arith.constant 0 : i32
    %c0_i32_0 = arith.constant 0 : i32
    %c0_i32_1 = arith.constant 0 : i32
    return %c0_i32, %c0_i32_0 : i32, i32
  }
  func.func @transform_4(%arg0: i32) -> (i32, i32) {
    %c0_i32 = arith.constant 0 : i32
    %c0_i32_0 = arith.constant 0 : i32
    return %c0_i32, %arg0 : i32, i32
  }
  func.func @transform_5(%arg0: i32) -> (i32, i32) {
    %c0_i32 = arith.constant 0 : i32
    %c0_i32_0 = arith.constant 0 : i32
    return %c0_i32, %arg0 : i32, i32
  }
}

</mosaic_0001>

<llo_original>
// kernel: cv_classifier_forward.3
$region0: #{cv_classifier_forward.3}
  #allocation0 [shape = 'u32[]', space=smem, size = 0x4, offset = 0x4, fixed_abs, tag = 'smem constant byte address 0x4 - core index']
  #allocation1 [shape = 'u32[144,128]{1,0:T(1,128)}', space=vmem, size = 0x12000, scoped, tag = 'internal scratch']
  #allocation2 [shape = 'bf16[2,128]{1,0:T(2,128)(2,1)}', space=vmem, size = 0x200, scoped, tag = 'scratch operand']
  %s0 = inlined_call_operand.vmem [shape: bf16[2,1,128], index: 0, kind: input, shape index: {}]
  %s1 = inlined_call_operand.vmem [shape: bf16[128,128], index: 1, kind: input, shape index: {}]
  %s2 = inlined_call_operand.vmem [shape: f32[1,128], index: 2, kind: input, shape index: {}]
  %s3 = inlined_call_operand.vmem [shape: s32[2,1], index: 3, kind: input, shape index: {}]
  %s4 = inlined_call_operand.vmem [shape: bf16[128,128], index: 4, kind: input, shape index: {}]
  %s5 = inlined_call_operand.hbm [shape: f32[2,128], index: 5, kind: output, shape index: {}]
  %s6 = sld [smem:[#allocation0]]
  $region34: #{cv_classifier_forward.3} parent=0
    _
  %s8 = ssub.s32 1, %s6
  %s9 = scalar_select 0, %s8, %s6
  $region1: #{cv_classifier_forward.3} parent=0
    #allocation3 [shape = 'u8[1024]{0}', space=vmem, size = 0x400, scoped, tag = 'output window, operand 0, single buffered']
    #allocation4 [shape = 's32[1]{0}', space=sflag, size = 0x4, scoped, tag = 'scoped memory for cv_classifier_forward.3']
    %10 = vsyncpa [#allocation4], 0
    // Predicated region
    $region2: #{cv_classifier_forward.3} parent=1 // pred_check
      _
    $region3: #{cv_classifier_forward.3} parent=1 // pred_check_branch
      %12 = sbr.rel (0) target = $region5
    $region4: #{cv_classifier_forward.3} parent=1 // pred_region
      _
    $region5: #{cv_classifier_forward.3} parent=1 // pred_fallthru
      _
    // Predicated region
    $region6: #{cv_classifier_forward.3} parent=1 // pred_check
      _
    $region7: #{cv_classifier_forward.3} parent=1 // pred_check_branch
      %14 = sbr.rel (0) target = $region9
    $region8: #{cv_classifier_forward.3} parent=1 // pred_region
      _
    $region9: #{cv_classifier_forward.3} parent=1 // pred_fallthru
      _
    // Predicated region
    $region10: #{cv_classifier_forward.3} parent=1 // pred_check
      _
    $region11: #{cv_classifier_forward.3} parent=1 // pred_check_branch
      %16 = sbr.rel (0) target = $region13
    $region12: #{cv_classifier_forward.3} parent=1 // pred_region
      _
    $region13: #{cv_classifier_forward.3} parent=1 // pred_fallthru
      _
    // Predicated region
    $region14: #{cv_classifier_forward.3} parent=1 // pred_check
      _
    $region15: #{cv_classifier_forward.3} parent=1 // pred_check_branch
      %18 = sbr.rel (0) target = $region17
    $region16: #{cv_classifier_forward.3} parent=1 // pred_region
      _
    $region17: #{cv_classifier_forward.3} parent=1 // pred_fallthru
      _
    // Predicated region
    $region18: #{cv_classifier_forward.3} parent=1 // pred_check
      _
    $region19: #{cv_classifier_forward.3} parent=1 // pred_check_branch
      %20 = sbr.rel (0) target = $region21
    $region20: #{cv_classifier_forward.3} parent=1 // pred_region
      _
    $region21: #{cv_classifier_forward.3} parent=1 // pred_fallthru
      _
    %p22 = scmp.eq.s32.totalorder 0, 0
    // Predicated region
    $region22: #{cv_classifier_forward.3} parent=1 // pred_check
      %p23 = pneg %p22
    $region23: #{cv_classifier_forward.3} parent=1 // pred_check_branch
      %25 = sbr.rel (%p23) target = $region25
    $region24: #{cv_classifier_forward.3} parent=1 // pred_region
      %v26 = vld [vmem:[%s0] sm:$0x1]
      %v27 = vld [vmem:[%s0 + $0x1] sm:$0x1]
      %v28 = vld [vmem:[%s1] sm:$0xf]
      %v29 = vld [vmem:[%s1 + $0x4] sm:$0xf]
      %v30 = vld [vmem:[%s1 + $0x8] sm:$0xf]
      %v31 = vld [vmem:[%s1 + $0xc] sm:$0xf]
      %v32 = vld [vmem:[%s1 + $0x10] sm:$0xf]
      %v33 = vld [vmem:[%s1 + $0x14] sm:$0xf]
      %v34 = vld [vmem:[%s1 + $0x18] sm:$0xf]
      %v35 = vld [vmem:[%s1 + $0x1c] sm:$0xf]
      %v36 = vld [vmem:[%s1 + $0x20] sm:$0xf]
      %v37 = vld [vmem:[%s1 + $0x24] sm:$0xf]
      %v38 = vld [vmem:[%s1 + $0x28] sm:$0xf]
      %v39 = vld [vmem:[%s1 + $0x2c] sm:$0xf]
      %v40 = vld [vmem:[%s1 + $0x30] sm:$0xf]
      %v41 = vld [vmem:[%s1 + $0x34] sm:$0xf]
      %v42 = vld [vmem:[%s1 + $0x38] sm:$0xf]
      %v43 = vld [vmem:[%s1 + $0x3c] sm:$0xf]
      %v44 = vld [vmem:[%s2] sm:$0x1]
      %v46 = vlaneseq
      %v47 = vshrl.u32 %v46, 7
      %v48 = vsub.s32 0, %v47
      %v49 = vrot.slane %v44, %v48
      %v54 = vunpack.c.l.s4 1966171168
      %v55 = vunpack.c.0.s8 %v54
      %v56 = vlaneseq
      %v57 = vshrl.u32 %v56, 7
      %v58 = vsub.s32 %v55, %v57
      %v59 = vrot.slane %v26, %v58
      %v61 = vunpack.c.l.s4 1966171168
      %v62 = vunpack.c.0.s8 %v61
      %v63 = vlaneseq
      %v64 = vshrl.u32 %v63, 7
      %v65 = vsub.s32 %v62, %v64
      %v66 = vrot.slane %v59, %v65
      %v68 = vunpack.c.l.s4 1966171168
      %v69 = vunpack.c.0.s8 %v68
      %v70 = vlaneseq
      %v71 = vshrl.u32 %v70, 7
      %v72 = vsub.s32 %v69, %v71
      %v73 = vrot.slane %v27, %v72
      %v75 = vunpack.c.l.s4 1966171168
      %v76 = vunpack.c.0.s8 %v75
      %v77 = vlaneseq
      %v78 = vshrl.u32 %v77, 7
      %v79 = vsub.s32 %v76, %v78
      %v80 = vrot.slane %v73, %v79
      %v81 = vunpack.c.l.b16 %v66
      %v82 = vunpack.c.l.b16 %v80
      %v83 = vrot.slane %v82, 7
      %vm84 = vcmask 1041409
      %v85 = vsel %vm84, %v83, %v81
      %v86 = vpack.c.b16 %v85, %v85
      %v104 = vunpack.c.l.b16 %v28
      %v105 = vunpack.c.l.b16 %v29
      %v106 = vunpack.c.l.b16 %v30
      %v107 = vunpack.c.l.b16 %v31
      %v108 = vunpack.c.l.b16 %v32
      %v109 = vunpack.c.l.b16 %v33
      %v110 = vunpack.c.l.b16 %v34
      %v111 = vunpack.c.l.b16 %v35
      %v112 = vunpack.c.l.b16 %v36
      %v113 = vunpack.c.l.b16 %v37
      %v114 = vunpack.c.l.b16 %v38
      %v115 = vunpack.c.l.b16 %v39
      %v116 = vunpack.c.l.b16 %v40
      %v117 = vunpack.c.l.b16 %v41
      %v118 = vunpack.c.l.b16 %v42
      %v119 = vunpack.c.l.b16 %v43
      %v120 = vpack.c.b16 %v105, %v104
      %v121 = vpack.c.b16 %v107, %v106
      %v122 = vpack.c.b16 %v109, %v108
      %v123 = vpack.c.b16 %v111, %v110
      %v124 = vpack.c.b16 %v113, %v112
      %v125 = vpack.c.b16 %v115, %v114
      %v126 = vpack.c.b16 %v117, %v116
      %v127 = vpack.c.b16 %v119, %v118
      %136 = vmatprep.subr.bf16.mxu0 0
      %137 = vmatpush1.bf16.msra.mxu0 %v127
      %138 = vmatprep.subr.bf16.mxu0 0
      %139 = vmatpush1.bf16.msra.mxu0 %v126
      %140 = vmatprep.subr.bf16.mxu0 0
      %141 = vmatpush1.bf16.msra.mxu0 %v125
      %142 = vmatprep.subr.bf16.mxu0 0
      %143 = vmatpush1.bf16.msra.mxu0 %v124
      %144 = vmatprep.subr.bf16.mxu0 0
      %145 = vmatpush1.bf16.msra.mxu0 %v123
      %146 = vmatprep.subr.bf16.mxu0 0
      %147 = vmatpush1.bf16.msra.mxu0 %v122
      %148 = vmatprep.subr.bf16.mxu0 0
      %149 = vmatpush1.bf16.msra.mxu0 %v121
      %150 = vmatprep.subr.bf16.mxu0 0
      %151 = vmatpush1.bf16.msra.mxu0 %v120
      %152 = vmatprep.subr.bf16.mxu0 0
      %153 = vmatpush2.bf16.msra.mxu0 0
      %154 = vmatprep.subr.bf16.mxu0 0
      %155 = vmatpush2.bf16.msra.mxu0 0
      %156 = vmatprep.subr.bf16.mxu0 0
      %157 = vmatpush2.bf16.msra.mxu0 0
      %158 = vmatprep.subr.bf16.mxu0 0
      %159 = vmatpush2.bf16.msra.mxu0 0
      %160 = vmatprep.subr.bf16.mxu0 0
      %161 = vmatpush2.bf16.msra.mxu0 0
      %162 = vmatprep.subr.bf16.mxu0 0
      %163 = vmatpush2.bf16.msra.mxu0 0
      %164 = vmatprep.subr.bf16.mxu0 0
      %165 = vmatpush2.bf16.msra.mxu0 0
      %166 = vmatprep.subr.bf16.mxu0 0
      %167 = vmatpush2.bf16.msra.mxu0 0
      %168 = vmatprep.mubr.bf16.mxu0 0
      %169 = vmatmul.mubr.bf16.gmra.mxu0 %v86
      %v170 = vpop.f32.mrf.mxu0
      %v171 = vadd.f32 %v49, %v170
      %v172 = vpop.f32.mrf.mxu0
      %v173 = vpop.f32.mrf.mxu0
      %v174 = vpop.f32.mrf.mxu0
      %175 = vdwg.mxu0
      %v176 = vmul.f32 %v171, %v171
      %vm177 = vcmask 1041408
      %v178 = vsel %vm177, %v176, 0.0
      %179 = vadd.xlane.f32.xlu0 %v178
      %v180 = vpop.xlane.xlu0 %179
      %v181 = vmax.f32 %v180, 1e-24
      %v182 = vrsqrt.pop %v181
      %v183 = vmul.f32 %v171, %v182
      %v184 = vpack.c.bf16 %v183, %v183
      %185 = vst [vmem:[#allocation2] sm:$0x1] %v184
    $region25: #{cv_classifier_forward.3} parent=1 // pred_fallthru
      _
    %v186 = vld [vmem:[#allocation2] sm:$0x1]
    %v187 = vld [vmem:[%s4] sm:$0xf]
    %v188 = vld [vmem:[%s4 + $0x4] sm:$0xf]
    %v189 = vld [vmem:[%s4 + $0x8] sm:$0xf]
    %v190 = vld [vmem:[%s4 + $0xc] sm:$0xf]
    %v191 = vld [vmem:[%s4 + $0x10] sm:$0xf]
    %v192 = vld [vmem:[%s4 + $0x14] sm:$0xf]
    %v193 = vld [vmem:[%s4 + $0x18] sm:$0xf]
    %v194 = vld [vmem:[%s4 + $0x1c] sm:$0xf]
    %v195 = vld [vmem:[%s4 + $0x20] sm:$0xf]
    %v196 = vld [vmem:[%s4 + $0x24] sm:$0xf]
    %v197 = vld [vmem:[%s4 + $0x28] sm:$0xf]
    %v198 = vld [vmem:[%s4 + $0x2c] sm:$0xf]
    %v199 = vld [vmem:[%s4 + $0x30] sm:$0xf]
    %v200 = vld [vmem:[%s4 + $0x34] sm:$0xf]
    %v201 = vld [vmem:[%s4 + $0x38] sm:$0xf]
    %v202 = vld [vmem:[%s4 + $0x3c] sm:$0xf]
    %v219 = vunpack.c.l.b16 %v187
    %v220 = vunpack.c.l.b16 %v188
    %v221 = vunpack.c.l.b16 %v189
    %v222 = vunpack.c.l.b16 %v190
    %v223 = vunpack.c.l.b16 %v191
    %v224 = vunpack.c.l.b16 %v192
    %v225 = vunpack.c.l.b16 %v193
    %v226 = vunpack.c.l.b16 %v194
    %v227 = vunpack.c.l.b16 %v195
    %v228 = vunpack.c.l.b16 %v196
    %v229 = vunpack.c.l.b16 %v197
    %v230 = vunpack.c.l.b16 %v198
    %v231 = vunpack.c.l.b16 %v199
    %v232 = vunpack.c.l.b16 %v200
    %v233 = vunpack.c.l.b16 %v201
    %v234 = vunpack.c.l.b16 %v202
    %v235 = vpack.c.b16 %v220, %v219
    %v236 = vpack.c.b16 %v222, %v221
    %v237 = vpack.c.b16 %v224, %v223
    %v238 = vpack.c.b16 %v226, %v225
    %v239 = vpack.c.b16 %v228, %v227
    %v240 = vpack.c.b16 %v230, %v229
    %v241 = vpack.c.b16 %v232, %v231
    %v242 = vpack.c.b16 %v234, %v233
    %251 = vmatprep.subr.bf16.mxu0 0
    %252 = vmatpush1.bf16.msra.mxu0 %v242
    %253 = vmatprep.subr.bf16.mxu0 0
    %254 = vmatpush1.bf16.msra.mxu0 %v241
    %255 = vmatprep.subr.bf16.mxu0 0
    %256 = vmatpush1.bf16.msra.mxu0 %v240
    %257 = vmatprep.subr.bf16.mxu0 0
    %258 = vmatpush1.bf16.msra.mxu0 %v239
    %259 = vmatprep.subr.bf16.mxu0 0
    %260 = vmatpush1.bf16.msra.mxu0 %v238
    %261 = vmatprep.subr.bf16.mxu0 0
    %262 = vmatpush1.bf16.msra.mxu0 %v237
    %263 = vmatprep.subr.bf16.mxu0 0
    %264 = vmatpush1.bf16.msra.mxu0 %v236
    %265 = vmatprep.subr.bf16.mxu0 0
    %266 = vmatpush1.bf16.msra.mxu0 %v235
    %267 = vmatprep.subr.bf16.mxu0 0
    %268 = vmatpush2.bf16.msra.mxu0 0
    %269 = vmatprep.subr.bf16.mxu0 0
    %270 = vmatpush2.bf16.msra.mxu0 0
    %271 = vmatprep.subr.bf16.mxu0 0
    %272 = vmatpush2.bf16.msra.mxu0 0
    %273 = vmatprep.subr.bf16.mxu0 0
    %274 = vmatpush2.bf16.msra.mxu0 0
    %275 = vmatprep.subr.bf16.mxu0 0
    %276 = vmatpush2.bf16.msra.mxu0 0
    %277 = vmatprep.subr.bf16.mxu0 0
    %278 = vmatpush2.bf16.msra.mxu0 0
    %279 = vmatprep.subr.bf16.mxu0 0
    %280 = vmatpush2.bf16.msra.mxu0 0
    %281 = vmatprep.subr.bf16.mxu0 0
    %282 = vmatpush2.bf16.msra.mxu0 0
    %283 = vmatprep.mubr.bf16.mxu0 0
    %284 = vmatmul.mubr.bf16.gmra.mxu0 %v186
    %v285 = vpop.f32.mrf.mxu0
    %v286 = vadd.f32 0.0, %v285
    %v287 = vpop.f32.mrf.mxu0
    %v288 = vpop.f32.mrf.mxu0
    %v289 = vpop.f32.mrf.mxu0
    %290 = vdwg.mxu0
    %v291 = vmul.f32 %v286, %v286
    %v292 = vsub.f32 1.0, %v291
    %v293 = vmax.f32 %v292, 0.0
    %v294 = vmin.f32 %v293, 1.0
    %v295 = vrsqrt.pop %v294
    %v296 = vmul.f32 %v294, %v295
    %vm297 = vcmp.eq.f32.partialorder %v294, inf
    %v298 = vsel %vm297, %v294, %v296
    %vm299 = vcmp.eq.f32.partialorder %v294, 0.0
    %v300 = vand.u32 %v294, 2147483648
    %v301 = vsel %vm299, %v300, %v298
    %v302 = vmul.f32 %v286, 0.9800666
    %v303 = vmul.f32 %v301, 0.19866933
    %v304 = vsub.f32 %v302, %v303
    %vm305 = vcmp.gt.f32.partialorder %v286, -0.9800666
    %v306 = vsub.f32 %v286, 0.039733864
    %v307 = vsel %vm305, %v304, %v306
    %s308 = smul.u32 0, 128
    %v309 = vlaneseq
    %v310 = vand.u32 %v309, 127
    %v311 = vstv %s308
    %v312 = vadd.s32 %v311, %v310
    %v313 = vld [vmem:[%s3] sm:$0x3]
    %314 = vset.pattern.permute.xlu0 0
    %315 = vperm.xlu0 %314, %v313
    %v316 = vpop.permute.xlu0 %315
    %vm317 = vcmp.eq.s32.totalorder %v312, %v316
    %v318 = vsel %vm317, 1, 0
    %v319 = vcvt.s32.f32 %v318
    %v320 = vmul.f32 %v319, %v307
    %v321 = vsub.f32 1.0, %v319
    %v322 = vmul.f32 %v321, %v286
    %v323 = vadd.f32 %v320, %v322
    %v324 = vmul.f32 %v323, 30.0
    %325 = vst [vmem:[#allocation3] sm:$0x3] %v324
    // Predicated region
    $region26: #{cv_classifier_forward.3} parent=1 // pred_check
      _
    $region27: #{cv_classifier_forward.3} parent=1 // pred_check_branch
      %327 = sbr.rel (0) target = $region29
    $region28: #{cv_classifier_forward.3} parent=1 // pred_region
      %s329 = ssub.s32 32, 32
      %330 = vsyncadd [#allocation4], %s329
      %s332 = sshll.u32 [#allocation3], 4
      %s333 = int_to_ptr.vmem [resolvable:$true] %s332
      %335 = dma.vmem_to_hbm [thread:$0]  %s333, 32, %s5, [#allocation4]
    $region29: #{cv_classifier_forward.3} parent=1 // pred_fallthru
      _
    // Predicated region
    $region30: #{cv_classifier_forward.3} parent=1 // pred_check
      _
    $region31: #{cv_classifier_forward.3} parent=1 // pred_check_branch
      %337 = sbr.rel (0) target = $region33
    $region32: #{cv_classifier_forward.3} parent=1 // pred_region
      %338 = dma.done [#allocation4], 32
    $region33: #{cv_classifier_forward.3} parent=1 // pred_fallthru
      _
    %339 = vsyncpa [#allocation4], 1

// kernel: cv_classifier_forward.2
$region0: #{cv_classifier_forward.2}
  #allocation0 [shape = 'u32[]', space=smem, size = 0x4, offset = 0x4, fixed_abs, tag = 'smem constant byte address 0x4 - core index']
  #allocation1 [shape = 'u32[144,128]{1,0:T(1,128)}', space=vmem, size = 0x12000, scoped, tag = 'internal scratch']
  #allocation2 [shape = 'f32[8,128]{1,0:T(8,128)}', space=vmem, size = 0x1000, scoped, tag = 'scratch operand']
  %s0 = inlined_call_operand.vmem [shape: bf16[2,18,18,4], index: 0, kind: input, shape index: {}]
  %s1 = inlined_call_operand.vmem [shape: bf16[9,4,128], index: 1, kind: input, shape index: {}]
  %s2 = inlined_call_operand.vmem [shape: f32[1,128], index: 2, kind: input, shape index: {}]
  %s3 = inlined_call_operand.vmem [shape: bf16[2,1,128], index: 3, kind: output, shape index: {}]
  %s4 = sld [smem:[#allocation0]]
  $region53: #{cv_classifier_forward.2} parent=0
    _
  %s6 = ssub.s32 1, %s4
  %s7 = scalar_select 0, %s6, %s4
  loop: start=0, step=1, limit=4
  $region2: #{cv_classifier_forward.2} parent=0 // loop_pre_header
    _
  $region3: #{cv_classifier_forward.2} parent=0 // loop_header
    %s9 = sphi 0, %s13
    %p10 = scmp.ge.s32.totalorder %s9, 4
    %s16 = sphi 0, %s28
    %s17 = sphi 0, %s24
    %s18 = sphi 0, %s16
    %s19 = sphi 0, %s17
    %s20 = sphi 0, %s18
    %s21 = sphi 0, %s19
    %s33 = sphi 0, %s35
    %s36 = sphi 0, %s33
    %s37 = sphi 0, %s36
    %s53 = sphi 0, %s37
    %s57 = sphi 0, %s57
    %s59 = sphi 0, %s57
    %s60 = sphi 0, %s59
    %s74 = sphi 0, %s60
    %s78 = sphi 0, %s78
    %s80 = sphi 0, %s78
    %s81 = sphi 0, %s80
    %s95 = sphi 0, %s81
    %s101 = sphi 0, %s103
    %s104 = sphi 0, %s101
    %s105 = sphi 0, %s104
    %s121 = sphi 0, %s105
  $region4: #{cv_classifier_forward.2} parent=0 // loop_header_branch
    %12 = sbr.rel (%p10) target = $region8
  $region5: #{cv_classifier_forward.2} parent=0 // loop_body
    %s14 = ssub.s32 %s9, 1
    %s15 = ssub.s32 %s9, 2
    %s22 = sadd.s32 1, %s17
    %p23 = scmp.ge.s32.totalorder %s22, 1
    %s24 = scalar_select %p23, 0, %s22
    %s25 = sadd.s32 1, %s16
    %s26 = scalar_select %p23, %s25, %s16
    %p27 = scmp.ge.s32.totalorder %s26, 2
    %s28 = scalar_select %p27, 0, %s26
    %s29 = sadd.s32 %s16, %s17
    %s30 = sadd.s32 %s28, %s24
    %s31 = ssub.s32 %s29, %s30
    %p32 = scmp.eq.s32.totalorder %s31, 0
    %s34 = sadd.s32 %s33, 1
    %s35 = scalar_select %p32, %s33, %s34
    %p38 = pneg %p32
    %p39 = scmp.eq.s32.totalorder %s9, 1
    %p40 = por %p38, %p39
    %p41 = scmp.ne.s32.totalorder %s33, %s36
    %p42 = scmp.eq.s32.totalorder %s9, 0
    %p43 = por %p41, %p42
    %p44 = scmp.ne.s32.totalorder %s33, %s36
    %p45 = scmp.eq.s32.totalorder %s14, 1
    %p46 = por %p44, %p45
    %p47 = scmp.ne.s32.totalorder %s36, %s37
    %p48 = scmp.eq.s32.totalorder %s14, 0
    %p49 = por %p47, %p48
    %p50 = scmp.ne.s32.totalorder %s36, %s37
    %p51 = scmp.eq.s32.totalorder %s15, 1
    %p52 = por %p50, %p51
    %p54 = scmp.ne.s32.totalorder %s37, %s53
    %p55 = scmp.eq.s32.totalorder %s15, 0
    %p56 = por %p54, %p55
    %s58 = sadd.s32 %s57, 1
    %p61 = scmp.eq.s32.totalorder %s9, 1
    %p62 = scmp.ne.s32.totalorder %s57, %s59
    %p63 = scmp.eq.s32.totalorder %s9, 0
    %p64 = por %p62, %p63
    %p65 = scmp.ne.s32.totalorder %s57, %s59
    %p66 = scmp.eq.s32.totalorder %s14, 1
    %p67 = por %p65, %p66
    %p68 = scmp.ne.s32.totalorder %s59, %s60
    %p69 = scmp.eq.s32.totalorder %s14, 0
    %p70 = por %p68, %p69
    %p71 = scmp.ne.s32.totalorder %s59, %s60
    %p72 = scmp.eq.s32.totalorder %s15, 1
    %p73 = por %p71, %p72
    %p75 = scmp.ne.s32.totalorder %s60, %s74
    %p76 = scmp.eq.s32.totalorder %s15, 0
    %p77 = por %p75, %p76
    %s79 = sadd.s32 %s78, 1
    %p82 = scmp.eq.s32.totalorder %s9, 1
    %p83 = scmp.ne.s32.totalorder %s78, %s80
    %p84 = scmp.eq.s32.totalorder %s9, 0
    %p85 = por %p83, %p84
    %p86 = scmp.ne.s32.totalorder %s78, %s80
    %p87 = scmp.eq.s32.totalorder %s14, 1
    %p88 = por %p86, %p87
    %p89 = scmp.ne.s32.totalorder %s80, %s81
    %p90 = scmp.eq.s32.totalorder %s14, 0
    %p91 = por %p89, %p90
    %p92 = scmp.ne.s32.totalorder %s80, %s81
    %p93 = scmp.eq.s32.totalorder %s15, 1
    %p94 = por %p92, %p93
    %p96 = scmp.ne.s32.totalorder %s81, %s95
    %p97 = scmp.eq.s32.totalorder %s15, 0
    %p98 = por %p96, %p97
    %s99 = ssub.s32 %s16, %s28
    %p100 = scmp.eq.s32.totalorder %s99, 0
    %s102 = sadd.s32 %s101, 1
    %s103 = scalar_select %p100, %s101, %s102
    %p106 = pneg %p100
    %p107 = scmp.eq.s32.totalorder %s9, 1
    %p108 = por %p106, %p107
    %p109 = scmp.ne.s32.totalorder %s101, %s104
    %p110 = scmp.eq.s32.totalorder %s9, 0
    %p111 = por %p109, %p110
    %p112 = scmp.ne.s32.totalorder %s101, %s104
    %p113 = scmp.eq.s32.totalorder %s14, 1
    %p114 = por %p112, %p113
    %p115 = scmp.ne.s32.totalorder %s104, %s105
    %p116 = scmp.eq.s32.totalorder %s14, 0
    %p117 = por %p115, %p116
    %p118 = scmp.ne.s32.totalorder %s104, %s105
    %p119 = scmp.eq.s32.totalorder %s15, 1
    %p120 = por %p118, %p119
    %p122 = scmp.ne.s32.totalorder %s105, %s121
    %p123 = scmp.eq.s32.totalorder %s15, 0
    %p124 = por %p122, %p123
    %p125 = scmp.le.s32.totalorder 1, %s9
    %p126 = scmp.lt.s32.totalorder %s9, 3
    %p127 = pnand %p125, %p126
    %p128 = pneg %p127
    // Predicated region
    $region9: #{cv_classifier_forward.2} parent=5 // pred_check
      _
    $region10: #{cv_classifier_forward.2} parent=5 // pred_check_branch
      %130 = sbr.rel (%p127) target = $region12
    $region11: #{cv_classifier_forward.2} parent=5 // pred_region
      %s131 = ssub.s32 %s9, 1
      // Predicated region
      $region13: #{cv_classifier_forward.2} parent=11 // pred_check
        %p132 = pneg %p70
      $region14: #{cv_classifier_forward.2} parent=11 // pred_check_branch
        %134 = sbr.rel (%p132) target = $region16
      $region15: #{cv_classifier_forward.2} parent=11 // pred_region
        _
      $region16: #{cv_classifier_forward.2} parent=11 // pred_fallthru
        _
      // Predicated region
      $region17: #{cv_classifier_forward.2} parent=11 // pred_check
        %p135 = pneg %p91
      $region18: #{cv_classifier_forward.2} parent=11 // pred_check_branch
        %137 = sbr.rel (%p135) target = $region20
      $region19: #{cv_classifier_forward.2} parent=11 // pred_region
        _
      $region20: #{cv_classifier_forward.2} parent=11 // pred_fallthru
        _
    $region12: #{cv_classifier_forward.2} parent=5 // pred_fallthru
      _
    %p138 = scmp.lt.s32.totalorder %s9, 2
    // Predicated region
    $region21: #{cv_classifier_forward.2} parent=5 // pred_check
      %p139 = pneg %p138
    $region22: #{cv_classifier_forward.2} parent=5 // pred_check_branch
      %141 = sbr.rel (%p139) target = $region24
    $region23: #{cv_classifier_forward.2} parent=5 // pred_region
      // Predicated region
      $region25: #{cv_classifier_forward.2} parent=23 // pred_check
        %p142 = pneg %p43
      $region26: #{cv_classifier_forward.2} parent=23 // pred_check_branch
        %144 = sbr.rel (%p142) target = $region28
      $region27: #{cv_classifier_forward.2} parent=23 // pred_region
        %s145 = sadd.s32 %s16, %s17
        %p146 = scmp.lt.s32.totalorder %s145, 1
        %s147 = scalar_select %p146, %s145, 1
        %s148 = smul.addr %s147, 54
        %s149 = smul.addr %s148, 4
        %s150 = scalar_lea.vmem %s0, %s149
        %s151 = sadd.s32 %s16, %s17
      $region28: #{cv_classifier_forward.2} parent=23 // pred_fallthru
        _
    $region24: #{cv_classifier_forward.2} parent=5 // pred_fallthru
      _
    %p152 = scmp.le.s32.totalorder 1, %s9
    %p153 = scmp.lt.s32.totalorder %s9, 3
    %p154 = pnand %p152, %p153
    %p155 = pneg %p154
    // Predicated region
    $region29: #{cv_classifier_forward.2} parent=5 // pred_check
      _
    $region30: #{cv_classifier_forward.2} parent=5 // pred_check_branch
      %157 = sbr.rel (%p154) target = $region32
    $region31: #{cv_classifier_forward.2} parent=5 // pred_region
      %s158 = ssub.s32 %s9, 1
      %s159 = sadd.s32 %s18, %s19
      %p160 = scmp.lt.s32.totalorder %s159, 1
      %s161 = scalar_select %p160, %s159, 1
      %s162 = smul.addr %s161, 54
      %s163 = smul.addr %s162, 4
      %s164 = scalar_lea.vmem %s0, %s163
      %p165 = pneg %p49
      %p166 = pneg %p46
      %p167 = pneg %p70
      %p168 = pneg %p67
      %p169 = pneg %p91
      %p170 = pneg %p88
      %p171 = pneg %p117
      %p172 = pneg %p114
      %p173 = scmp.lt.s32.totalorder %s18, 1
      %s174 = scalar_select %p173, %s18, 1
      %s175 = scalar_lea.vmem %s3, %s174
      %s176 = sadd.s32 %s18, %s19
      %p177 = scmp.lt.s32.totalorder %s176, 1
      %s178 = scalar_select %p177, %s176, 1
      %s179 = smul.addr %s178, 54
      %s180 = smul.addr %s179, 4
      %s181 = scalar_lea.vmem %s0, %s180
      %s182 = sadd.s32 %s18, %s19
      %p183 = scmp.lt.s32.totalorder %s18, 1
      %s184 = scalar_select %p183, %s18, 1
      %s185 = scalar_lea.vmem %s3, %s184
      %p187 = scmp.eq.s32.totalorder %s19, 0
      // Predicated region
      $region33: #{cv_classifier_forward.2} parent=31 // pred_check
        %p188 = pneg %p187
      $region34: #{cv_classifier_forward.2} parent=31 // pred_check_branch
        %190 = sbr.rel (%p188) target = $region36
      $region35: #{cv_classifier_forward.2} parent=31 // pred_region
        %191 = vst [vmem:[#allocation2] sm:$0xff] 0.0
      $region36: #{cv_classifier_forward.2} parent=31 // pred_fallthru
        _
      %v192 = vld [vmem:[%s181] sm:$0xf]
      %v193 = vld [vmem:[%s181 + $0x4] sm:$0xf]
      %v194 = vld [vmem:[%s181 + $0x8] sm:$0x1]
      %v195 = vld [vmem:[%s181 + $0xc] sm:$0xf]
      %v196 = vld [vmem:[%s181 + $0x10] sm:$0xf]
      %v197 = vld [vmem:[%s181 + $0x14] sm:$0x1]
      %v198 = vld [vmem:[%s181 + $0x18] sm:$0xf]
      %v199 = vld [vmem:[%s181 + $0x1c] sm:$0xf]
      %v200 = vld [vmem:[%s181 + $0x20] sm:$0x1]
      %v201 = vld [vmem:[%s181 + $0x24] sm:$0xf]
      %v202 = vld [vmem:[%s181 + $0x28] sm:$0xf]
      %v203 = vld [vmem:[%s181 + $0x2c] sm:$0x1]
      %v204 = vld [vmem:[%s181 + $0x30] sm:$0xf]
      %v205 = vld [vmem:[%s181 + $0x34] sm:$0xf]
      %v206 = vld [vmem:[%s181 + $0x38] sm:$0x1]
      %v207 = vld [vmem:[%s181 + $0x3c] sm:$0xf]
      %v208 = vld [vmem:[%s181 + $0x40] sm:$0xf]
      %v209 = vld [vmem:[%s181 + $0x44] sm:$0x1]
      %v210 = vld [vmem:[%s181 + $0x48] sm:$0xf]
      %v211 = vld [vmem:[%s181 + $0x4c] sm:$0xf]
      %v212 = vld [vmem:[%s181 + $0x50] sm:$0x1]
      %v213 = vld [vmem:[%s181 + $0x54] sm:$0xf]
      %v214 = vld [vmem:[%s181 + $0x58] sm:$0xf]
      %v215 = vld [vmem:[%s181 + $0x5c] sm:$0x1]
      %v216 = vld [vmem:[%s181 + $0x60] sm:$0xf]
      %v217 = vld [vmem:[%s181 + $0x64] sm:$0xf]
      %v218 = vld [vmem:[%s181 + $0x68] sm:$0x1]
      %v219 = vld [vmem:[%s181 + $0x6c] sm:$0xf]
      %v220 = vld [vmem:[%s181 + $0x70] sm:$0xf]
      %v221 = vld [vmem:[%s181 + $0x74] sm:$0x1]
      %v222 = vld [vmem:[%s181 + $0x78] sm:$0xf]
      %v223 = vld [vmem:[%s181 + $0x7c] sm:$0xf]
      %v224 = vld [vmem:[%s181 + $0x80] sm:$0x1]
      %v225 = vld [vmem:[%s181 + $0x84] sm:$0xf]
      %v226 = vld [vmem:[%s181 + $0x88] sm:$0xf]
      %v227 = vld [vmem:[%s181 + $0x8c] sm:$0x1]
      %v228 = vld [vmem:[%s181 + $0x90] sm:$0xf]
      %v229 = vld [vmem:[%s181 + $0x94] sm:$0xf]
      %v230 = vld [vmem:[%s181 + $0x98] sm:$0x1]
      %v231 = vld [vmem:[%s181 + $0x9c] sm:$0xf]
      %v232 = vld [vmem:[%s181 + $0xa0] sm:$0xf]
      %v233 = vld [vmem:[%s181 + $0xa4] sm:$0x1]
      %v234 = vld [vmem:[%s181 + $0xa8] sm:$0xf]
      %v235 = vld [vmem:[%s181 + $0xac] sm:$0xf]
      %v236 = vld [vmem:[%s181 + $0xb0] sm:$0x1]
      %v237 = vld [vmem:[%s181 + $0xb4] sm:$0xf]
      %v238 = vld [vmem:[%s181 + $0xb8] sm:$0xf]
      %v239 = vld [vmem:[%s181 + $0xbc] sm:$0x1]
      %v240 = vld [vmem:[%s181 + $0xc0] sm:$0xf]
      %v241 = vld [vmem:[%s181 + $0xc4] sm:$0xf]
      %v242 = vld [vmem:[%s181 + $0xc8] sm:$0x1]
      %v243 = vld [vmem:[%s181 + $0xcc] sm:$0xf]
      %v244 = vld [vmem:[%s181 + $0xd0] sm:$0xf]
      %v245 = vld [vmem:[%s181 + $0xd4] sm:$0x1]
      %v246 = vld [vmem:[%s1] sm:$0x3]
      %vm247 = vsmask.f32 3328
      %vm248 = vsmask.f32 7440
      %vm249 = vmor %vm247, %vm248
      %v251 = vshrl.u32 %v192, 16
      %v253 = vrot.slane %v251, 4
      %v254 = vshll.u32 %v192, 16
      %v256 = vrot.slane %v254, 5
      %v257 = vor.u32 %v253, %v256
      %v258 = vrot.slane %v257, 4
      %v260 = vshll.u32 %v193, 16
      %v262 = vrot.slane %v260, 5
      %v263 = vsel %vm249, %v258, %v262
      %v264 = vshrl.u32 %v193, 16
      %v266 = vrot.slane %v264, 4
      %v267 = vor.u32 %v266, %v262
      %v268 = vrot.slane %v267, 4
      %v270 = vshll.u32 %v194, 16
      %v272 = vrot.slane %v270, 5
      %v273 = vsel %vm249, %v268, %v272
      %v275 = vshrl.u32 %v195, 16
      %v277 = vrot.slane %v275, 4
      %v278 = vshll.u32 %v195, 16
      %v280 = vrot.slane %v278, 5
      %v281 = vor.u32 %v277, %v280
      %v282 = vrot.slane %v281, 4
      %v284 = vshll.u32 %v196, 16
      %v286 = vrot.slane %v284, 5
      %v287 = vsel %vm249, %v282, %v286
      %v288 = vshrl.u32 %v196, 16
      %v290 = vrot.slane %v288, 4
      %v291 = vor.u32 %v290, %v286
      %v292 = vrot.slane %v291, 4
      %v294 = vshll.u32 %v197, 16
      %v296 = vrot.slane %v294, 5
      %v297 = vsel %vm249, %v292, %v296
      %v299 = vshrl.u32 %v198, 16
      %v301 = vrot.slane %v299, 4
      %v302 = vshll.u32 %v198, 16
      %v304 = vrot.slane %v302, 5
      %v305 = vor.u32 %v301, %v304
      %v306 = vrot.slane %v305, 4
      %v308 = vshll.u32 %v199, 16
      %v310 = vrot.slane %v308, 5
      %v311 = vsel %vm249, %v306, %v310
      %v312 = vshrl.u32 %v199, 16
      %v314 = vrot.slane %v312, 4
      %v315 = vor.u32 %v314, %v310
      %v316 = vrot.slane %v315, 4
      %v318 = vshll.u32 %v200, 16
      %v320 = vrot.slane %v318, 5
      %v321 = vsel %vm249, %v316, %v320
      %v323 = vshrl.u32 %v201, 16
      %v325 = vrot.slane %v323, 4
      %v326 = vshll.u32 %v201, 16
      %v328 = vrot.slane %v326, 5
      %v329 = vor.u32 %v325, %v328
      %v330 = vrot.slane %v329, 4
      %v332 = vshll.u32 %v202, 16
      %v334 = vrot.slane %v332, 5
      %v335 = vsel %vm249, %v330, %v334
      %v336 = vshrl.u32 %v202, 16
      %v338 = vrot.slane %v336, 4
      %v339 = vor.u32 %v338, %v334
      %v340 = vrot.slane %v339, 4
      %v342 = vshll.u32 %v203, 16
      %v344 = vrot.slane %v342, 5
      %v345 = vsel %vm249, %v340, %v344
      %v347 = vshrl.u32 %v204, 16
      %v349 = vrot.slane %v347, 4
      %v350 = vshll.u32 %v204, 16
      %v352 = vrot.slane %v350, 5
      %v353 = vor.u32 %v349, %v352
      %v354 = vrot.slane %v353, 4
      %v356 = vshll.u32 %v205, 16
      %v358 = vrot.slane %v356, 5
      %v359 = vsel %vm249, %v354, %v358
      %v360 = vshrl.u32 %v205, 16
      %v362 = vrot.slane %v360, 4
      %v363 = vor.u32 %v362, %v358
      %v364 = vrot.slane %v363, 4
      %v366 = vshll.u32 %v206, 16
      %v368 = vrot.slane %v366, 5
      %v369 = vsel %vm249, %v364, %v368
      %v371 = vshrl.u32 %v207, 16
      %v373 = vrot.slane %v371, 4
      %v374 = vshll.u32 %v207, 16
      %v376 = vrot.slane %v374, 5
      %v377 = vor.u32 %v373, %v376
      %v378 = vrot.slane %v377, 4
      %v380 = vshll.u32 %v208, 16
      %v382 = vrot.slane %v380, 5
      %v383 = vsel %vm249, %v378, %v382
      %v384 = vshrl.u32 %v208, 16
      %v386 = vrot.slane %v384, 4
      %v387 = vor.u32 %v386, %v382
      %v388 = vrot.slane %v387, 4
      %v390 = vshll.u32 %v209, 16
      %v392 = vrot.slane %v390, 5
      %v393 = vsel %vm249, %v388, %v392
      %v395 = vshrl.u32 %v210, 16
      %v397 = vrot.slane %v395, 4
      %v398 = vshll.u32 %v210, 16
      %v400 = vrot.slane %v398, 5
      %v401 = vor.u32 %v397, %v400
      %v402 = vrot.slane %v401, 4
      %v404 = vshll.u32 %v211, 16
      %v406 = vrot.slane %v404, 5
      %v407 = vsel %vm249, %v402, %v406
      %v408 = vshrl.u32 %v211, 16
      %v410 = vrot.slane %v408, 4
      %v411 = vor.u32 %v410, %v406
      %v412 = vrot.slane %v411, 4
      %v414 = vshll.u32 %v212, 16
      %v416 = vrot.slane %v414, 5
      %v417 = vsel %vm249, %v412, %v416
      %v419 = vshrl.u32 %v213, 16
      %v421 = vrot.slane %v419, 4
      %v422 = vshll.u32 %v213, 16
      %v424 = vrot.slane %v422, 5
      %v425 = vor.u32 %v421, %v424
      %v426 = vrot.slane %v425, 4
      %v428 = vshll.u32 %v214, 16
      %v430 = vrot.slane %v428, 5
      %v431 = vsel %vm249, %v426, %v430
      %v432 = vshrl.u32 %v214, 16
      %v434 = vrot.slane %v432, 4
      %v435 = vor.u32 %v434, %v430
      %v436 = vrot.slane %v435, 4
      %v438 = vshll.u32 %v215, 16
      %v440 = vrot.slane %v438, 5
      %v441 = vsel %vm249, %v436, %v440
      %v443 = vshrl.u32 %v216, 16
      %v445 = vrot.slane %v443, 4
      %v446 = vshll.u32 %v216, 16
      %v448 = vrot.slane %v446, 5
      %v449 = vor.u32 %v445, %v448
      %v450 = vrot.slane %v449, 4
      %v452 = vshll.u32 %v217, 16
      %v454 = vrot.slane %v452, 5
      %v455 = vsel %vm249, %v450, %v454
      %v456 = vshrl.u32 %v217, 16
      %v458 = vrot.slane %v456, 4
      %v459 = vor.u32 %v458, %v454
      %v460 = vrot.slane %v459, 4
      %v462 = vshll.u32 %v218, 16
      %v464 = vrot.slane %v462, 5
      %v465 = vsel %vm249, %v460, %v464
      %v467 = vshrl.u32 %v219, 16
      %v469 = vrot.slane %v467, 4
      %v470 = vshll.u32 %v219, 16
      %v472 = vrot.slane %v470, 5
      %v473 = vor.u32 %v469, %v472
      %v474 = vrot.slane %v473, 4
      %v476 = vshll.u32 %v220, 16
      %v478 = vrot.slane %v476, 5
      %v479 = vsel %vm249, %v474, %v478
      %v480 = vshrl.u32 %v220, 16
      %v482 = vrot.slane %v480, 4
      %v483 = vor.u32 %v482, %v478
      %v484 = vrot.slane %v483, 4
      %v486 = vshll.u32 %v221, 16
      %v488 = vrot.slane %v486, 5
      %v489 = vsel %vm249, %v484, %v488
      %v491 = vshrl.u32 %v222, 16
      %v493 = vrot.slane %v491, 4
      %v494 = vshll.u32 %v222, 16
      %v496 = vrot.slane %v494, 5
      %v497 = vor.u32 %v493, %v496
      %v498 = vrot.slane %v497, 4
      %v500 = vshll.u32 %v223, 16
      %v502 = vrot.slane %v500, 5
      %v503 = vsel %vm249, %v498, %v502
      %v504 = vshrl.u32 %v223, 16
      %v506 = vrot.slane %v504, 4
      %v507 = vor.u32 %v506, %v502
      %v508 = vrot.slane %v507, 4
      %v510 = vshll.u32 %v224, 16
      %v512 = vrot.slane %v510, 5
      %v513 = vsel %vm249, %v508, %v512
      %v515 = vshrl.u32 %v225, 16
      %v517 = vrot.slane %v515, 4
      %v518 = vshll.u32 %v225, 16
      %v520 = vrot.slane %v518, 5
      %v521 = vor.u32 %v517, %v520
      %v522 = vrot.slane %v521, 4
      %v524 = vshll.u32 %v226, 16
      %v526 = vrot.slane %v524, 5
      %v527 = vsel %vm249, %v522, %v526
      %v528 = vshrl.u32 %v226, 16
      %v530 = vrot.slane %v528, 4
      %v531 = vor.u32 %v530, %v526
      %v532 = vrot.slane %v531, 4
      %v534 = vshll.u32 %v227, 16
      %v536 = vrot.slane %v534, 5
      %v537 = vsel %vm249, %v532, %v536
      %v539 = vshrl.u32 %v228, 16
      %v541 = vrot.slane %v539, 4
      %v542 = vshll.u32 %v228, 16
      %v544 = vrot.slane %v542, 5
      %v545 = vor.u32 %v541, %v544
      %v546 = vrot.slane %v545, 4
      %v548 = vshll.u32 %v229, 16
      %v550 = vrot.slane %v548, 5
      %v551 = vsel %vm249, %v546, %v550
      %v552 = vshrl.u32 %v229, 16
      %v554 = vrot.slane %v552, 4
      %v555 = vor.u32 %v554, %v550
      %v556 = vrot.slane %v555, 4
      %v558 = vshll.u32 %v230, 16
      %v560 = vrot.slane %v558, 5
      %v561 = vsel %vm249, %v556, %v560
      %v563 = vshrl.u32 %v231, 16
      %v565 = vrot.slane %v563, 4
      %v566 = vshll.u32 %v231, 16
      %v568 = vrot.slane %v566, 5
      %v569 = vor.u32 %v565, %v568
      %v570 = vrot.slane %v569, 4
      %v572 = vshll.u32 %v232, 16
      %v574 = vrot.slane %v572, 5
      %v575 = vsel %vm249, %v570, %v574
      %v576 = vshrl.u32 %v232, 16
      %v578 = vrot.slane %v576, 4
      %v579 = vor.u32 %v578, %v574
      %v580 = vrot.slane %v579, 4
      %v582 = vshll.u32 %v233, 16
      %v584 = vrot.slane %v582, 5
      %v585 = vsel %vm249, %v580, %v584
      %v587 = vshrl.u32 %v234, 16
      %v589 = vrot.slane %v587, 4
      %v590 = vshll.u32 %v234, 16
      %v592 = vrot.slane %v590, 5
      %v593 = vor.u32 %v589, %v592
      %v594 = vrot.slane %v593, 4
      %v596 = vshll.u32 %v235, 16
      %v598 = vrot.slane %v596, 5
      %v599 = vsel %vm249, %v594, %v598
      %v600 = vshrl.u32 %v235, 16
      %v602 = vrot.slane %v600, 4
      %v603 = vor.u32 %v602, %v598
      %v604 = vrot.slane %v603, 4
      %v606 = vshll.u32 %v236, 16
      %v608 = vrot.slane %v606, 5
      %v609 = vsel %vm249, %v604, %v608
      %v611 = vshrl.u32 %v237, 16
      %v613 = vrot.slane %v611, 4
      %v614 = vshll.u32 %v237, 16
      %v616 = vrot.slane %v614, 5
      %v617 = vor.u32 %v613, %v616
      %v618 = vrot.slane %v617, 4
      %v620 = vshll.u32 %v238, 16
      %v622 = vrot.slane %v620, 5
      %v623 = vsel %vm249, %v618, %v622
      %v624 = vshrl.u32 %v238, 16
      %v626 = vrot.slane %v624, 4
      %v627 = vor.u32 %v626, %v622
      %v628 = vrot.slane %v627, 4
      %v630 = vshll.u32 %v239, 16
      %v632 = vrot.slane %v630, 5
      %v633 = vsel %vm249, %v628, %v632
      %s634 = scalar_lea.vmem %s1, 2
      %v635 = vld [vmem:[%s634] sm:$0x3]
      %v636 = vunpack.c.l.b16 %v263
      %v637 = vunpack.c.l.b16 %v273
      %v638 = vunpack.c.l.b16 %v287
      %v639 = vunpack.c.l.b16 %v297
      %v640 = vunpack.c.l.b16 %v311
      %v641 = vunpack.c.l.b16 %v321
      %v642 = vunpack.c.l.b16 %v335
      %v643 = vunpack.c.l.b16 %v345
      %v644 = vunpack.c.l.b16 %v359
      %v645 = vunpack.c.l.b16 %v369
      %v646 = vunpack.c.l.b16 %v383
      %v647 = vunpack.c.l.b16 %v393
      %v648 = vunpack.c.l.b16 %v407
      %v649 = vunpack.c.l.b16 %v417
      %v650 = vunpack.c.l.b16 %v431
      %v651 = vunpack.c.l.b16 %v441
      %v652 = vunpack.c.l.b16 %v455
      %v653 = vunpack.c.l.b16 %v465
      %v654 = vunpack.c.l.b16 %v479
      %v655 = vunpack.c.l.b16 %v489
      %v656 = vunpack.c.l.b16 %v503
      %v657 = vunpack.c.l.b16 %v513
      %v658 = vunpack.c.l.b16 %v527
      %v659 = vunpack.c.l.b16 %v537
      %v660 = vunpack.c.l.b16 %v551
      %v661 = vunpack.c.l.b16 %v561
      %v662 = vunpack.c.l.b16 %v575
      %v663 = vunpack.c.l.b16 %v585
      %v664 = vunpack.c.l.b16 %v599
      %v665 = vunpack.c.l.b16 %v609
      %v666 = vunpack.c.l.b16 %v623
      %v667 = vunpack.c.l.b16 %v633
      %v668 = vpack.c.b16 %v637, %v636
      %v669 = vpack.c.b16 %v639, %v638
      %v670 = vpack.c.b16 %v641, %v640
      %v671 = vpack.c.b16 %v643, %v642
      %v672 = vpack.c.b16 %v645, %v644
      %v673 = vpack.c.b16 %v647, %v646
      %v674 = vpack.c.b16 %v649, %v648
      %v675 = vpack.c.b16 %v651, %v650
      %v676 = vpack.c.b16 %v653, %v652
      %v677 = vpack.c.b16 %v655, %v654
      %v678 = vpack.c.b16 %v657, %v656
      %v679 = vpack.c.b16 %v659, %v658
      %v680 = vpack.c.b16 %v661, %v660
      %v681 = vpack.c.b16 %v663, %v662
      %v682 = vpack.c.b16 %v665, %v664
      %v683 = vpack.c.b16 %v667, %v666
      %vm684 = vcmask 31744
      %v686 = vsel %vm684, %v668, 0
      %v689 = vsel %vm684, %v669, 0
      %v692 = vsel %vm684, %v670, 0
      %v695 = vsel %vm684, %v671, 0
      %v698 = vsel %vm684, %v672, 0
      %v701 = vsel %vm684, %v673, 0
      %v704 = vsel %vm684, %v674, 0
      %v707 = vsel %vm684, %v675, 0
      %v710 = vsel %vm684, %v676, 0
      %v713 = vsel %vm684, %v677, 0
      %v716 = vsel %vm684, %v678, 0
      %v719 = vsel %vm684, %v679, 0
      %v722 = vsel %vm684, %v680, 0
      %v725 = vsel %vm684, %v681, 0
      %v728 = vsel %vm684, %v682, 0
      %v731 = vsel %vm684, %v683, 0
      %vm733 = vcmask 1041408
      %v735 = vsel %vm733, %v635, 0
      %737 = vmatprep.subr.bf16.mxu0 0
      %738 = vmatpush1.bf16.msra.mxu0 0
      %739 = vmatprep.subr.bf16.mxu0 0
      %740 = vmatpush1.bf16.msra.mxu0 0
      %741 = vmatprep.subr.bf16.mxu0 0
      %742 = vmatpush1.bf16.msra.mxu0 0
      %743 = vmatprep.subr.bf16.mxu0 0
      %744 = vmatpush1.bf16.msra.mxu0 0
      %745 = vmatprep.subr.bf16.mxu0 0
      %746 = vmatpush1.bf16.msra.mxu0 0
      %747 = vmatprep.subr.bf16.mxu0 0
      %748 = vmatpush1.bf16.msra.mxu0 0
      %749 = vmatprep.subr.bf16.mxu0 0
      %750 = vmatpush1.bf16.msra.mxu0 0
      %751 = vmatprep.subr.bf16.mxu0 0
      %752 = vmatpush1.bf16.msra.mxu0 %v735
      %753 = vmatprep.subr.bf16.mxu0 0
      %754 = vmatpush2.bf16.msra.mxu0 0
      %755 = vmatprep.subr.bf16.mxu0 0
      %756 = vmatpush2.bf16.msra.mxu0 0
      %757 = vmatprep.subr.bf16.mxu0 0
      %758 = vmatpush2.bf16.msra.mxu0 0
      %759 = vmatprep.subr.bf16.mxu0 0
      %760 = vmatpush2.bf16.msra.mxu0 0
      %761 = vmatprep.subr.bf16.mxu0 0
      %762 = vmatpush2.bf16.msra.mxu0 0
      %763 = vmatprep.subr.bf16.mxu0 0
      %764 = vmatpush2.bf16.msra.mxu0 0
      %765 = vmatprep.subr.bf16.mxu0 0
      %766 = vmatpush2.bf16.msra.mxu0 0
      %767 = vmatprep.subr.bf16.mxu0 0
      %768 = vmatpush2.bf16.msra.mxu0 0
      %769 = vmatprep.mubr.bf16.mxu0 0
      %770 = vmatmul.mubr.bf16.gmra.mxu0 %v686
      %v771 = vpop.f32.mrf.mxu0
      %v772 = vadd.f32 0.0, %v771
      %v773 = vpop.f32.mrf.mxu0
      %v774 = vpop.f32.mrf.mxu0
      %v775 = vadd.f32 0.0, %v774
      %v776 = vpop.f32.mrf.mxu0
      %777 = vmatprep.mubr.bf16.mxu0 0
      %778 = vmatmul.mubr.bf16.gmra.mxu0 %v689
      %v779 = vpop.f32.mrf.mxu0
      %v780 = vadd.f32 0.0, %v779
      %v781 = vpop.f32.mrf.mxu0
      %v782 = vpop.f32.mrf.mxu0
      %v783 = vadd.f32 0.0, %v782
      %v784 = vpop.f32.mrf.mxu0
      %785 = vmatprep.mubr.bf16.mxu0 0
      %786 = vmatmul.mubr.bf16.gmra.mxu0 %v692
      %v787 = vpop.f32.mrf.mxu0
      %v788 = vadd.f32 0.0, %v787
      %v789 = vpop.f32.mrf.mxu0
      %v790 = vpop.f32.mrf.mxu0
      %v791 = vadd.f32 0.0, %v790
      %v792 = vpop.f32.mrf.mxu0
      %793 = vmatprep.mubr.bf16.mxu0 0
      %794 = vmatmul.mubr.bf16.gmra.mxu0 %v695
      %v795 = vpop.f32.mrf.mxu0
      %v796 = vadd.f32 0.0, %v795
      %v797 = vpop.f32.mrf.mxu0
      %v798 = vpop.f32.mrf.mxu0
      %v799 = vadd.f32 0.0, %v798
      %v800 = vpop.f32.mrf.mxu0
      %801 = vmatprep.mubr.bf16.mxu0 0
      %802 = vmatmul.mubr.bf16.gmra.mxu0 %v698
      %v803 = vpop.f32.mrf.mxu0
      %v804 = vadd.f32 0.0, %v803
      %v805 = vpop.f32.mrf.mxu0
      %v806 = vpop.f32.mrf.mxu0
      %v807 = vadd.f32 0.0, %v806
      %v808 = vpop.f32.mrf.mxu0
      %809 = vmatprep.mubr.bf16.mxu0 0
      %810 = vmatmul.mubr.bf16.gmra.mxu0 %v701
      %v811 = vpop.f32.mrf.mxu0
      %v812 = vadd.f32 0.0, %v811
      %v813 = vpop.f32.mrf.mxu0
      %v814 = vpop.f32.mrf.mxu0
      %v815 = vadd.f32 0.0, %v814
      %v816 = vpop.f32.mrf.mxu0
      %817 = vmatprep.mubr.bf16.mxu0 0
      %818 = vmatmul.mubr.bf16.gmra.mxu0 %v704
      %v819 = vpop.f32.mrf.mxu0
      %v820 = vadd.f32 0.0, %v819
      %v821 = vpop.f32.mrf.mxu0
      %v822 = vpop.f32.mrf.mxu0
      %v823 = vadd.f32 0.0, %v822
      %v824 = vpop.f32.mrf.mxu0
      %825 = vmatprep.mubr.bf16.mxu0 0
      %826 = vmatmul.mubr.bf16.gmra.mxu0 %v707
      %v827 = vpop.f32.mrf.mxu0
      %v828 = vadd.f32 0.0, %v827
      %v829 = vpop.f32.mrf.mxu0
      %v830 = vpop.f32.mrf.mxu0
      %v831 = vadd.f32 0.0, %v830
      %v832 = vpop.f32.mrf.mxu0
      %833 = vmatprep.mubr.bf16.mxu0 0
      %834 = vmatmul.mubr.bf16.gmra.mxu0 %v710
      %v835 = vpop.f32.mrf.mxu0
      %v836 = vadd.f32 0.0, %v835
      %v837 = vpop.f32.mrf.mxu0
      %v838 = vpop.f32.mrf.mxu0
      %v839 = vadd.f32 0.0, %v838
      %v840 = vpop.f32.mrf.mxu0
      %841 = vmatprep.mubr.bf16.mxu0 0
      %842 = vmatmul.mubr.bf16.gmra.mxu0 %v713
      %v843 = vpop.f32.mrf.mxu0
      %v844 = vadd.f32 0.0, %v843
      %v845 = vpop.f32.mrf.mxu0
      %v846 = vpop.f32.mrf.mxu0
      %v847 = vadd.f32 0.0, %v846
      %v848 = vpop.f32.mrf.mxu0
      %849 = vmatprep.mubr.bf16.mxu0 0
      %850 = vmatmul.mubr.bf16.gmra.mxu0 %v716
      %v851 = vpop.f32.mrf.mxu0
      %v852 = vadd.f32 0.0, %v851
      %v853 = vpop.f32.mrf.mxu0
      %v854 = vpop.f32.mrf.mxu0
      %v855 = vadd.f32 0.0, %v854
      %v856 = vpop.f32.mrf.mxu0
      %857 = vmatprep.mubr.bf16.mxu0 0
      %858 = vmatmul.mubr.bf16.gmra.mxu0 %v719
      %v859 = vpop.f32.mrf.mxu0
      %v860 = vadd.f32 0.0, %v859
      %v861 = vpop.f32.mrf.mxu0
      %v862 = vpop.f32.mrf.mxu0
      %v863 = vadd.f32 0.0, %v862
      %v864 = vpop.f32.mrf.mxu0
      %865 = vmatprep.mubr.bf16.mxu0 0
      %866 = vmatmul.mubr.bf16.gmra.mxu0 %v722
      %v867 = vpop.f32.mrf.mxu0
      %v868 = vadd.f32 0.0, %v867
      %v869 = vpop.f32.mrf.mxu0
      %v870 = vpop.f32.mrf.mxu0
      %v871 = vadd.f32 0.0, %v870
      %v872 = vpop.f32.mrf.mxu0
      %873 = vmatprep.mubr.bf16.mxu0 0
      %874 = vmatmul.mubr.bf16.gmra.mxu0 %v725
      %v875 = vpop.f32.mrf.mxu0
      %v876 = vadd.f32 0.0, %v875
      %v877 = vpop.f32.mrf.mxu0
      %v878 = vpop.f32.mrf.mxu0
      %v879 = vadd.f32 0.0, %v878
      %v880 = vpop.f32.mrf.mxu0
      %881 = vmatprep.mubr.bf16.mxu0 0
      %882 = vmatmul.mubr.bf16.gmra.mxu0 %v728
      %v883 = vpop.f32.mrf.mxu0
      %v884 = vadd.f32 0.0, %v883
      %v885 = vpop.f32.mrf.mxu0
      %v886 = vpop.f32.mrf.mxu0
      %v887 = vadd.f32 0.0, %v886
      %v888 = vpop.f32.mrf.mxu0
      %889 = vmatprep.mubr.bf16.mxu0 0
      %890 = vmatmul.mubr.bf16.gmra.mxu0 %v731
      %v891 = vpop.f32.mrf.mxu0
      %v892 = vadd.f32 0.0, %v891
      %v893 = vpop.f32.mrf.mxu0
      %v894 = vpop.f32.mrf.mxu0
      %v895 = vadd.f32 0.0, %v894
      %v896 = vpop.f32.mrf.mxu0
      %897 = vdwg.mxu0
      %v930 = vunpack.c.l.b16 %v192
      %v931 = vunpack.c.l.b16 %v193
      %v932 = vunpack.c.l.b16 %v195
      %v933 = vunpack.c.l.b16 %v196
      %v934 = vunpack.c.l.b16 %v198
      %v935 = vunpack.c.l.b16 %v199
      %v936 = vunpack.c.l.b16 %v201
      %v937 = vunpack.c.l.b16 %v202
      %v938 = vunpack.c.l.b16 %v204
      %v939 = vunpack.c.l.b16 %v205
      %v940 = vunpack.c.l.b16 %v207
      %v941 = vunpack.c.l.b16 %v208
      %v942 = vunpack.c.l.b16 %v210
      %v943 = vunpack.c.l.b16 %v211
      %v944 = vunpack.c.l.b16 %v213
      %v945 = vunpack.c.l.b16 %v214
      %v946 = vunpack.c.l.b16 %v216
      %v947 = vunpack.c.l.b16 %v217
      %v948 = vunpack.c.l.b16 %v219
      %v949 = vunpack.c.l.b16 %v220
      %v950 = vunpack.c.l.b16 %v222
      %v951 = vunpack.c.l.b16 %v223
      %v952 = vunpack.c.l.b16 %v225
      %v953 = vunpack.c.l.b16 %v226
      %v954 = vunpack.c.l.b16 %v228
      %v955 = vunpack.c.l.b16 %v229
      %v956 = vunpack.c.l.b16 %v231
      %v957 = vunpack.c.l.b16 %v232
      %v958 = vunpack.c.l.b16 %v234
      %v959 = vunpack.c.l.b16 %v235
      %v960 = vunpack.c.l.b16 %v237
      %v961 = vunpack.c.l.b16 %v238
      %v962 = vpack.c.b16 %v931, %v930
      %v963 = vpack.c.b16 %v933, %v932
      %v964 = vpack.c.b16 %v935, %v934
      %v965 = vpack.c.b16 %v937, %v936
      %v966 = vpack.c.b16 %v939, %v938
      %v967 = vpack.c.b16 %v941, %v940
      %v968 = vpack.c.b16 %v943, %v942
      %v969 = vpack.c.b16 %v945, %v944
      %v970 = vpack.c.b16 %v947, %v946
      %v971 = vpack.c.b16 %v949, %v948
      %v972 = vpack.c.b16 %v951, %v950
      %v973 = vpack.c.b16 %v953, %v952
      %v974 = vpack.c.b16 %v955, %v954
      %v975 = vpack.c.b16 %v957, %v956
      %v976 = vpack.c.b16 %v959, %v958
      %v977 = vpack.c.b16 %v961, %v960
      %v979 = vsel %vm684, %v962, 0
      %v982 = vsel %vm684, %v963, 0
      %v985 = vsel %vm684, %v964, 0
      %v988 = vsel %vm684, %v965, 0
      %v991 = vsel %vm684, %v966, 0
      %v994 = vsel %vm684, %v967, 0
      %v997 = vsel %vm684, %v968, 0
      %v1000 = vsel %vm684, %v969, 0
      %v1003 = vsel %vm684, %v970, 0
      %v1006 = vsel %vm684, %v971, 0
      %v1009 = vsel %vm684, %v972, 0
      %v1012 = vsel %vm684, %v973, 0
      %v1015 = vsel %vm684, %v974, 0
      %v1018 = vsel %vm684, %v975, 0
      %v1021 = vsel %vm684, %v976, 0
      %v1024 = vsel %vm684, %v977, 0
      %v1027 = vsel %vm733, %v246, 0
      %1029 = vmatprep.subr.bf16.mxu0 0
      %1030 = vmatpush1.bf16.msra.mxu0 0
      %1031 = vmatprep.subr.bf16.mxu0 0
      %1032 = vmatpush1.bf16.msra.mxu0 0
      %1033 = vmatprep.subr.bf16.mxu0 0
      %1034 = vmatpush1.bf16.msra.mxu0 0
      %1035 = vmatprep.subr.bf16.mxu0 0
      %1036 = vmatpush1.bf16.msra.mxu0 0
      %1037 = vmatprep.subr.bf16.mxu0 0
      %1038 = vmatpush1.bf16.msra.mxu0 0
      %1039 = vmatprep.subr.bf16.mxu0 0
      %1040 = vmatpush1.bf16.msra.mxu0 0
      %1041 = vmatprep.subr.bf16.mxu0 0
      %1042 = vmatpush1.bf16.msra.mxu0 0
      %1043 = vmatprep.subr.bf16.mxu0 0
      %1044 = vmatpush1.bf16.msra.mxu0 %v1027
      %1045 = vmatprep.subr.bf16.mxu0 0
      %1046 = vmatpush2.bf16.msra.mxu0 0
      %1047 = vmatprep.subr.bf16.mxu0 0
      %1048 = vmatpush2.bf16.msra.mxu0 0
      %1049 = vmatprep.subr.bf16.mxu0 0
      %1050 = vmatpush2.bf16.msra.mxu0 0
      %1051 = vmatprep.subr.bf16.mxu0 0
      %1052 = vmatpush2.bf16.msra.mxu0 0
      %1053 = vmatprep.subr.bf16.mxu0 0
      %1054 = vmatpush2.bf16.msra.mxu0 0
      %1055 = vmatprep.subr.bf16.mxu0 0
      %1056 = vmatpush2.bf16.msra.mxu0 0
      %1057 = vmatprep.subr.bf16.mxu0 0
      %1058 = vmatpush2.bf16.msra.mxu0 0
      %1059 = vmatprep.subr.bf16.mxu0 0
      %1060 = vmatpush2.bf16.msra.mxu0 0
      %1061 = vmatprep.mubr.bf16.mxu0 0
      %1062 = vmatmul.mubr.bf16.gmra.mxu0 %v979
      %v1063 = vpop.f32.mrf.mxu0
      %v1064 = vadd.f32 %v772, %v1063
      %v1065 = vpop.f32.mrf.mxu0
      %v1066 = vpop.f32.mrf.mxu0
      %v1067 = vadd.f32 %v775, %v1066
      %v1068 = vpop.f32.mrf.mxu0
      %1069 = vmatprep.mubr.bf16.mxu0 0
      %1070 = vmatmul.mubr.bf16.gmra.mxu0 %v982
      %v1071 = vpop.f32.mrf.mxu0
      %v1072 = vadd.f32 %v780, %v1071
      %v1073 = vpop.f32.mrf.mxu0
      %v1074 = vpop.f32.mrf.mxu0
      %v1075 = vadd.f32 %v783, %v1074
      %v1076 = vpop.f32.mrf.mxu0
      %1077 = vmatprep.mubr.bf16.mxu0 0
      %1078 = vmatmul.mubr.bf16.gmra.mxu0 %v985
      %v1079 = vpop.f32.mrf.mxu0
      %v1080 = vadd.f32 %v788, %v1079
      %v1081 = vpop.f32.mrf.mxu0
      %v1082 = vpop.f32.mrf.mxu0
      %v1083 = vadd.f32 %v791, %v1082
      %v1084 = vpop.f32.mrf.mxu0
      %1085 = vmatprep.mubr.bf16.mxu0 0
      %1086 = vmatmul.mubr.bf16.gmra.mxu0 %v988
      %v1087 = vpop.f32.mrf.mxu0
      %v1088 = vadd.f32 %v796, %v1087
      %v1089 = vpop.f32.mrf.mxu0
      %v1090 = vpop.f32.mrf.mxu0
      %v1091 = vadd.f32 %v799, %v1090
      %v1092 = vpop.f32.mrf.mxu0
      %1093 = vmatprep.mubr.bf16.mxu0 0
      %1094 = vmatmul.mubr.bf16.gmra.mxu0 %v991
      %v1095 = vpop.f32.mrf.mxu0
      %v1096 = vadd.f32 %v804, %v1095
      %v1097 = vpop.f32.mrf.mxu0
      %v1098 = vpop.f32.mrf.mxu0
      %v1099 = vadd.f32 %v807, %v1098
      %v1100 = vpop.f32.mrf.mxu0
      %1101 = vmatprep.mubr.bf16.mxu0 0
      %1102 = vmatmul.mubr.bf16.gmra.mxu0 %v994
      %v1103 = vpop.f32.mrf.mxu0
      %v1104 = vadd.f32 %v812, %v1103
      %v1105 = vpop.f32.mrf.mxu0
      %v1106 = vpop.f32.mrf.mxu0
      %v1107 = vadd.f32 %v815, %v1106
      %v1108 = vpop.f32.mrf.mxu0
      %1109 = vmatprep.mubr.bf16.mxu0 0
      %1110 = vmatmul.mubr.bf16.gmra.mxu0 %v997
      %v1111 = vpop.f32.mrf.mxu0
      %v1112 = vadd.f32 %v820, %v1111
      %v1113 = vpop.f32.mrf.mxu0
      %v1114 = vpop.f32.mrf.mxu0
      %v1115 = vadd.f32 %v823, %v1114
      %v1116 = vpop.f32.mrf.mxu0
      %1117 = vmatprep.mubr.bf16.mxu0 0
      %1118 = vmatmul.mubr.bf16.gmra.mxu0 %v1000
      %v1119 = vpop.f32.mrf.mxu0
      %v1120 = vadd.f32 %v828, %v1119
      %v1121 = vpop.f32.mrf.mxu0
      %v1122 = vpop.f32.mrf.mxu0
      %v1123 = vadd.f32 %v831, %v1122
      %v1124 = vpop.f32.mrf.mxu0
      %1125 = vmatprep.mubr.bf16.mxu0 0
      %1126 = vmatmul.mubr.bf16.gmra.mxu0 %v1003
      %v1127 = vpop.f32.mrf.mxu0
      %v1128 = vadd.f32 %v836, %v1127
      %v1129 = vpop.f32.mrf.mxu0
      %v1130 = vpop.f32.mrf.mxu0
      %v1131 = vadd.f32 %v839, %v1130
      %v1132 = vpop.f32.mrf.mxu0
      %1133 = vmatprep.mubr.bf16.mxu0 0
      %1134 = vmatmul.mubr.bf16.gmra.mxu0 %v1006
      %v1135 = vpop.f32.mrf.mxu0
      %v1136 = vadd.f32 %v844, %v1135
      %v1137 = vpop.f32.mrf.mxu0
      %v1138 = vpop.f32.mrf.mxu0
      %v1139 = vadd.f32 %v847, %v1138
      %v1140 = vpop.f32.mrf.mxu0
      %1141 = vmatprep.mubr.bf16.mxu0 0
      %1142 = vmatmul.mubr.bf16.gmra.mxu0 %v1009
      %v1143 = vpop.f32.mrf.mxu0
      %v1144 = vadd.f32 %v852, %v1143
      %v1145 = vpop.f32.mrf.mxu0
      %v1146 = vpop.f32.mrf.mxu0
      %v1147 = vadd.f32 %v855, %v1146
      %v1148 = vpop.f32.mrf.mxu0
      %1149 = vmatprep.mubr.bf16.mxu0 0
      %1150 = vmatmul.mubr.bf16.gmra.mxu0 %v1012
      %v1151 = vpop.f32.mrf.mxu0
      %v1152 = vadd.f32 %v860, %v1151
      %v1153 = vpop.f32.mrf.mxu0
      %v1154 = vpop.f32.mrf.mxu0
      %v1155 = vadd.f32 %v863, %v1154
      %v1156 = vpop.f32.mrf.mxu0
      %1157 = vmatprep.mubr.bf16.mxu0 0
      %1158 = vmatmul.mubr.bf16.gmra.mxu0 %v1015
      %v1159 = vpop.f32.mrf.mxu0
      %v1160 = vadd.f32 %v868, %v1159
      %v1161 = vpop.f32.mrf.mxu0
      %v1162 = vpop.f32.mrf.mxu0
      %v1163 = vadd.f32 %v871, %v1162
      %v1164 = vpop.f32.mrf.mxu0
      %1165 = vmatprep.mubr.bf16.mxu0 0
      %1166 = vmatmul.mubr.bf16.gmra.mxu0 %v1018
      %v1167 = vpop.f32.mrf.mxu0
      %v1168 = vadd.f32 %v876, %v1167
      %v1169 = vpop.f32.mrf.mxu0
      %v1170 = vpop.f32.mrf.mxu0
      %v1171 = vadd.f32 %v879, %v1170
      %v1172 = vpop.f32.mrf.mxu0
      %1173 = vmatprep.mubr.bf16.mxu0 0
      %1174 = vmatmul.mubr.bf16.gmra.mxu0 %v1021
      %v1175 = vpop.f32.mrf.mxu0
      %v1176 = vadd.f32 %v884, %v1175
      %v1177 = vpop.f32.mrf.mxu0
      %v1178 = vpop.f32.mrf.mxu0
      %v1179 = vadd.f32 %v887, %v1178
      %v1180 = vpop.f32.mrf.mxu0
      %1181 = vmatprep.mubr.bf16.mxu0 0
      %1182 = vmatmul.mubr.bf16.gmra.mxu0 %v1024
      %v1183 = vpop.f32.mrf.mxu0
      %v1184 = vadd.f32 %v892, %v1183
      %v1185 = vpop.f32.mrf.mxu0
      %v1186 = vpop.f32.mrf.mxu0
      %v1187 = vadd.f32 %v895, %v1186
      %v1188 = vpop.f32.mrf.mxu0
      %1189 = vdwg.mxu0
      %vm1206 = vcmask 1042432
      %vm1207 = vcmask 1046532
      %vm1208 = vmor %vm1206, %vm1207
      %v1209 = vrot.slane %v192, 5
      %v1210 = vrot.slane %v1209, 4
      %v1211 = vrot.slane %v193, 5
      %v1212 = vsel %vm1208, %v1210, %v1211
      %v1213 = vrot.slane %v1211, 4
      %v1214 = vrot.slane %v194, 5
      %v1215 = vsel %vm1208, %v1213, %v1214
      %v1216 = vrot.slane %v195, 5
      %v1217 = vrot.slane %v1216, 4
      %v1218 = vrot.slane %v196, 5
      %v1219 = vsel %vm1208, %v1217, %v1218
      %v1220 = vrot.slane %v1218, 4
      %v1221 = vrot.slane %v197, 5
      %v1222 = vsel %vm1208, %v1220, %v1221
      %v1223 = vrot.slane %v198, 5
      %v1224 = vrot.slane %v1223, 4
      %v1225 = vrot.slane %v199, 5
      %v1226 = vsel %vm1208, %v1224, %v1225
      %v1227 = vrot.slane %v1225, 4
      %v1228 = vrot.slane %v200, 5
      %v1229 = vsel %vm1208, %v1227, %v1228
      %v1230 = vrot.slane %v201, 5
      %v1231 = vrot.slane %v1230, 4
      %v1232 = vrot.slane %v202, 5
      %v1233 = vsel %vm1208, %v1231, %v1232
      %v1234 = vrot.slane %v1232, 4
      %v1235 = vrot.slane %v203, 5
      %v1236 = vsel %vm1208, %v1234, %v1235
      %v1237 = vrot.slane %v204, 5
      %v1238 = vrot.slane %v1237, 4
      %v1239 = vrot.slane %v205, 5
      %v1240 = vsel %vm1208, %v1238, %v1239
      %v1241 = vrot.slane %v1239, 4
      %v1242 = vrot.slane %v206, 5
      %v1243 = vsel %vm1208, %v1241, %v1242
      %v1244 = vrot.slane %v207, 5
      %v1245 = vrot.slane %v1244, 4
      %v1246 = vrot.slane %v208, 5
      %v1247 = vsel %vm1208, %v1245, %v1246
      %v1248 = vrot.slane %v1246, 4
      %v1249 = vrot.slane %v209, 5
      %v1250 = vsel %vm1208, %v1248, %v1249
      %v1251 = vrot.slane %v210, 5
      %v1252 = vrot.slane %v1251, 4
      %v1253 = vrot.slane %v211, 5
      %v1254 = vsel %vm1208, %v1252, %v1253
      %v1255 = vrot.slane %v1253, 4
      %v1256 = vrot.slane %v212, 5
      %v1257 = vsel %vm1208, %v1255, %v1256
      %v1258 = vrot.slane %v213, 5
      %v1259 = vrot.slane %v1258, 4
      %v1260 = vrot.slane %v214, 5
      %v1261 = vsel %vm1208, %v1259, %v1260
      %v1262 = vrot.slane %v1260, 4
      %v1263 = vrot.slane %v215, 5
      %v1264 = vsel %vm1208, %v1262, %v1263
      %v1265 = vrot.slane %v216, 5
      %v1266 = vrot.slane %v1265, 4
      %v1267 = vrot.slane %v217, 5
      %v1268 = vsel %vm1208, %v1266, %v1267
      %v1269 = vrot.slane %v1267, 4
      %v1270 = vrot.slane %v218, 5
      %v1271 = vsel %vm1208, %v1269, %v1270
      %v1272 = vrot.slane %v219, 5
      %v1273 = vrot.slane %v1272, 4
      %v1274 = vrot.slane %v220, 5
      %v1275 = vsel %vm1208, %v1273, %v1274
      %v1276 = vrot.slane %v1274, 4
      %v1277 = vrot.slane %v221, 5
      %v1278 = vsel %vm1208, %v1276, %v1277
      %v1279 = vrot.slane %v222, 5
      %v1280 = vrot.slane %v1279, 4
      %v1281 = vrot.slane %v223, 5
      %v1282 = vsel %vm1208, %v1280, %v1281
      %v1283 = vrot.slane %v1281, 4
      %v1284 = vrot.slane %v224, 5
      %v1285 = vsel %vm1208, %v1283, %v1284
      %v1286 = vrot.slane %v225, 5
      %v1287 = vrot.slane %v1286, 4
      %v1288 = vrot.slane %v226, 5
      %v1289 = vsel %vm1208, %v1287, %v1288
      %v1290 = vrot.slane %v1288, 4
      %v1291 = vrot.slane %v227, 5
      %v1292 = vsel %vm1208, %v1290, %v1291
      %v1293 = vrot.slane %v228, 5
      %v1294 = vrot.slane %v1293, 4
      %v1295 = vrot.slane %v229, 5
      %v1296 = vsel %vm1208, %v1294, %v1295
      %v1297 = vrot.slane %v1295, 4
      %v1298 = vrot.slane %v230, 5
      %v1299 = vsel %vm1208, %v1297, %v1298
      %v1300 = vrot.slane %v231, 5
      %v1301 = vrot.slane %v1300, 4
      %v1302 = vrot.slane %v232, 5
      %v1303 = vsel %vm1208, %v1301, %v1302
      %v1304 = vrot.slane %v1302, 4
      %v1305 = vrot.slane %v233, 5
      %v1306 = vsel %vm1208, %v1304, %v1305
      %v1307 = vrot.slane %v234, 5
      %v1308 = vrot.slane %v1307, 4
      %v1309 = vrot.slane %v235, 5
      %v1310 = vsel %vm1208, %v1308, %v1309
      %v1311 = vrot.slane %v1309, 4
      %v1312 = vrot.slane %v236, 5
      %v1313 = vsel %vm1208, %v1311, %v1312
      %v1314 = vrot.slane %v237, 5
      %v1315 = vrot.slane %v1314, 4
      %v1316 = vrot.slane %v238, 5
      %v1317 = vsel %vm1208, %v1315, %v1316
      %v1318 = vrot.slane %v1316, 4
      %v1319 = vrot.slane %v239, 5
      %v1320 = vsel %vm1208, %v1318, %v1319
      %s1321 = scalar_lea.vmem %s1, 4
      %v1322 = vld [vmem:[%s1321] sm:$0x3]
      %v1323 = vunpack.c.l.b16 %v1212
      %v1324 = vunpack.c.l.b16 %v1215
      %v1325 = vunpack.c.l.b16 %v1219
      %v1326 = vunpack.c.l.b16 %v1222
      %v1327 = vunpack.c.l.b16 %v1226
      %v1328 = vunpack.c.l.b16 %v1229
      %v1329 = vunpack.c.l.b16 %v1233
      %v1330 = vunpack.c.l.b16 %v1236
      %v1331 = vunpack.c.l.b16 %v1240
      %v1332 = vunpack.c.l.b16 %v1243
      %v1333 = vunpack.c.l.b16 %v1247
      %v1334 = vunpack.c.l.b16 %v1250
      %v1335 = vunpack.c.l.b16 %v1254
      %v1336 = vunpack.c.l.b16 %v1257
      %v1337 = vunpack.c.l.b16 %v1261
      %v1338 = vunpack.c.l.b16 %v1264
      %v1339 = vunpack.c.l.b16 %v1268
      %v1340 = vunpack.c.l.b16 %v1271
      %v1341 = vunpack.c.l.b16 %v1275
      %v1342 = vunpack.c.l.b16 %v1278
      %v1343 = vunpack.c.l.b16 %v1282
      %v1344 = vunpack.c.l.b16 %v1285
      %v1345 = vunpack.c.l.b16 %v1289
      %v1346 = vunpack.c.l.b16 %v1292
      %v1347 = vunpack.c.l.b16 %v1296
      %v1348 = vunpack.c.l.b16 %v1299
      %v1349 = vunpack.c.l.b16 %v1303
      %v1350 = vunpack.c.l.b16 %v1306
      %v1351 = vunpack.c.l.b16 %v1310
      %v1352 = vunpack.c.l.b16 %v1313
      %v1353 = vunpack.c.l.b16 %v1317
      %v1354 = vunpack.c.l.b16 %v1320
      %v1355 = vpack.c.b16 %v1324, %v1323
      %v1356 = vpack.c.b16 %v1326, %v1325
      %v1357 = vpack.c.b16 %v1328, %v1327
      %v1358 = vpack.c.b16 %v1330, %v1329
      %v1359 = vpack.c.b16 %v1332, %v1331
      %v1360 = vpack.c.b16 %v1334, %v1333
      %v1361 = vpack.c.b16 %v1336, %v1335
      %v1362 = vpack.c.b16 %v1338, %v1337
      %v1363 = vpack.c.b16 %v1340, %v1339
      %v1364 = vpack.c.b16 %v1342, %v1341
      %v1365 = vpack.c.b16 %v1344, %v1343
      %v1366 = vpack.c.b16 %v1346, %v1345
      %v1367 = vpack.c.b16 %v1348, %v1347
      %v1368 = vpack.c.b16 %v1350, %v1349
      %v1369 = vpack.c.b16 %v1352, %v1351
      %v1370 = vpack.c.b16 %v1354, %v1353
      %v1372 = vsel %vm684, %v1355, 0
      %v1375 = vsel %vm684, %v1356, 0
      %v1378 = vsel %vm684, %v1357, 0
      %v1381 = vsel %vm684, %v1358, 0
      %v1384 = vsel %vm684, %v1359, 0
      %v1387 = vsel %vm684, %v1360, 0
      %v1390 = vsel %vm684, %v1361, 0
      %v1393 = vsel %vm684, %v1362, 0
      %v1396 = vsel %vm684, %v1363, 0
      %v1399 = vsel %vm684, %v1364, 0
      %v1402 = vsel %vm684, %v1365, 0
      %v1405 = vsel %vm684, %v1366, 0
      %v1408 = vsel %vm684, %v1367, 0
      %v1411 = vsel %vm684, %v1368, 0
      %v1414 = vsel %vm684, %v1369, 0
      %v1417 = vsel %vm684, %v1370, 0
      %v1420 = vsel %vm733, %v1322, 0
      %1422 = vmatprep.subr.bf16.mxu0 0
      %1423 = vmatpush1.bf16.msra.mxu0 0
      %1424 = vmatprep.subr.bf16.mxu0 0
      %1425 = vmatpush1.bf16.msra.mxu0 0
      %1426 = vmatprep.subr.bf16.mxu0 0
      %1427 = vmatpush1.bf16.msra.mxu0 0
      %1428 = vmatprep.subr.bf16.mxu0 0
      %1429 = vmatpush1.bf16.msra.mxu0 0
      %1430 = vmatprep.subr.bf16.mxu0 0
      %1431 = vmatpush1.bf16.msra.mxu0 0
      %1432 = vmatprep.subr.bf16.mxu0 0
      %1433 = vmatpush1.bf16.msra.mxu0 0
      %1434 = vmatprep.subr.bf16.mxu0 0
      %1435 = vmatpush1.bf16.msra.mxu0 0
      %1436 = vmatprep.subr.bf16.mxu0 0
      %1437 = vmatpush1.bf16.msra.mxu0 %v1420
      %1438 = vmatprep.subr.bf16.mxu0 0
      %1439 = vmatpush2.bf16.msra.mxu0 0
      %1440 = vmatprep.subr.bf16.mxu0 0
      %1441 = vmatpush2.bf16.msra.mxu0 0
      %1442 = vmatprep.subr.bf16.mxu0 0
      %1443 = vmatpush2.bf16.msra.mxu0 0
      %1444 = vmatprep.subr.bf16.mxu0 0
      %1445 = vmatpush2.bf16.msra.mxu0 0
      %1446 = vmatprep.subr.bf16.mxu0 0
      %1447 = vmatpush2.bf16.msra.mxu0 0
      %1448 = vmatprep.subr.bf16.mxu0 0
      %1449 = vmatpush2.bf16.msra.mxu0 0
      %1450 = vmatprep.subr.bf16.mxu0 0
      %1451 = vmatpush2.bf16.msra.mxu0 0
      %1452 = vmatprep.subr.bf16.mxu0 0
      %1453 = vmatpush2.bf16.msra.mxu0 0
      %1454 = vmatprep.mubr.bf16.mxu0 0
      %1455 = vmatmul.mubr.bf16.gmra.mxu0 %v1372
      %v1456 = vpop.f32.mrf.mxu0
      %v1457 = vadd.f32 0.0, %v1456
      %v1458 = vpop.f32.mrf.mxu0
      %v1459 = vpop.f32.mrf.mxu0
      %v1460 = vadd.f32 0.0, %v1459
      %v1461 = vpop.f32.mrf.mxu0
      %1462 = vmatprep.mubr.bf16.mxu0 0
      %1463 = vmatmul.mubr.bf16.gmra.mxu0 %v1375
      %v1464 = vpop.f32.mrf.mxu0
      %v1465 = vadd.f32 0.0, %v1464
      %v1466 = vpop.f32.mrf.mxu0
      %v1467 = vpop.f32.mrf.mxu0
      %v1468 = vadd.f32 0.0, %v1467
      %v1469 = vpop.f32.mrf.mxu0
      %1470 = vmatprep.mubr.bf16.mxu0 0
      %1471 = vmatmul.mubr.bf16.gmra.mxu0 %v1378
      %v1472 = vpop.f32.mrf.mxu0
      %v1473 = vadd.f32 0.0, %v1472
      %v1474 = vpop.f32.mrf.mxu0
      %v1475 = vpop.f32.mrf.mxu0
      %v1476 = vadd.f32 0.0, %v1475
      %v1477 = vpop.f32.mrf.mxu0
      %1478 = vmatprep.mubr.bf16.mxu0 0
      %1479 = vmatmul.mubr.bf16.gmra.mxu0 %v1381
      %v1480 = vpop.f32.mrf.mxu0
      %v1481 = vadd.f32 0.0, %v1480
      %v1482 = vpop.f32.mrf.mxu0
      %v1483 = vpop.f32.mrf.mxu0
      %v1484 = vadd.f32 0.0, %v1483
      %v1485 = vpop.f32.mrf.mxu0
      %1486 = vmatprep.mubr.bf16.mxu0 0
      %1487 = vmatmul.mubr.bf16.gmra.mxu0 %v1384
      %v1488 = vpop.f32.mrf.mxu0
      %v1489 = vadd.f32 0.0, %v1488
      %v1490 = vpop.f32.mrf.mxu0
      %v1491 = vpop.f32.mrf.mxu0
      %v1492 = vadd.f32 0.0, %v1491
      %v1493 = vpop.f32.mrf.mxu0
      %1494 = vmatprep.mubr.bf16.mxu0 0
      %1495 = vmatmul.mubr.bf16.gmra.mxu0 %v1387
      %v1496 = vpop.f32.mrf.mxu0
      %v1497 = vadd.f32 0.0, %v1496
      %v1498 = vpop.f32.mrf.mxu0
      %v1499 = vpop.f32.mrf.mxu0
      %v1500 = vadd.f32 0.0, %v1499
      %v1501 = vpop.f32.mrf.mxu0
      %1502 = vmatprep.mubr.bf16.mxu0 0
      %1503 = vmatmul.mubr.bf16.gmra.mxu0 %v1390
      %v1504 = vpop.f32.mrf.mxu0
      %v1505 = vadd.f32 0.0, %v1504
      %v1506 = vpop.f32.mrf.mxu0
      %v1507 = vpop.f32.mrf.mxu0
      %v1508 = vadd.f32 0.0, %v1507
      %v1509 = vpop.f32.mrf.mxu0
      %1510 = vmatprep.mubr.bf16.mxu0 0
      %1511 = vmatmul.mubr.bf16.gmra.mxu0 %v1393
      %v1512 = vpop.f32.mrf.mxu0
      %v1513 = vadd.f32 0.0, %v1512
      %v1514 = vpop.f32.mrf.mxu0
      %v1515 = vpop.f32.mrf.mxu0
      %v1516 = vadd.f32 0.0, %v1515
      %v1517 = vpop.f32.mrf.mxu0
      %1518 = vmatprep.mubr.bf16.mxu0 0
      %1519 = vmatmul.mubr.bf16.gmra.mxu0 %v1396
      %v1520 = vpop.f32.mrf.mxu0
      %v1521 = vadd.f32 0.0, %v1520
      %v1522 = vpop.f32.mrf.mxu0
      %v1523 = vpop.f32.mrf.mxu0
      %v1524 = vadd.f32 0.0, %v1523
      %v1525 = vpop.f32.mrf.mxu0
      %1526 = vmatprep.mubr.bf16.mxu0 0
      %1527 = vmatmul.mubr.bf16.gmra.mxu0 %v1399
      %v1528 = vpop.f32.mrf.mxu0
      %v1529 = vadd.f32 0.0, %v1528
      %v1530 = vpop.f32.mrf.mxu0
      %v1531 = vpop.f32.mrf.mxu0
      %v1532 = vadd.f32 0.0, %v1531
      %v1533 = vpop.f32.mrf.mxu0
      %1534 = vmatprep.mubr.bf16.mxu0 0
      %1535 = vmatmul.mubr.bf16.gmra.mxu0 %v1402
      %v1536 = vpop.f32.mrf.mxu0
      %v1537 = vadd.f32 0.0, %v1536
      %v1538 = vpop.f32.mrf.mxu0
      %v1539 = vpop.f32.mrf.mxu0
      %v1540 = vadd.f32 0.0, %v1539
      %v1541 = vpop.f32.mrf.mxu0
      %1542 = vmatprep.mubr.bf16.mxu0 0
      %1543 = vmatmul.mubr.bf16.gmra.mxu0 %v1405
      %v1544 = vpop.f32.mrf.mxu0
      %v1545 = vadd.f32 0.0, %v1544
      %v1546 = vpop.f32.mrf.mxu0
      %v1547 = vpop.f32.mrf.mxu0
      %v1548 = vadd.f32 0.0, %v1547
      %v1549 = vpop.f32.mrf.mxu0
      %1550 = vmatprep.mubr.bf16.mxu0 0
      %1551 = vmatmul.mubr.bf16.gmra.mxu0 %v1408
      %v1552 = vpop.f32.mrf.mxu0
      %v1553 = vadd.f32 0.0, %v1552
      %v1554 = vpop.f32.mrf.mxu0
      %v1555 = vpop.f32.mrf.mxu0
      %v1556 = vadd.f32 0.0, %v1555
      %v1557 = vpop.f32.mrf.mxu0
      %1558 = vmatprep.mubr.bf16.mxu0 0
      %1559 = vmatmul.mubr.bf16.gmra.mxu0 %v1411
      %v1560 = vpop.f32.mrf.mxu0
      %v1561 = vadd.f32 0.0, %v1560
      %v1562 = vpop.f32.mrf.mxu0
      %v1563 = vpop.f32.mrf.mxu0
      %v1564 = vadd.f32 0.0, %v1563
      %v1565 = vpop.f32.mrf.mxu0
      %1566 = vmatprep.mubr.bf16.mxu0 0
      %1567 = vmatmul.mubr.bf16.gmra.mxu0 %v1414
      %v1568 = vpop.f32.mrf.mxu0
      %v1569 = vadd.f32 0.0, %v1568
      %v1570 = vpop.f32.mrf.mxu0
      %v1571 = vpop.f32.mrf.mxu0
      %v1572 = vadd.f32 0.0, %v1571
      %v1573 = vpop.f32.mrf.mxu0
      %1574 = vmatprep.mubr.bf16.mxu0 0
      %1575 = vmatmul.mubr.bf16.gmra.mxu0 %v1417
      %v1576 = vpop.f32.mrf.mxu0
      %v1577 = vadd.f32 0.0, %v1576
      %v1578 = vpop.f32.mrf.mxu0
      %v1579 = vpop.f32.mrf.mxu0
      %v1580 = vadd.f32 0.0, %v1579
      %v1581 = vpop.f32.mrf.mxu0
      %1582 = vdwg.mxu0
      %v1583 = vadd.f32 %v1064, %v1457
      %v1584 = vadd.f32 %v1067, %v1460
      %v1585 = vadd.f32 %v1072, %v1465
      %v1586 = vadd.f32 %v1075, %v1468
      %v1587 = vadd.f32 %v1080, %v1473
      %v1588 = vadd.f32 %v1083, %v1476
      %v1589 = vadd.f32 %v1088, %v1481
      %v1590 = vadd.f32 %v1091, %v1484
      %v1591 = vadd.f32 %v1096, %v1489
      %v1592 = vadd.f32 %v1099, %v1492
      %v1593 = vadd.f32 %v1104, %v1497
      %v1594 = vadd.f32 %v1107, %v1500
      %v1595 = vadd.f32 %v1112, %v1505
      %v1596 = vadd.f32 %v1115, %v1508
      %v1597 = vadd.f32 %v1120, %v1513
      %v1598 = vadd.f32 %v1123, %v1516
      %v1599 = vadd.f32 %v1128, %v1521
      %v1600 = vadd.f32 %v1131, %v1524
      %v1601 = vadd.f32 %v1136, %v1529
      %v1602 = vadd.f32 %v1139, %v1532
      %v1603 = vadd.f32 %v1144, %v1537
      %v1604 = vadd.f32 %v1147, %v1540
      %v1605 = vadd.f32 %v1152, %v1545
      %v1606 = vadd.f32 %v1155, %v1548
      %v1607 = vadd.f32 %v1160, %v1553
      %v1608 = vadd.f32 %v1163, %v1556
      %v1609 = vadd.f32 %v1168, %v1561
      %v1610 = vadd.f32 %v1171, %v1564
      %v1611 = vadd.f32 %v1176, %v1569
      %v1612 = vadd.f32 %v1179, %v1572
      %v1613 = vadd.f32 %v1184, %v1577
      %v1614 = vadd.f32 %v1187, %v1580
      %s1615 = scalar_lea.vmem %s1, 6
      %v1616 = vld [vmem:[%s1615] sm:$0x3]
      %v1619 = vunpack.c.l.b16 %v240
      %v1620 = vunpack.c.l.b16 %v241
      %v1621 = vpack.c.b16 %v1620, %v1619
      %v1623 = vsel %vm684, %v1621, 0
      %v1626 = vsel %vm733, %v1616, 0
      %1628 = vmatprep.subr.bf16.mxu0 0
      %1629 = vmatpush1.bf16.msra.mxu0 0
      %1630 = vmatprep.subr.bf16.mxu0 0
      %1631 = vmatpush1.bf16.msra.mxu0 0
      %1632 = vmatprep.subr.bf16.mxu0 0
      %1633 = vmatpush1.bf16.msra.mxu0 0
      %1634 = vmatprep.subr.bf16.mxu0 0
      %1635 = vmatpush1.bf16.msra.mxu0 0
      %1636 = vmatprep.subr.bf16.mxu0 0
      %1637 = vmatpush1.bf16.msra.mxu0 0
      %1638 = vmatprep.subr.bf16.mxu0 0
      %1639 = vmatpush1.bf16.msra.mxu0 0
      %1640 = vmatprep.subr.bf16.mxu0 0
      %1641 = vmatpush1.bf16.msra.mxu0 0
      %1642 = vmatprep.subr.bf16.mxu0 0
      %1643 = vmatpush1.bf16.msra.mxu0 %v1626
      %1644 = vmatprep.subr.bf16.mxu0 0
      %1645 = vmatpush2.bf16.msra.mxu0 0
      %1646 = vmatprep.subr.bf16.mxu0 0
      %1647 = vmatpush2.bf16.msra.mxu0 0
      %1648 = vmatprep.subr.bf16.mxu0 0
      %1649 = vmatpush2.bf16.msra.mxu0 0
      %1650 = vmatprep.subr.bf16.mxu0 0
      %1651 = vmatpush2.bf16.msra.mxu0 0
      %1652 = vmatprep.subr.bf16.mxu0 0
      %1653 = vmatpush2.bf16.msra.mxu0 0
      %1654 = vmatprep.subr.bf16.mxu0 0
      %1655 = vmatpush2.bf16.msra.mxu0 0
      %1656 = vmatprep.subr.bf16.mxu0 0
      %1657 = vmatpush2.bf16.msra.mxu0 0
      %1658 = vmatprep.subr.bf16.mxu0 0
      %1659 = vmatpush2.bf16.msra.mxu0 0
      %1660 = vmatprep.mubr.bf16.mxu0 0
      %1661 = vmatmul.mubr.bf16.gmra.mxu0 %v982
      %v1662 = vpop.f32.mrf.mxu0
      %v1663 = vadd.f32 0.0, %v1662
      %v1664 = vpop.f32.mrf.mxu0
      %v1665 = vpop.f32.mrf.mxu0
      %v1666 = vadd.f32 0.0, %v1665
      %v1667 = vpop.f32.mrf.mxu0
      %1668 = vmatprep.mubr.bf16.mxu0 0
      %1669 = vmatmul.mubr.bf16.gmra.mxu0 %v985
      %v1670 = vpop.f32.mrf.mxu0
      %v1671 = vadd.f32 0.0, %v1670
      %v1672 = vpop.f32.mrf.mxu0
      %v1673 = vpop.f32.mrf.mxu0
      %v1674 = vadd.f32 0.0, %v1673
      %v1675 = vpop.f32.mrf.mxu0
      %1676 = vmatprep.mubr.bf16.mxu0 0
      %1677 = vmatmul.mubr.bf16.gmra.mxu0 %v988
      %v1678 = vpop.f32.mrf.mxu0
      %v1679 = vadd.f32 0.0, %v1678
      %v1680 = vpop.f32.mrf.mxu0
      %v1681 = vpop.f32.mrf.mxu0
      %v1682 = vadd.f32 0.0, %v1681
      %v1683 = vpop.f32.mrf.mxu0
      %1684 = vmatprep.mubr.bf16.mxu0 0
      %1685 = vmatmul.mubr.bf16.gmra.mxu0 %v991
      %v1686 = vpop.f32.mrf.mxu0
      %v1687 = vadd.f32 0.0, %v1686
      %v1688 = vpop.f32.mrf.mxu0
      %v1689 = vpop.f32.mrf.mxu0
      %v1690 = vadd.f32 0.0, %v1689
      %v1691 = vpop.f32.mrf.mxu0
      %1692 = vmatprep.mubr.bf16.mxu0 0
      %1693 = vmatmul.mubr.bf16.gmra.mxu0 %v994
      %v1694 = vpop.f32.mrf.mxu0
      %v1695 = vadd.f32 0.0, %v1694
      %v1696 = vpop.f32.mrf.mxu0
      %v1697 = vpop.f32.mrf.mxu0
      %v1698 = vadd.f32 0.0, %v1697
      %v1699 = vpop.f32.mrf.mxu0
      %1700 = vmatprep.mubr.bf16.mxu0 0
      %1701 = vmatmul.mubr.bf16.gmra.mxu0 %v997
      %v1702 = vpop.f32.mrf.mxu0
      %v1703 = vadd.f32 0.0, %v1702
      %v1704 = vpop.f32.mrf.mxu0
      %v1705 = vpop.f32.mrf.mxu0
      %v1706 = vadd.f32 0.0, %v1705
      %v1707 = vpop.f32.mrf.mxu0
      %1708 = vmatprep.mubr.bf16.mxu0 0
      %1709 = vmatmul.mubr.bf16.gmra.mxu0 %v1000
      %v1710 = vpop.f32.mrf.mxu0
      %v1711 = vadd.f32 0.0, %v1710
      %v1712 = vpop.f32.mrf.mxu0
      %v1713 = vpop.f32.mrf.mxu0
      %v1714 = vadd.f32 0.0, %v1713
      %v1715 = vpop.f32.mrf.mxu0
      %1716 = vmatprep.mubr.bf16.mxu0 0
      %1717 = vmatmul.mubr.bf16.gmra.mxu0 %v1003
      %v1718 = vpop.f32.mrf.mxu0
      %v1719 = vadd.f32 0.0, %v1718
      %v1720 = vpop.f32.mrf.mxu0
      %v1721 = vpop.f32.mrf.mxu0
      %v1722 = vadd.f32 0.0, %v1721
      %v1723 = vpop.f32.mrf.mxu0
      %1724 = vmatprep.mubr.bf16.mxu0 0
      %1725 = vmatmul.mubr.bf16.gmra.mxu0 %v1006
      %v1726 = vpop.f32.mrf.mxu0
      %v1727 = vadd.f32 0.0, %v1726
      %v1728 = vpop.f32.mrf.mxu0
      %v1729 = vpop.f32.mrf.mxu0
      %v1730 = vadd.f32 0.0, %v1729
      %v1731 = vpop.f32.mrf.mxu0
      %1732 = vmatprep.mubr.bf16.mxu0 0
      %1733 = vmatmul.mubr.bf16.gmra.mxu0 %v1009
      %v1734 = vpop.f32.mrf.mxu0
      %v1735 = vadd.f32 0.0, %v1734
      %v1736 = vpop.f32.mrf.mxu0
      %v1737 = vpop.f32.mrf.mxu0
      %v1738 = vadd.f32 0.0, %v1737
      %v1739 = vpop.f32.mrf.mxu0
      %1740 = vmatprep.mubr.bf16.mxu0 0
      %1741 = vmatmul.mubr.bf16.gmra.mxu0 %v1012
      %v1742 = vpop.f32.mrf.mxu0
      %v1743 = vadd.f32 0.0, %v1742
      %v1744 = vpop.f32.mrf.mxu0
      %v1745 = vpop.f32.mrf.mxu0
      %v1746 = vadd.f32 0.0, %v1745
      %v1747 = vpop.f32.mrf.mxu0
      %1748 = vmatprep.mubr.bf16.mxu0 0
      %1749 = vmatmul.mubr.bf16.gmra.mxu0 %v1015
      %v1750 = vpop.f32.mrf.mxu0
      %v1751 = vadd.f32 0.0, %v1750
      %v1752 = vpop.f32.mrf.mxu0
      %v1753 = vpop.f32.mrf.mxu0
      %v1754 = vadd.f32 0.0, %v1753
      %v1755 = vpop.f32.mrf.mxu0
      %1756 = vmatprep.mubr.bf16.mxu0 0
      %1757 = vmatmul.mubr.bf16.gmra.mxu0 %v1018
      %v1758 = vpop.f32.mrf.mxu0
      %v1759 = vadd.f32 0.0, %v1758
      %v1760 = vpop.f32.mrf.mxu0
      %v1761 = vpop.f32.mrf.mxu0
      %v1762 = vadd.f32 0.0, %v1761
      %v1763 = vpop.f32.mrf.mxu0
      %1764 = vmatprep.mubr.bf16.mxu0 0
      %1765 = vmatmul.mubr.bf16.gmra.mxu0 %v1021
      %v1766 = vpop.f32.mrf.mxu0
      %v1767 = vadd.f32 0.0, %v1766
      %v1768 = vpop.f32.mrf.mxu0
      %v1769 = vpop.f32.mrf.mxu0
      %v1770 = vadd.f32 0.0, %v1769
      %v1771 = vpop.f32.mrf.mxu0
      %1772 = vmatprep.mubr.bf16.mxu0 0
      %1773 = vmatmul.mubr.bf16.gmra.mxu0 %v1024
      %v1774 = vpop.f32.mrf.mxu0
      %v1775 = vadd.f32 0.0, %v1774
      %v1776 = vpop.f32.mrf.mxu0
      %v1777 = vpop.f32.mrf.mxu0
      %v1778 = vadd.f32 0.0, %v1777
      %v1779 = vpop.f32.mrf.mxu0
      %1780 = vmatprep.mubr.bf16.mxu0 0
      %1781 = vmatmul.mubr.bf16.gmra.mxu0 %v1623
      %v1782 = vpop.f32.mrf.mxu0
      %v1783 = vadd.f32 0.0, %v1782
      %v1784 = vpop.f32.mrf.mxu0
      %v1785 = vpop.f32.mrf.mxu0
      %v1786 = vadd.f32 0.0, %v1785
      %v1787 = vpop.f32.mrf.mxu0
      %1788 = vdwg.mxu0
      %v1789 = vadd.f32 %v1583, %v1663
      %v1790 = vadd.f32 %v1584, %v1666
      %v1791 = vadd.f32 %v1585, %v1671
      %v1792 = vadd.f32 %v1586, %v1674
      %v1793 = vadd.f32 %v1587, %v1679
      %v1794 = vadd.f32 %v1588, %v1682
      %v1795 = vadd.f32 %v1589, %v1687
      %v1796 = vadd.f32 %v1590, %v1690
      %v1797 = vadd.f32 %v1591, %v1695
      %v1798 = vadd.f32 %v1592, %v1698
      %v1799 = vadd.f32 %v1593, %v1703
      %v1800 = vadd.f32 %v1594, %v1706
      %v1801 = vadd.f32 %v1595, %v1711
      %v1802 = vadd.f32 %v1596, %v1714
      %v1803 = vadd.f32 %v1597, %v1719
      %v1804 = vadd.f32 %v1598, %v1722
      %v1805 = vadd.f32 %v1599, %v1727
      %v1806 = vadd.f32 %v1600, %v1730
      %v1807 = vadd.f32 %v1601, %v1735
      %v1808 = vadd.f32 %v1602, %v1738
      %v1809 = vadd.f32 %v1603, %v1743
      %v1810 = vadd.f32 %v1604, %v1746
      %v1811 = vadd.f32 %v1605, %v1751
      %v1812 = vadd.f32 %v1606, %v1754
      %v1813 = vadd.f32 %v1607, %v1759
      %v1814 = vadd.f32 %v1608, %v1762
      %v1815 = vadd.f32 %v1609, %v1767
      %v1816 = vadd.f32 %v1610, %v1770
      %v1817 = vadd.f32 %v1611, %v1775
      %v1818 = vadd.f32 %v1612, %v1778
      %v1819 = vadd.f32 %v1613, %v1783
      %v1820 = vadd.f32 %v1614, %v1786
      %v1822 = vshrl.u32 %v240, 16
      %v1824 = vrot.slane %v1822, 4
      %v1825 = vshll.u32 %v240, 16
      %v1827 = vrot.slane %v1825, 5
      %v1828 = vor.u32 %v1824, %v1827
      %v1829 = vrot.slane %v1828, 4
      %v1831 = vshll.u32 %v241, 16
      %v1833 = vrot.slane %v1831, 5
      %v1834 = vsel %vm249, %v1829, %v1833
      %v1835 = vshrl.u32 %v241, 16
      %v1837 = vrot.slane %v1835, 4
      %v1838 = vor.u32 %v1837, %v1833
      %v1839 = vrot.slane %v1838, 4
      %v1841 = vshll.u32 %v242, 16
      %v1843 = vrot.slane %v1841, 5
      %v1844 = vsel %vm249, %v1839, %v1843
      %s1845 = scalar_lea.vmem %s1, 8
      %v1846 = vld [vmem:[%s1845] sm:$0x3]
      %v1847 = vunpack.c.l.b16 %v1834
      %v1848 = vunpack.c.l.b16 %v1844
      %v1849 = vpack.c.b16 %v1848, %v1847
      %v1851 = vsel %vm684, %v1849, 0
      %v1854 = vsel %vm733, %v1846, 0
      %1856 = vmatprep.subr.bf16.mxu0 0
      %1857 = vmatpush1.bf16.msra.mxu0 0
      %1858 = vmatprep.subr.bf16.mxu0 0
      %1859 = vmatpush1.bf16.msra.mxu0 0
      %1860 = vmatprep.subr.bf16.mxu0 0
      %1861 = vmatpush1.bf16.msra.mxu0 0
      %1862 = vmatprep.subr.bf16.mxu0 0
      %1863 = vmatpush1.bf16.msra.mxu0 0
      %1864 = vmatprep.subr.bf16.mxu0 0
      %1865 = vmatpush1.bf16.msra.mxu0 0
      %1866 = vmatprep.subr.bf16.mxu0 0
      %1867 = vmatpush1.bf16.msra.mxu0 0
      %1868 = vmatprep.subr.bf16.mxu0 0
      %1869 = vmatpush1.bf16.msra.mxu0 0
      %1870 = vmatprep.subr.bf16.mxu0 0
      %1871 = vmatpush1.bf16.msra.mxu0 %v1854
      %1872 = vmatprep.subr.bf16.mxu0 0
      %1873 = vmatpush2.bf16.msra.mxu0 0
      %1874 = vmatprep.subr.bf16.mxu0 0
      %1875 = vmatpush2.bf16.msra.mxu0 0
      %1876 = vmatprep.subr.bf16.mxu0 0
      %1877 = vmatpush2.bf16.msra.mxu0 0
      %1878 = vmatprep.subr.bf16.mxu0 0
      %1879 = vmatpush2.bf16.msra.mxu0 0
      %1880 = vmatprep.subr.bf16.mxu0 0
      %1881 = vmatpush2.bf16.msra.mxu0 0
      %1882 = vmatprep.subr.bf16.mxu0 0
      %1883 = vmatpush2.bf16.msra.mxu0 0
      %1884 = vmatprep.subr.bf16.mxu0 0
      %1885 = vmatpush2.bf16.msra.mxu0 0
      %1886 = vmatprep.subr.bf16.mxu0 0
      %1887 = vmatpush2.bf16.msra.mxu0 0
      %1888 = vmatprep.mubr.bf16.mxu0 0
      %1889 = vmatmul.mubr.bf16.gmra.mxu0 %v689
      %v1890 = vpop.f32.mrf.mxu0
      %v1891 = vadd.f32 0.0, %v1890
      %v1892 = vpop.f32.mrf.mxu0
      %v1893 = vpop.f32.mrf.mxu0
      %v1894 = vadd.f32 0.0, %v1893
      %v1895 = vpop.f32.mrf.mxu0
      %1896 = vmatprep.mubr.bf16.mxu0 0
      %1897 = vmatmul.mubr.bf16.gmra.mxu0 %v692
      %v1898 = vpop.f32.mrf.mxu0
      %v1899 = vadd.f32 0.0, %v1898
      %v1900 = vpop.f32.mrf.mxu0
      %v1901 = vpop.f32.mrf.mxu0
      %v1902 = vadd.f32 0.0, %v1901
      %v1903 = vpop.f32.mrf.mxu0
      %1904 = vmatprep.mubr.bf16.mxu0 0
      %1905 = vmatmul.mubr.bf16.gmra.mxu0 %v695
      %v1906 = vpop.f32.mrf.mxu0
      %v1907 = vadd.f32 0.0, %v1906
      %v1908 = vpop.f32.mrf.mxu0
      %v1909 = vpop.f32.mrf.mxu0
      %v1910 = vadd.f32 0.0, %v1909
      %v1911 = vpop.f32.mrf.mxu0
      %1912 = vmatprep.mubr.bf16.mxu0 0
      %1913 = vmatmul.mubr.bf16.gmra.mxu0 %v698
      %v1914 = vpop.f32.mrf.mxu0
      %v1915 = vadd.f32 0.0, %v1914
      %v1916 = vpop.f32.mrf.mxu0
      %v1917 = vpop.f32.mrf.mxu0
      %v1918 = vadd.f32 0.0, %v1917
      %v1919 = vpop.f32.mrf.mxu0
      %1920 = vmatprep.mubr.bf16.mxu0 0
      %1921 = vmatmul.mubr.bf16.gmra.mxu0 %v701
      %v1922 = vpop.f32.mrf.mxu0
      %v1923 = vadd.f32 0.0, %v1922
      %v1924 = vpop.f32.mrf.mxu0
      %v1925 = vpop.f32.mrf.mxu0
      %v1926 = vadd.f32 0.0, %v1925
      %v1927 = vpop.f32.mrf.mxu0
      %1928 = vmatprep.mubr.bf16.mxu0 0
      %1929 = vmatmul.mubr.bf16.gmra.mxu0 %v704
      %v1930 = vpop.f32.mrf.mxu0
      %v1931 = vadd.f32 0.0, %v1930
      %v1932 = vpop.f32.mrf.mxu0
      %v1933 = vpop.f32.mrf.mxu0
      %v1934 = vadd.f32 0.0, %v1933
      %v1935 = vpop.f32.mrf.mxu0
      %1936 = vmatprep.mubr.bf16.mxu0 0
      %1937 = vmatmul.mubr.bf16.gmra.mxu0 %v707
      %v1938 = vpop.f32.mrf.mxu0
      %v1939 = vadd.f32 0.0, %v1938
      %v1940 = vpop.f32.mrf.mxu0
      %v1941 = vpop.f32.mrf.mxu0
      %v1942 = vadd.f32 0.0, %v1941
      %v1943 = vpop.f32.mrf.mxu0
      %1944 = vmatprep.mubr.bf16.mxu0 0
      %1945 = vmatmul.mubr.bf16.gmra.mxu0 %v710
      %v1946 = vpop.f32.mrf.mxu0
      %v1947 = vadd.f32 0.0, %v1946
      %v1948 = vpop.f32.mrf.mxu0
      %v1949 = vpop.f32.mrf.mxu0
      %v1950 = vadd.f32 0.0, %v1949
      %v1951 = vpop.f32.mrf.mxu0
      %1952 = vmatprep.mubr.bf16.mxu0 0
      %1953 = vmatmul.mubr.bf16.gmra.mxu0 %v713
      %v1954 = vpop.f32.mrf.mxu0
      %v1955 = vadd.f32 0.0, %v1954
      %v1956 = vpop.f32.mrf.mxu0
      %v1957 = vpop.f32.mrf.mxu0
      %v1958 = vadd.f32 0.0, %v1957
      %v1959 = vpop.f32.mrf.mxu0
      %1960 = vmatprep.mubr.bf16.mxu0 0
      %1961 = vmatmul.mubr.bf16.gmra.mxu0 %v716
      %v1962 = vpop.f32.mrf.mxu0
      %v1963 = vadd.f32 0.0, %v1962
      %v1964 = vpop.f32.mrf.mxu0
      %v1965 = vpop.f32.mrf.mxu0
      %v1966 = vadd.f32 0.0, %v1965
      %v1967 = vpop.f32.mrf.mxu0
      %1968 = vmatprep.mubr.bf16.mxu0 0
      %1969 = vmatmul.mubr.bf16.gmra.mxu0 %v719
      %v1970 = vpop.f32.mrf.mxu0
      %v1971 = vadd.f32 0.0, %v1970
      %v1972 = vpop.f32.mrf.mxu0
      %v1973 = vpop.f32.mrf.mxu0
      %v1974 = vadd.f32 0.0, %v1973
      %v1975 = vpop.f32.mrf.mxu0
      %1976 = vmatprep.mubr.bf16.mxu0 0
      %1977 = vmatmul.mubr.bf16.gmra.mxu0 %v722
      %v1978 = vpop.f32.mrf.mxu0
      %v1979 = vadd.f32 0.0, %v1978
      %v1980 = vpop.f32.mrf.mxu0
      %v1981 = vpop.f32.mrf.mxu0
      %v1982 = vadd.f32 0.0, %v1981
      %v1983 = vpop.f32.mrf.mxu0
      %1984 = vmatprep.mubr.bf16.mxu0 0
      %1985 = vmatmul.mubr.bf16.gmra.mxu0 %v725
      %v1986 = vpop.f32.mrf.mxu0
      %v1987 = vadd.f32 0.0, %v1986
      %v1988 = vpop.f32.mrf.mxu0
      %v1989 = vpop.f32.mrf.mxu0
      %v1990 = vadd.f32 0.0, %v1989
      %v1991 = vpop.f32.mrf.mxu0
      %1992 = vmatprep.mubr.bf16.mxu0 0
      %1993 = vmatmul.mubr.bf16.gmra.mxu0 %v728
      %v1994 = vpop.f32.mrf.mxu0
      %v1995 = vadd.f32 0.0, %v1994
      %v1996 = vpop.f32.mrf.mxu0
      %v1997 = vpop.f32.mrf.mxu0
      %v1998 = vadd.f32 0.0, %v1997
      %v1999 = vpop.f32.mrf.mxu0
      %2000 = vmatprep.mubr.bf16.mxu0 0
      %2001 = vmatmul.mubr.bf16.gmra.mxu0 %v731
      %v2002 = vpop.f32.mrf.mxu0
      %v2003 = vadd.f32 0.0, %v2002
      %v2004 = vpop.f32.mrf.mxu0
      %v2005 = vpop.f32.mrf.mxu0
      %v2006 = vadd.f32 0.0, %v2005
      %v2007 = vpop.f32.mrf.mxu0
      %2008 = vmatprep.mubr.bf16.mxu0 0
      %2009 = vmatmul.mubr.bf16.gmra.mxu0 %v1851
      %v2010 = vpop.f32.mrf.mxu0
      %v2011 = vadd.f32 0.0, %v2010
      %v2012 = vpop.f32.mrf.mxu0
      %v2013 = vpop.f32.mrf.mxu0
      %v2014 = vadd.f32 0.0, %v2013
      %v2015 = vpop.f32.mrf.mxu0
      %2016 = vdwg.mxu0
      %v2017 = vadd.f32 %v1789, %v1891
      %v2018 = vadd.f32 %v1790, %v1894
      %v2019 = vadd.f32 %v1791, %v1899
      %v2020 = vadd.f32 %v1792, %v1902
      %v2021 = vadd.f32 %v1793, %v1907
      %v2022 = vadd.f32 %v1794, %v1910
      %v2023 = vadd.f32 %v1795, %v1915
      %v2024 = vadd.f32 %v1796, %v1918
      %v2025 = vadd.f32 %v1797, %v1923
      %v2026 = vadd.f32 %v1798, %v1926
      %v2027 = vadd.f32 %v1799, %v1931
      %v2028 = vadd.f32 %v1800, %v1934
      %v2029 = vadd.f32 %v1801, %v1939
      %v2030 = vadd.f32 %v1802, %v1942
      %v2031 = vadd.f32 %v1803, %v1947
      %v2032 = vadd.f32 %v1804, %v1950
      %v2033 = vadd.f32 %v1805, %v1955
      %v2034 = vadd.f32 %v1806, %v1958
      %v2035 = vadd.f32 %v1807, %v1963
      %v2036 = vadd.f32 %v1808, %v1966
      %v2037 = vadd.f32 %v1809, %v1971
      %v2038 = vadd.f32 %v1810, %v1974
      %v2039 = vadd.f32 %v1811, %v1979
      %v2040 = vadd.f32 %v1812, %v1982
      %v2041 = vadd.f32 %v1813, %v1987
      %v2042 = vadd.f32 %v1814, %v1990
      %v2043 = vadd.f32 %v1815, %v1995
      %v2044 = vadd.f32 %v1816, %v1998
      %v2045 = vadd.f32 %v1817, %v2003
      %v2046 = vadd.f32 %v1818, %v2006
      %v2047 = vadd.f32 %v1819, %v2011
      %v2048 = vadd.f32 %v1820, %v2014
      %v2050 = vrot.slane %v240, 5
      %v2051 = vrot.slane %v2050, 4
      %v2052 = vrot.slane %v241, 5
      %v2053 = vsel %vm1208, %v2051, %v2052
      %v2054 = vrot.slane %v2052, 4
      %v2055 = vrot.slane %v242, 5
      %v2056 = vsel %vm1208, %v2054, %v2055
      %s2057 = scalar_lea.vmem %s1, 10
      %v2058 = vld [vmem:[%s2057] sm:$0x3]
      %v2059 = vunpack.c.l.b16 %v2053
      %v2060 = vunpack.c.l.b16 %v2056
      %v2061 = vpack.c.b16 %v2060, %v2059
      %v2063 = vsel %vm684, %v2061, 0
      %v2066 = vsel %vm733, %v2058, 0
      %2068 = vmatprep.subr.bf16.mxu0 0
      %2069 = vmatpush1.bf16.msra.mxu0 0
      %2070 = vmatprep.subr.bf16.mxu0 0
      %2071 = vmatpush1.bf16.msra.mxu0 0
      %2072 = vmatprep.subr.bf16.mxu0 0
      %2073 = vmatpush1.bf16.msra.mxu0 0
      %2074 = vmatprep.subr.bf16.mxu0 0
      %2075 = vmatpush1.bf16.msra.mxu0 0
      %2076 = vmatprep.subr.bf16.mxu0 0
      %2077 = vmatpush1.bf16.msra.mxu0 0
      %2078 = vmatprep.subr.bf16.mxu0 0
      %2079 = vmatpush1.bf16.msra.mxu0 0
      %2080 = vmatprep.subr.bf16.mxu0 0
      %2081 = vmatpush1.bf16.msra.mxu0 0
      %2082 = vmatprep.subr.bf16.mxu0 0
      %2083 = vmatpush1.bf16.msra.mxu0 %v2066
      %2084 = vmatprep.subr.bf16.mxu0 0
      %2085 = vmatpush2.bf16.msra.mxu0 0
      %2086 = vmatprep.subr.bf16.mxu0 0
      %2087 = vmatpush2.bf16.msra.mxu0 0
      %2088 = vmatprep.subr.bf16.mxu0 0
      %2089 = vmatpush2.bf16.msra.mxu0 0
      %2090 = vmatprep.subr.bf16.mxu0 0
      %2091 = vmatpush2.bf16.msra.mxu0 0
      %2092 = vmatprep.subr.bf16.mxu0 0
      %2093 = vmatpush2.bf16.msra.mxu0 0
      %2094 = vmatprep.subr.bf16.mxu0 0
      %2095 = vmatpush2.bf16.msra.mxu0 0
      %2096 = vmatprep.subr.bf16.mxu0 0
      %2097 = vmatpush2.bf16.msra.mxu0 0
      %2098 = vmatprep.subr.bf16.mxu0 0
      %2099 = vmatpush2.bf16.msra.mxu0 0
      %2100 = vmatprep.mubr.bf16.mxu0 0
      %2101 = vmatmul.mubr.bf16.gmra.mxu0 %v1375
      %v2102 = vpop.f32.mrf.mxu0
      %v2103 = vadd.f32 0.0, %v2102
      %v2104 = vpop.f32.mrf.mxu0
      %v2105 = vpop.f32.mrf.mxu0
      %v2106 = vadd.f32 0.0, %v2105
      %v2107 = vpop.f32.mrf.mxu0
      %2108 = vmatprep.mubr.bf16.mxu0 0
      %2109 = vmatmul.mubr.bf16.gmra.mxu0 %v1378
      %v2110 = vpop.f32.mrf.mxu0
      %v2111 = vadd.f32 0.0, %v2110
      %v2112 = vpop.f32.mrf.mxu0
      %v2113 = vpop.f32.mrf.mxu0
      %v2114 = vadd.f32 0.0, %v2113
      %v2115 = vpop.f32.mrf.mxu0
      %2116 = vmatprep.mubr.bf16.mxu0 0
      %2117 = vmatmul.mubr.bf16.gmra.mxu0 %v1381
      %v2118 = vpop.f32.mrf.mxu0
      %v2119 = vadd.f32 0.0, %v2118
      %v2120 = vpop.f32.mrf.mxu0
      %v2121 = vpop.f32.mrf.mxu0
      %v2122 = vadd.f32 0.0, %v2121
      %v2123 = vpop.f32.mrf.mxu0
      %2124 = vmatprep.mubr.bf16.mxu0 0
      %2125 = vmatmul.mubr.bf16.gmra.mxu0 %v1384
      %v2126 = vpop.f32.mrf.mxu0
      %v2127 = vadd.f32 0.0, %v2126
      %v2128 = vpop.f32.mrf.mxu0
      %v2129 = vpop.f32.mrf.mxu0
      %v2130 = vadd.f32 0.0, %v2129
      %v2131 = vpop.f32.mrf.mxu0
      %2132 = vmatprep.mubr.bf16.mxu0 0
      %2133 = vmatmul.mubr.bf16.gmra.mxu0 %v1387
      %v2134 = vpop.f32.mrf.mxu0
      %v2135 = vadd.f32 0.0, %v2134
      %v2136 = vpop.f32.mrf.mxu0
      %v2137 = vpop.f32.mrf.mxu0
      %v2138 = vadd.f32 0.0, %v2137
      %v2139 = vpop.f32.mrf.mxu0
      %2140 = vmatprep.mubr.bf16.mxu0 0
      %2141 = vmatmul.mubr.bf16.gmra.mxu0 %v1390
      %v2142 = vpop.f32.mrf.mxu0
      %v2143 = vadd.f32 0.0, %v2142
      %v2144 = vpop.f32.mrf.mxu0
      %v2145 = vpop.f32.mrf.mxu0
      %v2146 = vadd.f32 0.0, %v2145
      %v2147 = vpop.f32.mrf.mxu0
      %2148 = vmatprep.mubr.bf16.mxu0 0
      %2149 = vmatmul.mubr.bf16.gmra.mxu0 %v1393
      %v2150 = vpop.f32.mrf.mxu0
      %v2151 = vadd.f32 0.0, %v2150
      %v2152 = vpop.f32.mrf.mxu0
      %v2153 = vpop.f32.mrf.mxu0
      %v2154 = vadd.f32 0.0, %v2153
      %v2155 = vpop.f32.mrf.mxu0
      %2156 = vmatprep.mubr.bf16.mxu0 0
      %2157 = vmatmul.mubr.bf16.gmra.mxu0 %v1396
      %v2158 = vpop.f32.mrf.mxu0
      %v2159 = vadd.f32 0.0, %v2158
      %v2160 = vpop.f32.mrf.mxu0
      %v2161 = vpop.f32.mrf.mxu0
      %v2162 = vadd.f32 0.0, %v2161
      %v2163 = vpop.f32.mrf.mxu0
      %2164 = vmatprep.mubr.bf16.mxu0 0
      %2165 = vmatmul.mubr.bf16.gmra.mxu0 %v1399
      %v2166 = vpop.f32.mrf.mxu0
      %v2167 = vadd.f32 0.0, %v2166
      %v2168 = vpop.f32.mrf.mxu0
      %v2169 = vpop.f32.mrf.mxu0
      %v2170 = vadd.f32 0.0, %v2169
      %v2171 = vpop.f32.mrf.mxu0
      %2172 = vmatprep.mubr.bf16.mxu0 0
      %2173 = vmatmul.mubr.bf16.gmra.mxu0 %v1402
      %v2174 = vpop.f32.mrf.mxu0
      %v2175 = vadd.f32 0.0, %v2174
      %v2176 = vpop.f32.mrf.mxu0
      %v2177 = vpop.f32.mrf.mxu0
      %v2178 = vadd.f32 0.0, %v2177
      %v2179 = vpop.f32.mrf.mxu0
      %2180 = vmatprep.mubr.bf16.mxu0 0
      %2181 = vmatmul.mubr.bf16.gmra.mxu0 %v1405
      %v2182 = vpop.f32.mrf.mxu0
      %v2183 = vadd.f32 0.0, %v2182
      %v2184 = vpop.f32.mrf.mxu0
      %v2185 = vpop.f32.mrf.mxu0
      %v2186 = vadd.f32 0.0, %v2185
      %v2187 = vpop.f32.mrf.mxu0
      %2188 = vmatprep.mubr.bf16.mxu0 0
      %2189 = vmatmul.mubr.bf16.gmra.mxu0 %v1408
      %v2190 = vpop.f32.mrf.mxu0
      %v2191 = vadd.f32 0.0, %v2190
      %v2192 = vpop.f32.mrf.mxu0
      %v2193 = vpop.f32.mrf.mxu0
      %v2194 = vadd.f32 0.0, %v2193
      %v2195 = vpop.f32.mrf.mxu0
      %2196 = vmatprep.mubr.bf16.mxu0 0
      %2197 = vmatmul.mubr.bf16.gmra.mxu0 %v1411
      %v2198 = vpop.f32.mrf.mxu0
      %v2199 = vadd.f32 0.0, %v2198
      %v2200 = vpop.f32.mrf.mxu0
      %v2201 = vpop.f32.mrf.mxu0
      %v2202 = vadd.f32 0.0, %v2201
      %v2203 = vpop.f32.mrf.mxu0
      %2204 = vmatprep.mubr.bf16.mxu0 0
      %2205 = vmatmul.mubr.bf16.gmra.mxu0 %v1414
      %v2206 = vpop.f32.mrf.mxu0
      %v2207 = vadd.f32 0.0, %v2206
      %v2208 = vpop.f32.mrf.mxu0
      %v2209 = vpop.f32.mrf.mxu0
      %v2210 = vadd.f32 0.0, %v2209
      %v2211 = vpop.f32.mrf.mxu0
      %2212 = vmatprep.mubr.bf16.mxu0 0
      %2213 = vmatmul.mubr.bf16.gmra.mxu0 %v1417
      %v2214 = vpop.f32.mrf.mxu0
      %v2215 = vadd.f32 0.0, %v2214
      %v2216 = vpop.f32.mrf.mxu0
      %v2217 = vpop.f32.mrf.mxu0
      %v2218 = vadd.f32 0.0, %v2217
      %v2219 = vpop.f32.mrf.mxu0
      %2220 = vmatprep.mubr.bf16.mxu0 0
      %2221 = vmatmul.mubr.bf16.gmra.mxu0 %v2063
      %v2222 = vpop.f32.mrf.mxu0
      %v2223 = vadd.f32 0.0, %v2222
      %v2224 = vpop.f32.mrf.mxu0
      %v2225 = vpop.f32.mrf.mxu0
      %v2226 = vadd.f32 0.0, %v2225
      %v2227 = vpop.f32.mrf.mxu0
      %2228 = vdwg.mxu0
      %v2229 = vadd.f32 %v2017, %v2103
      %v2230 = vadd.f32 %v2018, %v2106
      %v2231 = vadd.f32 %v2019, %v2111
      %v2232 = vadd.f32 %v2020, %v2114
      %v2233 = vadd.f32 %v2021, %v2119
      %v2234 = vadd.f32 %v2022, %v2122
      %v2235 = vadd.f32 %v2023, %v2127
      %v2236 = vadd.f32 %v2024, %v2130
      %v2237 = vadd.f32 %v2025, %v2135
      %v2238 = vadd.f32 %v2026, %v2138
      %v2239 = vadd.f32 %v2027, %v2143
      %v2240 = vadd.f32 %v2028, %v2146
      %v2241 = vadd.f32 %v2029, %v2151
      %v2242 = vadd.f32 %v2030, %v2154
      %v2243 = vadd.f32 %v2031, %v2159
      %v2244 = vadd.f32 %v2032, %v2162
      %v2245 = vadd.f32 %v2033, %v2167
      %v2246 = vadd.f32 %v2034, %v2170
      %v2247 = vadd.f32 %v2035, %v2175
      %v2248 = vadd.f32 %v2036, %v2178
      %v2249 = vadd.f32 %v2037, %v2183
      %v2250 = vadd.f32 %v2038, %v2186
      %v2251 = vadd.f32 %v2039, %v2191
      %v2252 = vadd.f32 %v2040, %v2194
      %v2253 = vadd.f32 %v2041, %v2199
      %v2254 = vadd.f32 %v2042, %v2202
      %v2255 = vadd.f32 %v2043, %v2207
      %v2256 = vadd.f32 %v2044, %v2210
      %v2257 = vadd.f32 %v2045, %v2215
      %v2258 = vadd.f32 %v2046, %v2218
      %v2259 = vadd.f32 %v2047, %v2223
      %v2260 = vadd.f32 %v2048, %v2226
      %s2261 = scalar_lea.vmem %s1, 12
      %v2262 = vld [vmem:[%s2261] sm:$0x3]
      %v2265 = vunpack.c.l.b16 %v243
      %v2266 = vunpack.c.l.b16 %v244
      %v2267 = vpack.c.b16 %v2266, %v2265
      %v2269 = vsel %vm684, %v2267, 0
      %v2272 = vsel %vm733, %v2262, 0
      %2274 = vmatprep.subr.bf16.mxu0 0
      %2275 = vmatpush1.bf16.msra.mxu0 0
      %2276 = vmatprep.subr.bf16.mxu0 0
      %2277 = vmatpush1.bf16.msra.mxu0 0
      %2278 = vmatprep.subr.bf16.mxu0 0
      %2279 = vmatpush1.bf16.msra.mxu0 0
      %2280 = vmatprep.subr.bf16.mxu0 0
      %2281 = vmatpush1.bf16.msra.mxu0 0
      %2282 = vmatprep.subr.bf16.mxu0 0
      %2283 = vmatpush1.bf16.msra.mxu0 0
      %2284 = vmatprep.subr.bf16.mxu0 0
      %2285 = vmatpush1.bf16.msra.mxu0 0
      %2286 = vmatprep.subr.bf16.mxu0 0
      %2287 = vmatpush1.bf16.msra.mxu0 0
      %2288 = vmatprep.subr.bf16.mxu0 0
      %2289 = vmatpush1.bf16.msra.mxu0 %v2272
      %2290 = vmatprep.subr.bf16.mxu0 0
      %2291 = vmatpush2.bf16.msra.mxu0 0
      %2292 = vmatprep.subr.bf16.mxu0 0
      %2293 = vmatpush2.bf16.msra.mxu0 0
      %2294 = vmatprep.subr.bf16.mxu0 0
      %2295 = vmatpush2.bf16.msra.mxu0 0
      %2296 = vmatprep.subr.bf16.mxu0 0
      %2297 = vmatpush2.bf16.msra.mxu0 0
      %2298 = vmatprep.subr.bf16.mxu0 0
      %2299 = vmatpush2.bf16.msra.mxu0 0
      %2300 = vmatprep.subr.bf16.mxu0 0
      %2301 = vmatpush2.bf16.msra.mxu0 0
      %2302 = vmatprep.subr.bf16.mxu0 0
      %2303 = vmatpush2.bf16.msra.mxu0 0
      %2304 = vmatprep.subr.bf16.mxu0 0
      %2305 = vmatpush2.bf16.msra.mxu0 0
      %2306 = vmatprep.mubr.bf16.mxu0 0
      %2307 = vmatmul.mubr.bf16.gmra.mxu0 %v985
      %v2308 = vpop.f32.mrf.mxu0
      %v2309 = vadd.f32 0.0, %v2308
      %v2310 = vpop.f32.mrf.mxu0
      %v2311 = vpop.f32.mrf.mxu0
      %v2312 = vadd.f32 0.0, %v2311
      %v2313 = vpop.f32.mrf.mxu0
      %2314 = vmatprep.mubr.bf16.mxu0 0
      %2315 = vmatmul.mubr.bf16.gmra.mxu0 %v988
      %v2316 = vpop.f32.mrf.mxu0
      %v2317 = vadd.f32 0.0, %v2316
      %v2318 = vpop.f32.mrf.mxu0
      %v2319 = vpop.f32.mrf.mxu0
      %v2320 = vadd.f32 0.0, %v2319
      %v2321 = vpop.f32.mrf.mxu0
      %2322 = vmatprep.mubr.bf16.mxu0 0
      %2323 = vmatmul.mubr.bf16.gmra.mxu0 %v991
      %v2324 = vpop.f32.mrf.mxu0
      %v2325 = vadd.f32 0.0, %v2324
      %v2326 = vpop.f32.mrf.mxu0
      %v2327 = vpop.f32.mrf.mxu0
      %v2328 = vadd.f32 0.0, %v2327
      %v2329 = vpop.f32.mrf.mxu0
      %2330 = vmatprep.mubr.bf16.mxu0 0
      %2331 = vmatmul.mubr.bf16.gmra.mxu0 %v994
      %v2332 = vpop.f32.mrf.mxu0
      %v2333 = vadd.f32 0.0, %v2332
      %v2334 = vpop.f32.mrf.mxu0
      %v2335 = vpop.f32.mrf.mxu0
      %v2336 = vadd.f32 0.0, %v2335
      %v2337 = vpop.f32.mrf.mxu0
      %2338 = vmatprep.mubr.bf16.mxu0 0
      %2339 = vmatmul.mubr.bf16.gmra.mxu0 %v997
      %v2340 = vpop.f32.mrf.mxu0
      %v2341 = vadd.f32 0.0, %v2340
      %v2342 = vpop.f32.mrf.mxu0
      %v2343 = vpop.f32.mrf.mxu0
      %v2344 = vadd.f32 0.0, %v2343
      %v2345 = vpop.f32.mrf.mxu0
      %2346 = vmatprep.mubr.bf16.mxu0 0
      %2347 = vmatmul.mubr.bf16.gmra.mxu0 %v1000
      %v2348 = vpop.f32.mrf.mxu0
      %v2349 = vadd.f32 0.0, %v2348
      %v2350 = vpop.f32.mrf.mxu0
      %v2351 = vpop.f32.mrf.mxu0
      %v2352 = vadd.f32 0.0, %v2351
      %v2353 = vpop.f32.mrf.mxu0
      %2354 = vmatprep.mubr.bf16.mxu0 0
      %2355 = vmatmul.mubr.bf16.gmra.mxu0 %v1003
      %v2356 = vpop.f32.mrf.mxu0
      %v2357 = vadd.f32 0.0, %v2356
      %v2358 = vpop.f32.mrf.mxu0
      %v2359 = vpop.f32.mrf.mxu0
      %v2360 = vadd.f32 0.0, %v2359
      %v2361 = vpop.f32.mrf.mxu0
      %2362 = vmatprep.mubr.bf16.mxu0 0
      %2363 = vmatmul.mubr.bf16.gmra.mxu0 %v1006
      %v2364 = vpop.f32.mrf.mxu0
      %v2365 = vadd.f32 0.0, %v2364
      %v2366 = vpop.f32.mrf.mxu0
      %v2367 = vpop.f32.mrf.mxu0
      %v2368 = vadd.f32 0.0, %v2367
      %v2369 = vpop.f32.mrf.mxu0
      %2370 = vmatprep.mubr.bf16.mxu0 0
      %2371 = vmatmul.mubr.bf16.gmra.mxu0 %v1009
      %v2372 = vpop.f32.mrf.mxu0
      %v2373 = vadd.f32 0.0, %v2372
      %v2374 = vpop.f32.mrf.mxu0
      %v2375 = vpop.f32.mrf.mxu0
      %v2376 = vadd.f32 0.0, %v2375
      %v2377 = vpop.f32.mrf.mxu0
      %2378 = vmatprep.mubr.bf16.mxu0 0
      %2379 = vmatmul.mubr.bf16.gmra.mxu0 %v1012
      %v2380 = vpop.f32.mrf.mxu0
      %v2381 = vadd.f32 0.0, %v2380
      %v2382 = vpop.f32.mrf.mxu0
      %v2383 = vpop.f32.mrf.mxu0
      %v2384 = vadd.f32 0.0, %v2383
      %v2385 = vpop.f32.mrf.mxu0
      %2386 = vmatprep.mubr.bf16.mxu0 0
      %2387 = vmatmul.mubr.bf16.gmra.mxu0 %v1015
      %v2388 = vpop.f32.mrf.mxu0
      %v2389 = vadd.f32 0.0, %v2388
      %v2390 = vpop.f32.mrf.mxu0
      %v2391 = vpop.f32.mrf.mxu0
      %v2392 = vadd.f32 0.0, %v2391
      %v2393 = vpop.f32.mrf.mxu0
      %2394 = vmatprep.mubr.bf16.mxu0 0
      %2395 = vmatmul.mubr.bf16.gmra.mxu0 %v1018
      %v2396 = vpop.f32.mrf.mxu0
      %v2397 = vadd.f32 0.0, %v2396
      %v2398 = vpop.f32.mrf.mxu0
      %v2399 = vpop.f32.mrf.mxu0
      %v2400 = vadd.f32 0.0, %v2399
      %v2401 = vpop.f32.mrf.mxu0
      %2402 = vmatprep.mubr.bf16.mxu0 0
      %2403 = vmatmul.mubr.bf16.gmra.mxu0 %v1021
      %v2404 = vpop.f32.mrf.mxu0
      %v2405 = vadd.f32 0.0, %v2404
      %v2406 = vpop.f32.mrf.mxu0
      %v2407 = vpop.f32.mrf.mxu0
      %v2408 = vadd.f32 0.0, %v2407
      %v2409 = vpop.f32.mrf.mxu0
      %2410 = vmatprep.mubr.bf16.mxu0 0
      %2411 = vmatmul.mubr.bf16.gmra.mxu0 %v1024
      %v2412 = vpop.f32.mrf.mxu0
      %v2413 = vadd.f32 0.0, %v2412
      %v2414 = vpop.f32.mrf.mxu0
      %v2415 = vpop.f32.mrf.mxu0
      %v2416 = vadd.f32 0.0, %v2415
      %v2417 = vpop.f32.mrf.mxu0
      %2418 = vmatprep.mubr.bf16.mxu0 0
      %2419 = vmatmul.mubr.bf16.gmra.mxu0 %v1623
      %v2420 = vpop.f32.mrf.mxu0
      %v2421 = vadd.f32 0.0, %v2420
      %v2422 = vpop.f32.mrf.mxu0
      %v2423 = vpop.f32.mrf.mxu0
      %v2424 = vadd.f32 0.0, %v2423
      %v2425 = vpop.f32.mrf.mxu0
      %2426 = vmatprep.mubr.bf16.mxu0 0
      %2427 = vmatmul.mubr.bf16.gmra.mxu0 %v2269
      %v2428 = vpop.f32.mrf.mxu0
      %v2429 = vadd.f32 0.0, %v2428
      %v2430 = vpop.f32.mrf.mxu0
      %v2431 = vpop.f32.mrf.mxu0
      %v2432 = vadd.f32 0.0, %v2431
      %v2433 = vpop.f32.mrf.mxu0
      %2434 = vdwg.mxu0
      %v2435 = vadd.f32 %v2229, %v2309
      %v2436 = vadd.f32 %v2230, %v2312
      %v2437 = vadd.f32 %v2231, %v2317
      %v2438 = vadd.f32 %v2232, %v2320
      %v2439 = vadd.f32 %v2233, %v2325
      %v2440 = vadd.f32 %v2234, %v2328
      %v2441 = vadd.f32 %v2235, %v2333
      %v2442 = vadd.f32 %v2236, %v2336
      %v2443 = vadd.f32 %v2237, %v2341
      %v2444 = vadd.f32 %v2238, %v2344
      %v2445 = vadd.f32 %v2239, %v2349
      %v2446 = vadd.f32 %v2240, %v2352
      %v2447 = vadd.f32 %v2241, %v2357
      %v2448 = vadd.f32 %v2242, %v2360
      %v2449 = vadd.f32 %v2243, %v2365
      %v2450 = vadd.f32 %v2244, %v2368
      %v2451 = vadd.f32 %v2245, %v2373
      %v2452 = vadd.f32 %v2246, %v2376
      %v2453 = vadd.f32 %v2247, %v2381
      %v2454 = vadd.f32 %v2248, %v2384
      %v2455 = vadd.f32 %v2249, %v2389
      %v2456 = vadd.f32 %v2250, %v2392
      %v2457 = vadd.f32 %v2251, %v2397
      %v2458 = vadd.f32 %v2252, %v2400
      %v2459 = vadd.f32 %v2253, %v2405
      %v2460 = vadd.f32 %v2254, %v2408
      %v2461 = vadd.f32 %v2255, %v2413
      %v2462 = vadd.f32 %v2256, %v2416
      %v2463 = vadd.f32 %v2257, %v2421
      %v2464 = vadd.f32 %v2258, %v2424
      %v2465 = vadd.f32 %v2259, %v2429
      %v2466 = vadd.f32 %v2260, %v2432
      %v2468 = vshrl.u32 %v243, 16
      %v2470 = vrot.slane %v2468, 4
      %v2471 = vshll.u32 %v243, 16
      %v2473 = vrot.slane %v2471, 5
      %v2474 = vor.u32 %v2470, %v2473
      %v2475 = vrot.slane %v2474, 4
      %v2477 = vshll.u32 %v244, 16
      %v2479 = vrot.slane %v2477, 5
      %v2480 = vsel %vm249, %v2475, %v2479
      %v2481 = vshrl.u32 %v244, 16
      %v2483 = vrot.slane %v2481, 4
      %v2484 = vor.u32 %v2483, %v2479
      %v2485 = vrot.slane %v2484, 4
      %v2487 = vshll.u32 %v245, 16
      %v2489 = vrot.slane %v2487, 5
      %v2490 = vsel %vm249, %v2485, %v2489
      %s2491 = scalar_lea.vmem %s1, 14
      %v2492 = vld [vmem:[%s2491] sm:$0x3]
      %v2493 = vunpack.c.l.b16 %v2480
      %v2494 = vunpack.c.l.b16 %v2490
      %v2495 = vpack.c.b16 %v2494, %v2493
      %v2497 = vsel %vm684, %v2495, 0
      %v2500 = vsel %vm733, %v2492, 0
      %2502 = vmatprep.subr.bf16.mxu0 0
      %2503 = vmatpush1.bf16.msra.mxu0 0
      %2504 = vmatprep.subr.bf16.mxu0 0
      %2505 = vmatpush1.bf16.msra.mxu0 0
      %2506 = vmatprep.subr.bf16.mxu0 0
      %2507 = vmatpush1.bf16.msra.mxu0 0
      %2508 = vmatprep.subr.bf16.mxu0 0
      %2509 = vmatpush1.bf16.msra.mxu0 0
      %2510 = vmatprep.subr.bf16.mxu0 0
      %2511 = vmatpush1.bf16.msra.mxu0 0
      %2512 = vmatprep.subr.bf16.mxu0 0
      %2513 = vmatpush1.bf16.msra.mxu0 0
      %2514 = vmatprep.subr.bf16.mxu0 0
      %2515 = vmatpush1.bf16.msra.mxu0 0
      %2516 = vmatprep.subr.bf16.mxu0 0
      %2517 = vmatpush1.bf16.msra.mxu0 %v2500
      %2518 = vmatprep.subr.bf16.mxu0 0
      %2519 = vmatpush2.bf16.msra.mxu0 0
      %2520 = vmatprep.subr.bf16.mxu0 0
      %2521 = vmatpush2.bf16.msra.mxu0 0
      %2522 = vmatprep.subr.bf16.mxu0 0
      %2523 = vmatpush2.bf16.msra.mxu0 0
      %2524 = vmatprep.subr.bf16.mxu0 0
      %2525 = vmatpush2.bf16.msra.mxu0 0
      %2526 = vmatprep.subr.bf16.mxu0 0
      %2527 = vmatpush2.bf16.msra.mxu0 0
      %2528 = vmatprep.subr.bf16.mxu0 0
      %2529 = vmatpush2.bf16.msra.mxu0 0
      %2530 = vmatprep.subr.bf16.mxu0 0
      %2531 = vmatpush2.bf16.msra.mxu0 0
      %2532 = vmatprep.subr.bf16.mxu0 0
      %2533 = vmatpush2.bf16.msra.mxu0 0
      %2534 = vmatprep.mubr.bf16.mxu0 0
      %2535 = vmatmul.mubr.bf16.gmra.mxu0 %v692
      %v2536 = vpop.f32.mrf.mxu0
      %v2537 = vadd.f32 0.0, %v2536
      %v2538 = vpop.f32.mrf.mxu0
      %v2539 = vpop.f32.mrf.mxu0
      %v2540 = vadd.f32 0.0, %v2539
      %v2541 = vpop.f32.mrf.mxu0
      %2542 = vmatprep.mubr.bf16.mxu0 0
      %2543 = vmatmul.mubr.bf16.gmra.mxu0 %v695
      %v2544 = vpop.f32.mrf.mxu0
      %v2545 = vadd.f32 0.0, %v2544
      %v2546 = vpop.f32.mrf.mxu0
      %v2547 = vpop.f32.mrf.mxu0
      %v2548 = vadd.f32 0.0, %v2547
      %v2549 = vpop.f32.mrf.mxu0
      %2550 = vmatprep.mubr.bf16.mxu0 0
      %2551 = vmatmul.mubr.bf16.gmra.mxu0 %v698
      %v2552 = vpop.f32.mrf.mxu0
      %v2553 = vadd.f32 0.0, %v2552
      %v2554 = vpop.f32.mrf.mxu0
      %v2555 = vpop.f32.mrf.mxu0
      %v2556 = vadd.f32 0.0, %v2555
      %v2557 = vpop.f32.mrf.mxu0
      %2558 = vmatprep.mubr.bf16.mxu0 0
      %2559 = vmatmul.mubr.bf16.gmra.mxu0 %v701
      %v2560 = vpop.f32.mrf.mxu0
      %v2561 = vadd.f32 0.0, %v2560
      %v2562 = vpop.f32.mrf.mxu0
      %v2563 = vpop.f32.mrf.mxu0
      %v2564 = vadd.f32 0.0, %v2563
      %v2565 = vpop.f32.mrf.mxu0
      %2566 = vmatprep.mubr.bf16.mxu0 0
      %2567 = vmatmul.mubr.bf16.gmra.mxu0 %v704
      %v2568 = vpop.f32.mrf.mxu0
      %v2569 = vadd.f32 0.0, %v2568
      %v2570 = vpop.f32.mrf.mxu0
      %v2571 = vpop.f32.mrf.mxu0
      %v2572 = vadd.f32 0.0, %v2571
      %v2573 = vpop.f32.mrf.mxu0
      %2574 = vmatprep.mubr.bf16.mxu0 0
      %2575 = vmatmul.mubr.bf16.gmra.mxu0 %v707
      %v2576 = vpop.f32.mrf.mxu0
      %v2577 = vadd.f32 0.0, %v2576
      %v2578 = vpop.f32.mrf.mxu0
      %v2579 = vpop.f32.mrf.mxu0
      %v2580 = vadd.f32 0.0, %v2579
      %v2581 = vpop.f32.mrf.mxu0
      %2582 = vmatprep.mubr.bf16.mxu0 0
      %2583 = vmatmul.mubr.bf16.gmra.mxu0 %v710
      %v2584 = vpop.f32.mrf.mxu0
      %v2585 = vadd.f32 0.0, %v2584
      %v2586 = vpop.f32.mrf.mxu0
      %v2587 = vpop.f32.mrf.mxu0
      %v2588 = vadd.f32 0.0, %v2587
      %v2589 = vpop.f32.mrf.mxu0
      %2590 = vmatprep.mubr.bf16.mxu0 0
      %2591 = vmatmul.mubr.bf16.gmra.mxu0 %v713
      %v2592 = vpop.f32.mrf.mxu0
      %v2593 = vadd.f32 0.0, %v2592
      %v2594 = vpop.f32.mrf.mxu0
      %v2595 = vpop.f32.mrf.mxu0
      %v2596 = vadd.f32 0.0, %v2595
      %v2597 = vpop.f32.mrf.mxu0
      %2598 = vmatprep.mubr.bf16.mxu0 0
      %2599 = vmatmul.mubr.bf16.gmra.mxu0 %v716
      %v2600 = vpop.f32.mrf.mxu0
      %v2601 = vadd.f32 0.0, %v2600
      %v2602 = vpop.f32.mrf.mxu0
      %v2603 = vpop.f32.mrf.mxu0
      %v2604 = vadd.f32 0.0, %v2603
      %v2605 = vpop.f32.mrf.mxu0
      %2606 = vmatprep.mubr.bf16.mxu0 0
      %2607 = vmatmul.mubr.bf16.gmra.mxu0 %v719
      %v2608 = vpop.f32.mrf.mxu0
      %v2609 = vadd.f32 0.0, %v2608
      %v2610 = vpop.f32.mrf.mxu0
      %v2611 = vpop.f32.mrf.mxu0
      %v2612 = vadd.f32 0.0, %v2611
      %v2613 = vpop.f32.mrf.mxu0
      %2614 = vmatprep.mubr.bf16.mxu0 0
      %2615 = vmatmul.mubr.bf16.gmra.mxu0 %v722
      %v2616 = vpop.f32.mrf.mxu0
      %v2617 = vadd.f32 0.0, %v2616
      %v2618 = vpop.f32.mrf.mxu0
      %v2619 = vpop.f32.mrf.mxu0
      %v2620 = vadd.f32 0.0, %v2619
      %v2621 = vpop.f32.mrf.mxu0
      %2622 = vmatprep.mubr.bf16.mxu0 0
      %2623 = vmatmul.mubr.bf16.gmra.mxu0 %v725
      %v2624 = vpop.f32.mrf.mxu0
      %v2625 = vadd.f32 0.0, %v2624
      %v2626 = vpop.f32.mrf.mxu0
      %v2627 = vpop.f32.mrf.mxu0
      %v2628 = vadd.f32 0.0, %v2627
      %v2629 = vpop.f32.mrf.mxu0
      %2630 = vmatprep.mubr.bf16.mxu0 0
      %2631 = vmatmul.mubr.bf16.gmra.mxu0 %v728
      %v2632 = vpop.f32.mrf.mxu0
      %v2633 = vadd.f32 0.0, %v2632
      %v2634 = vpop.f32.mrf.mxu0
      %v2635 = vpop.f32.mrf.mxu0
      %v2636 = vadd.f32 0.0, %v2635
      %v2637 = vpop.f32.mrf.mxu0
      %2638 = vmatprep.mubr.bf16.mxu0 0
      %2639 = vmatmul.mubr.bf16.gmra.mxu0 %v731
      %v2640 = vpop.f32.mrf.mxu0
      %v2641 = vadd.f32 0.0, %v2640
      %v2642 = vpop.f32.mrf.mxu0
      %v2643 = vpop.f32.mrf.mxu0
      %v2644 = vadd.f32 0.0, %v2643
      %v2645 = vpop.f32.mrf.mxu0
      %2646 = vmatprep.mubr.bf16.mxu0 0
      %2647 = vmatmul.mubr.bf16.gmra.mxu0 %v1851
      %v2648 = vpop.f32.mrf.mxu0
      %v2649 = vadd.f32 0.0, %v2648
      %v2650 = vpop.f32.mrf.mxu0
      %v2651 = vpop.f32.mrf.mxu0
      %v2652 = vadd.f32 0.0, %v2651
      %v2653 = vpop.f32.mrf.mxu0
      %2654 = vmatprep.mubr.bf16.mxu0 0
      %2655 = vmatmul.mubr.bf16.gmra.mxu0 %v2497
      %v2656 = vpop.f32.mrf.mxu0
      %v2657 = vadd.f32 0.0, %v2656
      %v2658 = vpop.f32.mrf.mxu0
      %v2659 = vpop.f32.mrf.mxu0
      %v2660 = vadd.f32 0.0, %v2659
      %v2661 = vpop.f32.mrf.mxu0
      %2662 = vdwg.mxu0
      %v2663 = vadd.f32 %v2435, %v2537
      %v2664 = vadd.f32 %v2436, %v2540
      %v2665 = vadd.f32 %v2437, %v2545
      %v2666 = vadd.f32 %v2438, %v2548
      %v2667 = vadd.f32 %v2439, %v2553
      %v2668 = vadd.f32 %v2440, %v2556
      %v2669 = vadd.f32 %v2441, %v2561
      %v2670 = vadd.f32 %v2442, %v2564
      %v2671 = vadd.f32 %v2443, %v2569
      %v2672 = vadd.f32 %v2444, %v2572
      %v2673 = vadd.f32 %v2445, %v2577
      %v2674 = vadd.f32 %v2446, %v2580
      %v2675 = vadd.f32 %v2447, %v2585
      %v2676 = vadd.f32 %v2448, %v2588
      %v2677 = vadd.f32 %v2449, %v2593
      %v2678 = vadd.f32 %v2450, %v2596
      %v2679 = vadd.f32 %v2451, %v2601
      %v2680 = vadd.f32 %v2452, %v2604
      %v2681 = vadd.f32 %v2453, %v2609
      %v2682 = vadd.f32 %v2454, %v2612
      %v2683 = vadd.f32 %v2455, %v2617
      %v2684 = vadd.f32 %v2456, %v2620
      %v2685 = vadd.f32 %v2457, %v2625
      %v2686 = vadd.f32 %v2458, %v2628
      %v2687 = vadd.f32 %v2459, %v2633
      %v2688 = vadd.f32 %v2460, %v2636
      %v2689 = vadd.f32 %v2461, %v2641
      %v2690 = vadd.f32 %v2462, %v2644
      %v2691 = vadd.f32 %v2463, %v2649
      %v2692 = vadd.f32 %v2464, %v2652
      %v2693 = vadd.f32 %v2465, %v2657
      %v2694 = vadd.f32 %v2466, %v2660
      %v2696 = vrot.slane %v243, 5
      %v2697 = vrot.slane %v2696, 4
      %v2698 = vrot.slane %v244, 5
      %v2699 = vsel %vm1208, %v2697, %v2698
      %v2700 = vrot.slane %v2698, 4
      %v2701 = vrot.slane %v245, 5
      %v2702 = vsel %vm1208, %v2700, %v2701
      %s2703 = scalar_lea.vmem %s1, 16
      %v2704 = vld [vmem:[%s2703] sm:$0x3]
      %v2705 = vunpack.c.l.b16 %v2699
      %v2706 = vunpack.c.l.b16 %v2702
      %v2707 = vpack.c.b16 %v2706, %v2705
      %v2709 = vsel %vm684, %v2707, 0
      %v2712 = vsel %vm733, %v2704, 0
      %2714 = vmatprep.subr.bf16.mxu0 0
      %2715 = vmatpush1.bf16.msra.mxu0 0
      %2716 = vmatprep.subr.bf16.mxu0 0
      %2717 = vmatpush1.bf16.msra.mxu0 0
      %2718 = vmatprep.subr.bf16.mxu0 0
      %2719 = vmatpush1.bf16.msra.mxu0 0
      %2720 = vmatprep.subr.bf16.mxu0 0
      %2721 = vmatpush1.bf16.msra.mxu0 0
      %2722 = vmatprep.subr.bf16.mxu0 0
      %2723 = vmatpush1.bf16.msra.mxu0 0
      %2724 = vmatprep.subr.bf16.mxu0 0
      %2725 = vmatpush1.bf16.msra.mxu0 0
      %2726 = vmatprep.subr.bf16.mxu0 0
      %2727 = vmatpush1.bf16.msra.mxu0 0
      %2728 = vmatprep.subr.bf16.mxu0 0
      %2729 = vmatpush1.bf16.msra.mxu0 %v2712
      %2730 = vmatprep.subr.bf16.mxu0 0
      %2731 = vmatpush2.bf16.msra.mxu0 0
      %2732 = vmatprep.subr.bf16.mxu0 0
      %2733 = vmatpush2.bf16.msra.mxu0 0
      %2734 = vmatprep.subr.bf16.mxu0 0
      %2735 = vmatpush2.bf16.msra.mxu0 0
      %2736 = vmatprep.subr.bf16.mxu0 0
      %2737 = vmatpush2.bf16.msra.mxu0 0
      %2738 = vmatprep.subr.bf16.mxu0 0
      %2739 = vmatpush2.bf16.msra.mxu0 0
      %2740 = vmatprep.subr.bf16.mxu0 0
      %2741 = vmatpush2.bf16.msra.mxu0 0
      %2742 = vmatprep.subr.bf16.mxu0 0
      %2743 = vmatpush2.bf16.msra.mxu0 0
      %2744 = vmatprep.subr.bf16.mxu0 0
      %2745 = vmatpush2.bf16.msra.mxu0 0
      %2746 = vmatprep.mubr.bf16.mxu0 0
      %2747 = vmatmul.mubr.bf16.gmra.mxu0 %v1378
      %v2748 = vpop.f32.mrf.mxu0
      %v2749 = vadd.f32 0.0, %v2748
      %v2750 = vpop.f32.mrf.mxu0
      %v2751 = vpop.f32.mrf.mxu0
      %v2752 = vadd.f32 0.0, %v2751
      %v2753 = vpop.f32.mrf.mxu0
      %2754 = vmatprep.mubr.bf16.mxu0 0
      %2755 = vmatmul.mubr.bf16.gmra.mxu0 %v1381
      %v2756 = vpop.f32.mrf.mxu0
      %v2757 = vadd.f32 0.0, %v2756
      %v2758 = vpop.f32.mrf.mxu0
      %v2759 = vpop.f32.mrf.mxu0
      %v2760 = vadd.f32 0.0, %v2759
      %v2761 = vpop.f32.mrf.mxu0
      %2762 = vmatprep.mubr.bf16.mxu0 0
      %2763 = vmatmul.mubr.bf16.gmra.mxu0 %v1384
      %v2764 = vpop.f32.mrf.mxu0
      %v2765 = vadd.f32 0.0, %v2764
      %v2766 = vpop.f32.mrf.mxu0
      %v2767 = vpop.f32.mrf.mxu0
      %v2768 = vadd.f32 0.0, %v2767
      %v2769 = vpop.f32.mrf.mxu0
      %2770 = vmatprep.mubr.bf16.mxu0 0
      %2771 = vmatmul.mubr.bf16.gmra.mxu0 %v1387
      %v2772 = vpop.f32.mrf.mxu0
      %v2773 = vadd.f32 0.0, %v2772
      %v2774 = vpop.f32.mrf.mxu0
      %v2775 = vpop.f32.mrf.mxu0
      %v2776 = vadd.f32 0.0, %v2775
      %v2777 = vpop.f32.mrf.mxu0
      %2778 = vmatprep.mubr.bf16.mxu0 0
      %2779 = vmatmul.mubr.bf16.gmra.mxu0 %v1390
      %v2780 = vpop.f32.mrf.mxu0
      %v2781 = vadd.f32 0.0, %v2780
      %v2782 = vpop.f32.mrf.mxu0
      %v2783 = vpop.f32.mrf.mxu0
      %v2784 = vadd.f32 0.0, %v2783
      %v2785 = vpop.f32.mrf.mxu0
      %2786 = vmatprep.mubr.bf16.mxu0 0
      %2787 = vmatmul.mubr.bf16.gmra.mxu0 %v1393
      %v2788 = vpop.f32.mrf.mxu0
      %v2789 = vadd.f32 0.0, %v2788
      %v2790 = vpop.f32.mrf.mxu0
      %v2791 = vpop.f32.mrf.mxu0
      %v2792 = vadd.f32 0.0, %v2791
      %v2793 = vpop.f32.mrf.mxu0
      %2794 = vmatprep.mubr.bf16.mxu0 0
      %2795 = vmatmul.mubr.bf16.gmra.mxu0 %v1396
      %v2796 = vpop.f32.mrf.mxu0
      %v2797 = vadd.f32 0.0, %v2796
      %v2798 = vpop.f32.mrf.mxu0
      %v2799 = vpop.f32.mrf.mxu0
      %v2800 = vadd.f32 0.0, %v2799
      %v2801 = vpop.f32.mrf.mxu0
      %2802 = vmatprep.mubr.bf16.mxu0 0
      %2803 = vmatmul.mubr.bf16.gmra.mxu0 %v1399
      %v2804 = vpop.f32.mrf.mxu0
      %v2805 = vadd.f32 0.0, %v2804
      %v2806 = vpop.f32.mrf.mxu0
      %v2807 = vpop.f32.mrf.mxu0
      %v2808 = vadd.f32 0.0, %v2807
      %v2809 = vpop.f32.mrf.mxu0
      %2810 = vmatprep.mubr.bf16.mxu0 0
      %2811 = vmatmul.mubr.bf16.gmra.mxu0 %v1402
      %v2812 = vpop.f32.mrf.mxu0
      %v2813 = vadd.f32 0.0, %v2812
      %v2814 = vpop.f32.mrf.mxu0
      %v2815 = vpop.f32.mrf.mxu0
      %v2816 = vadd.f32 0.0, %v2815
      %v2817 = vpop.f32.mrf.mxu0
      %2818 = vmatprep.mubr.bf16.mxu0 0
      %2819 = vmatmul.mubr.bf16.gmra.mxu0 %v1405
      %v2820 = vpop.f32.mrf.mxu0
      %v2821 = vadd.f32 0.0, %v2820
      %v2822 = vpop.f32.mrf.mxu0
      %v2823 = vpop.f32.mrf.mxu0
      %v2824 = vadd.f32 0.0, %v2823
      %v2825 = vpop.f32.mrf.mxu0
      %2826 = vmatprep.mubr.bf16.mxu0 0
      %2827 = vmatmul.mubr.bf16.gmra.mxu0 %v1408
      %v2828 = vpop.f32.mrf.mxu0
      %v2829 = vadd.f32 0.0, %v2828
      %v2830 = vpop.f32.mrf.mxu0
      %v2831 = vpop.f32.mrf.mxu0
      %v2832 = vadd.f32 0.0, %v2831
      %v2833 = vpop.f32.mrf.mxu0
      %2834 = vmatprep.mubr.bf16.mxu0 0
      %2835 = vmatmul.mubr.bf16.gmra.mxu0 %v1411
      %v2836 = vpop.f32.mrf.mxu0
      %v2837 = vadd.f32 0.0, %v2836
      %v2838 = vpop.f32.mrf.mxu0
      %v2839 = vpop.f32.mrf.mxu0
      %v2840 = vadd.f32 0.0, %v2839
      %v2841 = vpop.f32.mrf.mxu0
      %2842 = vmatprep.mubr.bf16.mxu0 0
      %2843 = vmatmul.mubr.bf16.gmra.mxu0 %v1414
      %v2844 = vpop.f32.mrf.mxu0
      %v2845 = vadd.f32 0.0, %v2844
      %v2846 = vpop.f32.mrf.mxu0
      %v2847 = vpop.f32.mrf.mxu0
      %v2848 = vadd.f32 0.0, %v2847
      %v2849 = vpop.f32.mrf.mxu0
      %2850 = vmatprep.mubr.bf16.mxu0 0
      %2851 = vmatmul.mubr.bf16.gmra.mxu0 %v1417
      %v2852 = vpop.f32.mrf.mxu0
      %v2853 = vadd.f32 0.0, %v2852
      %v2854 = vpop.f32.mrf.mxu0
      %v2855 = vpop.f32.mrf.mxu0
      %v2856 = vadd.f32 0.0, %v2855
      %v2857 = vpop.f32.mrf.mxu0
      %2858 = vmatprep.mubr.bf16.mxu0 0
      %2859 = vmatmul.mubr.bf16.gmra.mxu0 %v2063
      %v2860 = vpop.f32.mrf.mxu0
      %v2861 = vadd.f32 0.0, %v2860
      %v2862 = vpop.f32.mrf.mxu0
      %v2863 = vpop.f32.mrf.mxu0
      %v2864 = vadd.f32 0.0, %v2863
      %v2865 = vpop.f32.mrf.mxu0
      %2866 = vmatprep.mubr.bf16.mxu0 0
      %2867 = vmatmul.mubr.bf16.gmra.mxu0 %v2709
      %v2868 = vpop.f32.mrf.mxu0
      %v2869 = vadd.f32 0.0, %v2868
      %v2870 = vpop.f32.mrf.mxu0
      %v2871 = vpop.f32.mrf.mxu0
      %v2872 = vadd.f32 0.0, %v2871
      %v2873 = vpop.f32.mrf.mxu0
      %2874 = vdwg.mxu0
      %v2875 = vadd.f32 %v2663, %v2749
      %v2876 = vadd.f32 %v2664, %v2752
      %v2877 = vadd.f32 %v2665, %v2757
      %v2878 = vadd.f32 %v2666, %v2760
      %v2879 = vadd.f32 %v2667, %v2765
      %v2880 = vadd.f32 %v2668, %v2768
      %v2881 = vadd.f32 %v2669, %v2773
      %v2882 = vadd.f32 %v2670, %v2776
      %v2883 = vadd.f32 %v2671, %v2781
      %v2884 = vadd.f32 %v2672, %v2784
      %v2885 = vadd.f32 %v2673, %v2789
      %v2886 = vadd.f32 %v2674, %v2792
      %v2887 = vadd.f32 %v2675, %v2797
      %v2888 = vadd.f32 %v2676, %v2800
      %v2889 = vadd.f32 %v2677, %v2805
      %v2890 = vadd.f32 %v2678, %v2808
      %v2891 = vadd.f32 %v2679, %v2813
      %v2892 = vadd.f32 %v2680, %v2816
      %v2893 = vadd.f32 %v2681, %v2821
      %v2894 = vadd.f32 %v2682, %v2824
      %v2895 = vadd.f32 %v2683, %v2829
      %v2896 = vadd.f32 %v2684, %v2832
      %v2897 = vadd.f32 %v2685, %v2837
      %v2898 = vadd.f32 %v2686, %v2840
      %v2899 = vadd.f32 %v2687, %v2845
      %v2900 = vadd.f32 %v2688, %v2848
      %v2901 = vadd.f32 %v2689, %v2853
      %v2902 = vadd.f32 %v2690, %v2856
      %v2903 = vadd.f32 %v2691, %v2861
      %v2904 = vadd.f32 %v2692, %v2864
      %v2905 = vadd.f32 %v2693, %v2869
      %v2906 = vadd.f32 %v2694, %v2872
      %v2907 = vld [vmem:[%s2] sm:$0x1]
      %v2909 = vlaneseq
      %v2910 = vshrl.u32 %v2909, 7
      %v2911 = vsub.s32 0, %v2910
      %v2912 = vrot.slane %v2907, %v2911
      %v2914 = vadd.f32 %v2875, %v2912
      %v2915 = vadd.f32 %v2876, %v2912
      %v2916 = vadd.f32 %v2877, %v2912
      %v2917 = vadd.f32 %v2878, %v2912
      %v2918 = vadd.f32 %v2879, %v2912
      %v2919 = vadd.f32 %v2880, %v2912
      %v2920 = vadd.f32 %v2881, %v2912
      %v2921 = vadd.f32 %v2882, %v2912
      %v2922 = vadd.f32 %v2883, %v2912
      %v2923 = vadd.f32 %v2884, %v2912
      %v2924 = vadd.f32 %v2885, %v2912
      %v2925 = vadd.f32 %v2886, %v2912
      %v2926 = vadd.f32 %v2887, %v2912
      %v2927 = vadd.f32 %v2888, %v2912
      %v2928 = vadd.f32 %v2889, %v2912
      %v2929 = vadd.f32 %v2890, %v2912
      %v2930 = vadd.f32 %v2891, %v2912
      %v2931 = vadd.f32 %v2892, %v2912
      %v2932 = vadd.f32 %v2893, %v2912
      %v2933 = vadd.f32 %v2894, %v2912
      %v2934 = vadd.f32 %v2895, %v2912
      %v2935 = vadd.f32 %v2896, %v2912
      %v2936 = vadd.f32 %v2897, %v2912
      %v2937 = vadd.f32 %v2898, %v2912
      %v2938 = vadd.f32 %v2899, %v2912
      %v2939 = vadd.f32 %v2900, %v2912
      %v2940 = vadd.f32 %v2901, %v2912
      %v2941 = vadd.f32 %v2902, %v2912
      %v2942 = vadd.f32 %v2903, %v2912
      %v2943 = vadd.f32 %v2904, %v2912
      %v2944 = vadd.f32 %v2905, %v2912
      %v2945 = vadd.f32 %v2906, %v2912
      %v2946 = vmax.f32 %v2914, 0.0
      %v2947 = vmax.f32 %v2915, 0.0
      %v2948 = vmax.f32 %v2916, 0.0
      %v2949 = vmax.f32 %v2917, 0.0
      %v2950 = vmax.f32 %v2918, 0.0
      %v2951 = vmax.f32 %v2919, 0.0
      %v2952 = vmax.f32 %v2920, 0.0
      %v2953 = vmax.f32 %v2921, 0.0
      %v2954 = vmax.f32 %v2922, 0.0
      %v2955 = vmax.f32 %v2923, 0.0
      %v2956 = vmax.f32 %v2924, 0.0
      %v2957 = vmax.f32 %v2925, 0.0
      %v2958 = vmax.f32 %v2926, 0.0
      %v2959 = vmax.f32 %v2927, 0.0
      %v2960 = vmax.f32 %v2928, 0.0
      %v2961 = vmax.f32 %v2929, 0.0
      %v2962 = vmax.f32 %v2930, 0.0
      %v2963 = vmax.f32 %v2931, 0.0
      %v2964 = vmax.f32 %v2932, 0.0
      %v2965 = vmax.f32 %v2933, 0.0
      %v2966 = vmax.f32 %v2934, 0.0
      %v2967 = vmax.f32 %v2935, 0.0
      %v2968 = vmax.f32 %v2936, 0.0
      %v2969 = vmax.f32 %v2937, 0.0
      %v2970 = vmax.f32 %v2938, 0.0
      %v2971 = vmax.f32 %v2939, 0.0
      %v2972 = vmax.f32 %v2940, 0.0
      %v2973 = vmax.f32 %v2941, 0.0
      %v2974 = vmax.f32 %v2942, 0.0
      %v2975 = vmax.f32 %v2943, 0.0
      %v2976 = vmax.f32 %v2944, 0.0
      %v2977 = vmax.f32 %v2945, 0.0
      %v2978 = vld [vmem:[#allocation2] sm:$0xff]
      %v2979 = vadd.f32 %v2946, %v2947
      %v2980 = vadd.f32 %v2979, %v2948
      %v2981 = vadd.f32 %v2980, %v2949
      %v2982 = vadd.f32 %v2981, %v2950
      %v2983 = vadd.f32 %v2982, %v2951
      %v2984 = vadd.f32 %v2983, %v2952
      %v2985 = vadd.f32 %v2984, %v2953
      %v2986 = vadd.f32 %v2985, %v2954
      %v2987 = vadd.f32 %v2986, %v2955
      %v2988 = vadd.f32 %v2987, %v2956
      %v2989 = vadd.f32 %v2988, %v2957
      %v2990 = vadd.f32 %v2989, %v2958
      %v2991 = vadd.f32 %v2990, %v2959
      %v2992 = vadd.f32 %v2991, %v2960
      %v2993 = vadd.f32 %v2992, %v2961
      %v2994 = vadd.f32 %v2993, %v2962
      %v2995 = vadd.f32 %v2994, %v2963
      %v2996 = vadd.f32 %v2995, %v2964
      %v2997 = vadd.f32 %v2996, %v2965
      %v2998 = vadd.f32 %v2997, %v2966
      %v2999 = vadd.f32 %v2998, %v2967
      %v3000 = vadd.f32 %v2999, %v2968
      %v3001 = vadd.f32 %v3000, %v2969
      %v3002 = vadd.f32 %v3001, %v2970
      %v3003 = vadd.f32 %v3002, %v2971
      %v3004 = vadd.f32 %v3003, %v2972
      %v3005 = vadd.f32 %v3004, %v2973
      %v3006 = vadd.f32 %v3005, %v2974
      %v3007 = vadd.f32 %v3006, %v2975
      %v3008 = vadd.f32 %v3007, %v2976
      %v3009 = vadd.f32 %v3008, %v2977
      %v3010 = vadd.f32 %v2978, %v3009
      %3011 = vst [vmem:[#allocation2] sm:$0xff] %v3010
      // Predicated region
      $region37: #{cv_classifier_forward.2} parent=31 // pred_check
        %p3012 = pneg %p187
      $region38: #{cv_classifier_forward.2} parent=31 // pred_check_branch
        %3014 = sbr.rel (%p3012) target = $region40
      $region39: #{cv_classifier_forward.2} parent=31 // pred_region
        %v3015 = vld [vmem:[#allocation2] sm:$0xff]
        %v3016 = vrot.slane %v3015, 4
        %v3017 = vadd.f32 %v3015, %v3016
        %v3018 = vrot.slane %v3017, 2
        %v3019 = vadd.f32 %v3017, %v3018
        %v3020 = vrot.slane %v3019, 1
        %v3021 = vadd.f32 %v3019, %v3020
        %v3022 = vmul.f32 %v3021, 0.00390625
        %v3023 = vpack.c.bf16 %v3022, %v3022
        %vm3024 = vcmask 1040384
        %vm3025 = vsmask.f32 256
        %vm3026 = vmand %vm3024, %vm3025
        %v3027 = vld [vmem:[%s185] sm:$0x1]
        %v3028 = vsel %vm3026, %v3023, %v3027
        %3029 = vst [vmem:[%s185] sm:$0x1] %v3028
      $region40: #{cv_classifier_forward.2} parent=31 // pred_fallthru
        _
      %p3030 = scmp.lt.s32.totalorder %s18, 1
      %s3031 = scalar_select %p3030, %s18, 1
      %s3032 = scalar_lea.vmem %s3, %s3031
      // Predicated region
      $region41: #{cv_classifier_forward.2} parent=31 // pred_check
        %p3033 = pneg %p114
      $region42: #{cv_classifier_forward.2} parent=31 // pred_check_branch
        %3035 = sbr.rel (%p3033) target = $region44
      $region43: #{cv_classifier_forward.2} parent=31 // pred_region
        _
      $region44: #{cv_classifier_forward.2} parent=31 // pred_fallthru
        _
    $region32: #{cv_classifier_forward.2} parent=5 // pred_fallthru
      _
    %p3036 = scmp.le.s32.totalorder 2, %s9
    // Predicated region
    $region45: #{cv_classifier_forward.2} parent=5 // pred_check
      %p3037 = pneg %p3036
    $region46: #{cv_classifier_forward.2} parent=5 // pred_check_branch
      %3039 = sbr.rel (%p3037) target = $region48
    $region47: #{cv_classifier_forward.2} parent=5 // pred_region
      %s3040 = ssub.s32 %s9, 2
      // Predicated region
      $region49: #{cv_classifier_forward.2} parent=47 // pred_check
        %p3041 = pneg %p120
      $region50: #{cv_classifier_forward.2} parent=47 // pred_check_branch
        %3043 = sbr.rel (%p3041) target = $region52
      $region51: #{cv_classifier_forward.2} parent=47 // pred_region
        %p3044 = scmp.lt.s32.totalorder %s20, 1
        %s3045 = scalar_select %p3044, %s20, 1
        %s3046 = scalar_lea.vmem %s3, %s3045
      $region52: #{cv_classifier_forward.2} parent=47 // pred_fallthru
        _
    $region48: #{cv_classifier_forward.2} parent=5 // pred_fallthru
      _
  $region6: #{cv_classifier_forward.2} parent=0 // loop_footer
    %s13 = sadd.s32 1, %s9
  $region7: #{cv_classifier_forward.2} parent=0 // loop_footer_branch
    %8 = sbr.rel target = $region3
  $region8: #{cv_classifier_forward.2} parent=0 // loop_exit
    _

</llo_original>
